<compile_context>
chip_gen: v7x
topology: tpu7x:2x2x1
jax: 0.10.0
libtpu: 0.0.40
codegen_flags: <defaults>
</compile_context>

<pallas_src>
import functools

import jax
import jax.numpy as jnp
from jax.experimental import pallas as pl
from jax.experimental.pallas import tpu as pltpu

HIDDEN = 768        # ClassificationHead default hidden_size
NUM_LABELS = 1      # ClassificationHead(1) in QAClf
LANE_PAD = 128      # logits lane axis padded to one dense 128-lane tile
TN_MAX = 1024       # max rows per grid step


def clf_head_kernel(x_ref, w1_ref, b1_ref, w2_ref, b2_ref, out_ref):
    """dense -> tanh -> out_proj on one (TN, H) row tile.

    x_ref : (TN, H)       features (f32 or bf16) - cast to bf16 in-kernel for the MXU
    w1_ref: (H, H)        dense weight, bf16 (VMEM-resident via constant index_map)
    b1_ref: (1, H)        dense bias, f32
    w2_ref: (1, H)        out_proj weight row, f32
    b2_ref: (1, 1)        out_proj bias, f32
    out_ref: (TN, 128)    bf16; the single logit broadcast across the lane axis
    """
    x = x_ref[...].astype(jnp.bfloat16)                                   # in-kernel cast (VPU)
    h = jnp.dot(x, w1_ref[...], preferred_element_type=jnp.float32)       # MXU, f32 accumulation
    h = jnp.tanh(h + b1_ref[...])                                         # f32 bias + tanh (v5e-safe)
    # num_labels == 1: out_proj as VPU multiply + lane reduce in f32 (keeps MXU free on v5e).
    col = jnp.sum(h * w2_ref[...], axis=-1, keepdims=True) + b2_ref[...]  # (TN, 1) f32
    out_ref[...] = jnp.broadcast_to(col, out_ref.shape).astype(out_ref.dtype)


def _pick_tile(n):
    """Rows per grid step: multiple of 128, <= TN_MAX, >= 2 grid steps when possible (v7x)."""
    blocks = -(-n // 128)
    if blocks <= 1:
        return 128
    return 128 * min(TN_MAX // 128, max(1, blocks // 2))


@functools.partial(jax.jit, static_argnames=("tn",))
def _clf_head_call(features, w1_bf16, b1, w2_row, b2, *, tn):
    n, h = features.shape
    grid = pl.cdiv(n, tn)
    cost = pl.CostEstimate(
        flops=2 * n * h * h + 3 * n * h,
        transcendentals=n * h,
        bytes_accessed=n * h * features.dtype.itemsize + h * h * 2 + n * LANE_PAD * 2,
    )
    return pl.pallas_call(
        clf_head_kernel,
        out_shape=jax.ShapeDtypeStruct((n, LANE_PAD), jnp.bfloat16),
        grid_spec=pltpu.PrefetchScalarGridSpec(
            num_scalar_prefetch=0,
            grid=(grid,),
            in_specs=[
                pl.BlockSpec((tn, h), lambda i: (i, 0)),    # features tile (streamed)
                pl.BlockSpec((h, h), lambda i: (0, 0)),     # dense weight (resident, bf16)
                pl.BlockSpec((1, h), lambda i: (0, 0)),     # dense bias (f32)
                pl.BlockSpec((1, h), lambda i: (0, 0)),     # out_proj weight row (f32)
                pl.BlockSpec((1, 1), lambda i: (0, 0)),     # out_proj bias (f32)
            ],
            out_specs=pl.BlockSpec((tn, LANE_PAD), lambda i: (i, 0)),
        ),
        compiler_params=pltpu.CompilerParams(
            dimension_semantics=("parallel",),
            vmem_limit_bytes=32 * 1024 * 1024,
        ),
        cost_estimate=cost,
    )(features, w1_bf16, b1, w2_row, b2)


def clf_head_forward(features, w1_bf16, b1, w2_row, b2):
    """features (N, H) -> logits (N, NUM_LABELS) f32."""
    n = features.shape[0]
    out = _clf_head_call(features, w1_bf16, b1, w2_row, b2, tn=_pick_tile(n))
    return out[:, :NUM_LABELS].astype(jnp.float32)


class QAClfPallas:
    """Pallas version of QAClf's classification head applied to CLS-token embeddings."""

    def __init__(self, hidden_size=HIDDEN, num_labels=NUM_LABELS,
                 key=jax.random.PRNGKey(0)):
        assert num_labels == 1, "kernel's VPU out_proj assumes ClassificationHead(1)"
        k1, k2, k3, k4 = jax.random.split(key, 4)
        # nn.Linear stores (out, in); the kernel computes x @ W, so build (in, out) directly.
        # f32 master weights feed the reference; bf16 w1 feeds the MXU.
        self.w1 = 0.02 * jax.random.normal(k1, (hidden_size, hidden_size), jnp.float32)
        self.b1 = 0.02 * jax.random.normal(k2, (1, hidden_size), jnp.float32)
        self.w2 = 0.02 * jax.random.normal(k3, (hidden_size, num_labels), jnp.float32)
        self.b2 = 0.02 * jax.random.normal(k4, (1, num_labels), jnp.float32)

        self.w1_bf16 = self.w1.astype(jnp.bfloat16)
        self.w2_row = self.w2.T                 # (1, H) f32 row for the VPU out_proj
        self.b2_11 = self.b2.reshape(1, 1)      # (1, 1) f32

    def forward(self, cls_features):
        # TODO(synk): the tokenizer + AutoModelForMaskedLM backbone (hidden_states[-1][:, 0, :])
        # has no standalone Pallas equivalent; `cls_features` stands in for those CLS embeddings.
        logits = clf_head_forward(cls_features, self.w1_bf16, self.b1,
                                  self.w2_row, self.b2_11)
        return jnp.squeeze(logits)   # matches `outputs.squeeze()`


def _reference(features, w1, b1, w2, b2):
    h = jnp.tanh(features @ w1 + b1)
    return h @ w2 + b2


if __name__ == "__main__":
    key = jax.random.PRNGKey(0)
    N = 512
    features = jax.random.normal(key, (N, HIDDEN), jnp.float32)   # stand-in CLS embeddings

    model = QAClfPallas()
    out = jax.block_until_ready(model.forward(features))
    assert out.shape == (N,)

    # sanity check against a plain-JAX f32 reference of the same head
    ref = jnp.squeeze(_reference(features, model.w1, model.b1, model.w2, model.b2))
    max_err = float(jnp.max(jnp.abs(out - ref)))
    assert jnp.allclose(out, ref, rtol=3e-2, atol=3e-2), max_err   # bf16 MXU operands + bf16 logits

    print("KERNEL_OK")
</pallas_src>

<mosaic_0001>
module attributes {stable_mosaic.version = 11 : i64} {
  func.func @clf_head_kernel(%arg0: i32, %arg1: memref<256x768xf32, #tpu.memory_space<vmem>>, %arg2: memref<768x768xbf16, #tpu.memory_space<vmem>>, %arg3: memref<1x768xf32, #tpu.memory_space<vmem>>, %arg4: memref<1x768xf32, #tpu.memory_space<vmem>>, %arg5: memref<1x1xf32, #tpu.memory_space<vmem>>, %arg6: memref<256x128xbf16, #tpu.memory_space<vmem>>) attributes {dimension_semantics = [#tpu.dimension_semantics<parallel>], iteration_bounds = array<i64: 2>, scalar_prefetch = 0 : i64, scratch_operands = 0 : i64, tpu.core_type = #tpu.core_type<tc>, window_params = [{transform_indices = @transform_0, window_bounds = array<i64: 256, 768>}, {pipeline_mode = #tpu.pipeline_mode<synchronous>, transform_indices = @transform_1, window_bounds = array<i64: 768, 768>}, {pipeline_mode = #tpu.pipeline_mode<synchronous>, transform_indices = @transform_2, window_bounds = array<i64: 1, 768>}, {pipeline_mode = #tpu.pipeline_mode<synchronous>, transform_indices = @transform_3, window_bounds = array<i64: 1, 768>}, {pipeline_mode = #tpu.pipeline_mode<synchronous>, transform_indices = @transform_4, window_bounds = array<i64: 1, 1>}, {transform_indices = @transform_5, window_bounds = array<i64: 256, 128>}]} {
    %c0 = arith.constant 0 : index
    %c0_0 = arith.constant 0 : index
    %0 = vector.load %arg1[%c0, %c0_0] : memref<256x768xf32, #tpu.memory_space<vmem>>, vector<256x768xf32>
    %1 = arith.truncf %0 : vector<256x768xf32> to vector<256x768xbf16>
    %c0_1 = arith.constant 0 : index
    %c0_2 = arith.constant 0 : index
    %2 = vector.load %arg2[%c0_1, %c0_2] : memref<768x768xbf16, #tpu.memory_space<vmem>>, vector<768x768xbf16>
    %cst = arith.constant dense<0.000000e+00> : vector<256x768xf32>
    %3 = tpu.matmul %1, %2, %cst {dimension_numbers = #tpu.dot_dimension_numbers<[1], [0], [0], [1], [0, 0, 1, 1], [], []>} : vector<256x768xbf16>, vector<768x768xbf16>, vector<256x768xf32> -> vector<256x768xf32>
    %c0_3 = arith.constant 0 : index
    %c0_4 = arith.constant 0 : index
    %4 = vector.load %arg3[%c0_3, %c0_4] : memref<1x768xf32, #tpu.memory_space<vmem>>, vector<1x768xf32>
    %5 = vector.broadcast %4 : vector<1x768xf32> to vector<256x768xf32>
    %6 = arith.addf %3, %5 : vector<256x768xf32>
    %7 = math.tanh %6 : vector<256x768xf32>
    %c0_5 = arith.constant 0 : index
    %c0_6 = arith.constant 0 : index
    %8 = vector.load %arg4[%c0_5, %c0_6] : memref<1x768xf32, #tpu.memory_space<vmem>>, vector<1x768xf32>
    %9 = vector.broadcast %8 : vector<1x768xf32> to vector<256x768xf32>
    %10 = arith.mulf %7, %9 : vector<256x768xf32>
    %cst_7 = arith.constant dense<0.000000e+00> : vector<256xf32>
    %11 = vector.multi_reduction <add>, %10, %cst_7 [1] : vector<256x768xf32> to vector<256xf32>
    %12 = vector.shape_cast %11 : vector<256xf32> to vector<256x1xf32>
    %c0_8 = arith.constant 0 : index
    %c0_9 = arith.constant 0 : index
    %13 = vector.load %arg5[%c0_8, %c0_9] : memref<1x1xf32, #tpu.memory_space<vmem>>, vector<1x1xf32>
    %14 = vector.broadcast %13 : vector<1x1xf32> to vector<256x1xf32>
    %15 = arith.addf %12, %14 : vector<256x1xf32>
    %16 = vector.shape_cast %15 : vector<256x1xf32> to vector<256x1xf32>
    %17 = vector.broadcast %16 : vector<256x1xf32> to vector<256x128xf32>
    %18 = arith.truncf %17 : vector<256x128xf32> to vector<256x128xbf16>
    %c0_10 = arith.constant 0 : index
    %c0_11 = arith.constant 0 : index
    %19 = vector.load %arg6[%c0_10, %c0_11] : memref<256x128xbf16, #tpu.memory_space<vmem>>, vector<256x128xbf16>
    tpu.vector_store %arg6[%c0_10, %c0_11], %18 {strides = array<i32>} : memref<256x128xbf16, #tpu.memory_space<vmem>>, vector<256x128xbf16>,
    return
  }
  func.func @transform_0(%arg0: i32) -> (i32, i32) {
    %c0_i32 = arith.constant 0 : i32
    %c0_i32_0 = arith.constant 0 : i32
    return %arg0, %c0_i32 : i32, i32
  }
  func.func @transform_1(%arg0: i32) -> (i32, i32) {
    %c0_i32 = arith.constant 0 : i32
    %c0_i32_0 = arith.constant 0 : i32
    %c0_i32_1 = arith.constant 0 : i32
    return %c0_i32, %c0_i32_0 : i32, i32
  }
  func.func @transform_2(%arg0: i32) -> (i32, i32) {
    %c0_i32 = arith.constant 0 : i32
    %c0_i32_0 = arith.constant 0 : i32
    %c0_i32_1 = arith.constant 0 : i32
    return %c0_i32, %c0_i32_0 : i32, i32
  }
  func.func @transform_3(%arg0: i32) -> (i32, i32) {
    %c0_i32 = arith.constant 0 : i32
    %c0_i32_0 = arith.constant 0 : i32
    %c0_i32_1 = arith.constant 0 : i32
    return %c0_i32, %c0_i32_0 : i32, i32
  }
  func.func @transform_4(%arg0: i32) -> (i32, i32) {
    %c0_i32 = arith.constant 0 : i32
    %c0_i32_0 = arith.constant 0 : i32
    %c0_i32_1 = arith.constant 0 : i32
    return %c0_i32, %c0_i32_0 : i32, i32
  }
  func.func @transform_5(%arg0: i32) -> (i32, i32) {
    %c0_i32 = arith.constant 0 : i32
    %c0_i32_0 = arith.constant 0 : i32
    return %arg0, %c0_i32 : i32, i32
  }
}

</mosaic_0001>

<llo_original>
// kernel: _clf_head_call.1
$region0: #{_clf_head_call.1}
  #allocation0 [shape = 'u32[]', space=smem, size = 0x4, offset = 0x4, fixed_abs, tag = 'smem constant byte address 0x4 - core index']
  #allocation1 [shape = 'u32[144,128]{1,0:T(1,128)}', space=vmem, size = 0x12000, scoped, tag = 'internal scratch']
  #allocation2 [shape = 'f32[1,1]{1,0:T(1,128)S(1)}', space=vmem, size = 0x200, scoped, tag = 'scoped memory for _clf_head_call.1']
  %s0 = inlined_call_operand.hbm [shape: f32[512,768], index: 0, kind: input, shape index: {}]
  %s1 = inlined_call_operand.hbm [shape: bf16[768,768], index: 1, kind: input, shape index: {}]
  %s2 = inlined_call_operand.hbm [shape: f32[1,768], index: 2, kind: input, shape index: {}]
  %s3 = inlined_call_operand.hbm [shape: f32[1,768], index: 3, kind: input, shape index: {}]
  %s4 = inlined_call_operand.<no memory space> [shape: f32[1,1], index: 4, kind: input, shape index: {}]
  %s5 = inlined_call_operand.hbm [shape: bf16[512,128], index: 5, kind: output, shape index: {}]
  %s6 = sld [smem:[#allocation0]]
  $region69: #{_clf_head_call.1} parent=0
    _
  %s8 = ssub.s32 1, %s6
  %s9 = scalar_select 0, %s8, %s6
  %v10 = vstv %s4
  %11 = vst [vmem:[#allocation2] sm:$0x1] %v10
  $region1: #{_clf_head_call.1} parent=0
    #allocation3 [shape = 'u8[1572864]{0}', space=vmem, size = 0x180000, scoped, tag = 'input window, operand 0']
    #allocation4 [shape = 's32[2]{0}', space=sflag, size = 0x8, scoped, tag = 'scoped memory for _clf_head_call.1']
    #allocation5 [shape = 's32[2]{0}', space=sflag, size = 0x8, scoped, tag = 'scoped memory for _clf_head_call.1']
    #allocation6 [shape = 'u8[1179648]{0}', space=vmem, size = 0x120000, scoped, tag = 'input window, operand 1, single buffered']
    #allocation7 [shape = 's32[1]{0}', space=sflag, size = 0x4, scoped, tag = 'scoped memory for _clf_head_call.1']
    #allocation8 [shape = 'u8[3072]{0}', space=vmem, size = 0xc00, scoped, tag = 'input window, operand 2, single buffered']
    #allocation9 [shape = 'u8[3072]{0}', space=vmem, size = 0xc00, scoped, tag = 'input window, operand 3, single buffered']
    #allocation10 [shape = 's32[1]{0}', space=sflag, size = 0x4, scoped, tag = 'scoped memory for _clf_head_call.1']
    #allocation11 [shape = 'u8[131072]{0}', space=vmem, size = 0x20000, scoped, tag = 'output window, operand 0']
    %12 = vsyncpa [#allocation4], 0
    %s13 = scalar_lea.sflag [#allocation4], 1
    %14 = vsyncpa %s13, 0
    %15 = vsyncpa [#allocation7], 0
    %16 = vsyncpa [#allocation10], 0
    %17 = vsyncpa [#allocation5], 0
    %s18 = scalar_lea.sflag [#allocation5], 1
    %19 = vsyncpa %s18, 0
    loop: start=0, step=1, limit=4
    $region2: #{_clf_head_call.1} parent=1 // loop_pre_header
      _
    $region3: #{_clf_head_call.1} parent=1 // loop_header
      %s21 = sphi 0, %s25
      %p22 = scmp.ge.s32.totalorder %s21, 4
      %s31 = sphi 0, %s33
      %s34 = sphi 0, %s31
      %s35 = sphi 0, %s34
      %s51 = sphi 0, %s35
      %s55 = sphi 0, %s55
      %s57 = sphi 0, %s55
      %s58 = sphi 0, %s57
      %s72 = sphi 0, %s58
      %s76 = sphi 0, %s76
      %s78 = sphi 0, %s76
      %s79 = sphi 0, %s78
      %s93 = sphi 0, %s79
      %s97 = sphi 0, %s97
      %s99 = sphi 0, %s97
      %s100 = sphi 0, %s99
      %s114 = sphi 0, %s100
      %s118 = sphi 0, %s118
      %s120 = sphi 0, %s118
      %s121 = sphi 0, %s120
      %s135 = sphi 0, %s121
      %s141 = sphi 0, %s143
      %s144 = sphi 0, %s141
      %s145 = sphi 0, %s144
      %s161 = sphi 0, %s145
    $region4: #{_clf_head_call.1} parent=1 // loop_header_branch
      %24 = sbr.rel (%p22) target = $region8
    $region5: #{_clf_head_call.1} parent=1 // loop_body
      %s26 = ssub.s32 %s21, 1
      %s27 = ssub.s32 %s21, 2
      %s28 = sadd.s32 %s21, 1
      %s29 = ssub.s32 %s21, %s28
      %p30 = scmp.eq.s32.totalorder %s29, 0
      %s32 = sadd.s32 %s31, 1
      %s33 = scalar_select %p30, %s31, %s32
      %p36 = pneg %p30
      %p37 = scmp.eq.s32.totalorder %s21, 1
      %p38 = por %p36, %p37
      %p39 = scmp.ne.s32.totalorder %s31, %s34
      %p40 = scmp.eq.s32.totalorder %s21, 0
      %p41 = por %p39, %p40
      %p42 = scmp.ne.s32.totalorder %s31, %s34
      %p43 = scmp.eq.s32.totalorder %s26, 1
      %p44 = por %p42, %p43
      %p45 = scmp.ne.s32.totalorder %s34, %s35
      %p46 = scmp.eq.s32.totalorder %s26, 0
      %p47 = por %p45, %p46
      %p48 = scmp.ne.s32.totalorder %s34, %s35
      %p49 = scmp.eq.s32.totalorder %s27, 1
      %p50 = por %p48, %p49
      %p52 = scmp.ne.s32.totalorder %s35, %s51
      %p53 = scmp.eq.s32.totalorder %s27, 0
      %p54 = por %p52, %p53
      %s56 = sadd.s32 %s55, 1
      %p59 = scmp.eq.s32.totalorder %s21, 1
      %p60 = scmp.ne.s32.totalorder %s55, %s57
      %p61 = scmp.eq.s32.totalorder %s21, 0
      %p62 = por %p60, %p61
      %p63 = scmp.ne.s32.totalorder %s55, %s57
      %p64 = scmp.eq.s32.totalorder %s26, 1
      %p65 = por %p63, %p64
      %p66 = scmp.ne.s32.totalorder %s57, %s58
      %p67 = scmp.eq.s32.totalorder %s26, 0
      %p68 = por %p66, %p67
      %p69 = scmp.ne.s32.totalorder %s57, %s58
      %p70 = scmp.eq.s32.totalorder %s27, 1
      %p71 = por %p69, %p70
      %p73 = scmp.ne.s32.totalorder %s58, %s72
      %p74 = scmp.eq.s32.totalorder %s27, 0
      %p75 = por %p73, %p74
      %s77 = sadd.s32 %s76, 1
      %p80 = scmp.eq.s32.totalorder %s21, 1
      %p81 = scmp.ne.s32.totalorder %s76, %s78
      %p82 = scmp.eq.s32.totalorder %s21, 0
      %p83 = por %p81, %p82
      %p84 = scmp.ne.s32.totalorder %s76, %s78
      %p85 = scmp.eq.s32.totalorder %s26, 1
      %p86 = por %p84, %p85
      %p87 = scmp.ne.s32.totalorder %s78, %s79
      %p88 = scmp.eq.s32.totalorder %s26, 0
      %p89 = por %p87, %p88
      %p90 = scmp.ne.s32.totalorder %s78, %s79
      %p91 = scmp.eq.s32.totalorder %s27, 1
      %p92 = por %p90, %p91
      %p94 = scmp.ne.s32.totalorder %s79, %s93
      %p95 = scmp.eq.s32.totalorder %s27, 0
      %p96 = por %p94, %p95
      %s98 = sadd.s32 %s97, 1
      %p101 = scmp.eq.s32.totalorder %s21, 1
      %p102 = scmp.ne.s32.totalorder %s97, %s99
      %p103 = scmp.eq.s32.totalorder %s21, 0
      %p104 = por %p102, %p103
      %p105 = scmp.ne.s32.totalorder %s97, %s99
      %p106 = scmp.eq.s32.totalorder %s26, 1
      %p107 = por %p105, %p106
      %p108 = scmp.ne.s32.totalorder %s99, %s100
      %p109 = scmp.eq.s32.totalorder %s26, 0
      %p110 = por %p108, %p109
      %p111 = scmp.ne.s32.totalorder %s99, %s100
      %p112 = scmp.eq.s32.totalorder %s27, 1
      %p113 = por %p111, %p112
      %p115 = scmp.ne.s32.totalorder %s100, %s114
      %p116 = scmp.eq.s32.totalorder %s27, 0
      %p117 = por %p115, %p116
      %s119 = sadd.s32 %s118, 1
      %p122 = scmp.eq.s32.totalorder %s21, 1
      %p123 = scmp.ne.s32.totalorder %s118, %s120
      %p124 = scmp.eq.s32.totalorder %s21, 0
      %p125 = por %p123, %p124
      %p126 = scmp.ne.s32.totalorder %s118, %s120
      %p127 = scmp.eq.s32.totalorder %s26, 1
      %p128 = por %p126, %p127
      %p129 = scmp.ne.s32.totalorder %s120, %s121
      %p130 = scmp.eq.s32.totalorder %s26, 0
      %p131 = por %p129, %p130
      %p132 = scmp.ne.s32.totalorder %s120, %s121
      %p133 = scmp.eq.s32.totalorder %s27, 1
      %p134 = por %p132, %p133
      %p136 = scmp.ne.s32.totalorder %s121, %s135
      %p137 = scmp.eq.s32.totalorder %s27, 0
      %p138 = por %p136, %p137
      %s139 = ssub.s32 %s21, %s28
      %p140 = scmp.eq.s32.totalorder %s139, 0
      %s142 = sadd.s32 %s141, 1
      %s143 = scalar_select %p140, %s141, %s142
      %p146 = pneg %p140
      %p147 = scmp.eq.s32.totalorder %s21, 1
      %p148 = por %p146, %p147
      %p149 = scmp.ne.s32.totalorder %s141, %s144
      %p150 = scmp.eq.s32.totalorder %s21, 0
      %p151 = por %p149, %p150
      %p152 = scmp.ne.s32.totalorder %s141, %s144
      %p153 = scmp.eq.s32.totalorder %s26, 1
      %p154 = por %p152, %p153
      %p155 = scmp.ne.s32.totalorder %s144, %s145
      %p156 = scmp.eq.s32.totalorder %s26, 0
      %p157 = por %p155, %p156
      %p158 = scmp.ne.s32.totalorder %s144, %s145
      %p159 = scmp.eq.s32.totalorder %s27, 1
      %p160 = por %p158, %p159
      %p162 = scmp.ne.s32.totalorder %s145, %s161
      %p163 = scmp.eq.s32.totalorder %s27, 0
      %p164 = por %p162, %p163
      %p165 = scmp.le.s32.totalorder 1, %s21
      %p166 = scmp.lt.s32.totalorder %s21, 3
      %p167 = pnand %p165, %p166
      %p168 = pneg %p167
      // Predicated region
      $region9: #{_clf_head_call.1} parent=5 // pred_check
        _
      $region10: #{_clf_head_call.1} parent=5 // pred_check_branch
        %170 = sbr.rel (%p167) target = $region12
      $region11: #{_clf_head_call.1} parent=5 // pred_region
        %s171 = ssub.s32 %s21, 1
        // Predicated region
        $region13: #{_clf_head_call.1} parent=11 // pred_check
          %p172 = pneg %p68
        $region14: #{_clf_head_call.1} parent=11 // pred_check_branch
          %174 = sbr.rel (%p172) target = $region16
        $region15: #{_clf_head_call.1} parent=11 // pred_region
          %s176 = ssub.s32 36864, 36864
          %177 = vsyncadd [#allocation7], %s176
          %s178 = sshll.u32 [#allocation6], 4
          %s179 = int_to_ptr.vmem [resolvable:$true] %s178
          %184 = dma.hbm_to_vmem [thread:$0]  %s1, 36864, %s179, [#allocation7], 384, 384, 24
        $region16: #{_clf_head_call.1} parent=11 // pred_fallthru
          _
        // Predicated region
        $region17: #{_clf_head_call.1} parent=11 // pred_check
          %p185 = pneg %p89
        $region18: #{_clf_head_call.1} parent=11 // pred_check_branch
          %187 = sbr.rel (%p185) target = $region20
        $region19: #{_clf_head_call.1} parent=11 // pred_region
          %s189 = ssub.s32 96, 96
          %190 = vsyncadd [#allocation7], %s189
          %s192 = sshll.u32 [#allocation8], 4
          %s193 = int_to_ptr.vmem [resolvable:$true] %s192
          %195 = dma.hbm_to_vmem [thread:$0]  %s2, 96, %s193, [#allocation7]
        $region20: #{_clf_head_call.1} parent=11 // pred_fallthru
          _
        // Predicated region
        $region21: #{_clf_head_call.1} parent=11 // pred_check
          %p196 = pneg %p110
        $region22: #{_clf_head_call.1} parent=11 // pred_check_branch
          %198 = sbr.rel (%p196) target = $region24
        $region23: #{_clf_head_call.1} parent=11 // pred_region
          %s200 = ssub.s32 96, 96
          %201 = vsyncadd [#allocation10], %s200
          %s203 = sshll.u32 [#allocation9], 4
          %s204 = int_to_ptr.vmem [resolvable:$true] %s203
          %206 = dma.hbm_to_vmem [thread:$0]  %s3, 96, %s204, [#allocation10]
        $region24: #{_clf_head_call.1} parent=11 // pred_fallthru
          _
        // Predicated region
        $region25: #{_clf_head_call.1} parent=11 // pred_check
          %p207 = pneg %p131
        $region26: #{_clf_head_call.1} parent=11 // pred_check_branch
          %209 = sbr.rel (%p207) target = $region28
        $region27: #{_clf_head_call.1} parent=11 // pred_region
          _
        $region28: #{_clf_head_call.1} parent=11 // pred_fallthru
          _
      $region12: #{_clf_head_call.1} parent=5 // pred_fallthru
        _
      %p210 = scmp.lt.s32.totalorder %s21, 2
      // Predicated region
      $region29: #{_clf_head_call.1} parent=5 // pred_check
        %p211 = pneg %p210
      $region30: #{_clf_head_call.1} parent=5 // pred_check_branch
        %213 = sbr.rel (%p211) target = $region32
      $region31: #{_clf_head_call.1} parent=5 // pred_region
        // Predicated region
        $region33: #{_clf_head_call.1} parent=31 // pred_check
          %p214 = pneg %p41
        $region34: #{_clf_head_call.1} parent=31 // pred_check_branch
          %216 = sbr.rel (%p214) target = $region36
        $region35: #{_clf_head_call.1} parent=31 // pred_region
          %s217 = sand.u32 %s31, 1
          %s218 = scalar_lea.sflag [#allocation4], %s217
          %s219 = sand.u32 %s31, 1
          %s220 = smul.addr %s219, 1536
          %s221 = scalar_lea.vmem [#allocation3], %s220
          %s222 = smul.u32 32, %s21
          %s224 = ssub.s32 24576, 24576
          %225 = vsyncadd %s218, %s224
          %s226 = smul.addr %s222, 6
          %s227 = smul.addr %s226, 128
          %s228 = scalar_lea.hbm %s0, %s227
          %s229 = sshll.u32 %s221, 4
          %s230 = int_to_ptr.vmem [resolvable:$true] %s229
          %235 = dma.hbm_to_vmem [thread:$0]  %s228, 24576, %s230, %s218, 768, 768, 48
        $region36: #{_clf_head_call.1} parent=31 // pred_fallthru
          _
      $region32: #{_clf_head_call.1} parent=5 // pred_fallthru
        _
      %p236 = scmp.le.s32.totalorder 1, %s21
      %p237 = scmp.lt.s32.totalorder %s21, 3
      %p238 = pnand %p236, %p237
      %p239 = pneg %p238
      // Predicated region
      $region37: #{_clf_head_call.1} parent=5 // pred_check
        _
      $region38: #{_clf_head_call.1} parent=5 // pred_check_branch
        %241 = sbr.rel (%p238) target = $region40
      $region39: #{_clf_head_call.1} parent=5 // pred_region
        %s242 = ssub.s32 %s21, 1
        %s243 = sand.u32 %s34, 1
        %s244 = scalar_lea.sflag [#allocation4], %s243
        %s245 = sand.u32 %s34, 1
        %s246 = smul.addr %s245, 1536
        %s247 = scalar_lea.vmem [#allocation3], %s246
        // Predicated region
        $region41: #{_clf_head_call.1} parent=39 // pred_check
          %p248 = pneg %p47
        $region42: #{_clf_head_call.1} parent=39 // pred_check_branch
          %250 = sbr.rel (%p248) target = $region44
        $region43: #{_clf_head_call.1} parent=39 // pred_region
          %251 = dma.done %s244, 24576
        $region44: #{_clf_head_call.1} parent=39 // pred_fallthru
          _
        // Predicated region
        $region45: #{_clf_head_call.1} parent=39 // pred_check
          %p252 = pneg %p68
        $region46: #{_clf_head_call.1} parent=39 // pred_check_branch
          %254 = sbr.rel (%p252) target = $region48
        $region47: #{_clf_head_call.1} parent=39 // pred_region
          %255 = dma.done [#allocation7], 36864
        $region48: #{_clf_head_call.1} parent=39 // pred_fallthru
          _
        // Predicated region
        $region49: #{_clf_head_call.1} parent=39 // pred_check
          %p256 = pneg %p89
        $region50: #{_clf_head_call.1} parent=39 // pred_check_branch
          %258 = sbr.rel (%p256) target = $region52
        $region51: #{_clf_head_call.1} parent=39 // pred_region
          %259 = dma.done [#allocation7], 96
        $region52: #{_clf_head_call.1} parent=39 // pred_fallthru
          _
        // Predicated region
        $region53: #{_clf_head_call.1} parent=39 // pred_check
          %p260 = pneg %p110
        $region54: #{_clf_head_call.1} parent=39 // pred_check_branch
          %262 = sbr.rel (%p260) target = $region56
        $region55: #{_clf_head_call.1} parent=39 // pred_region
          %263 = dma.done [#allocation10], 96
        $region56: #{_clf_head_call.1} parent=39 // pred_fallthru
          _
        %s264 = sand.u32 %s34, 1
        %s265 = scalar_lea.sflag [#allocation4], %s264
        %s266 = sand.u32 %s34, 1
        %s267 = smul.addr %s266, 1536
        %s268 = scalar_lea.vmem [#allocation3], %s267
        %p269 = pneg %p47
        %p270 = pneg %p44
        %p271 = pneg %p68
        %p272 = pneg %p65
        %p273 = pneg %p89
        %p274 = pneg %p86
        %p275 = pneg %p110
        %p276 = pneg %p107
        %p277 = pneg %p131
        %p278 = pneg %p128
        %p279 = pneg %p157
        %p280 = pneg %p154
        %s281 = sand.u32 %s144, 1
        %s282 = scalar_lea.sflag [#allocation5], %s281
        %s283 = sand.u32 %s144, 1
        %s284 = smul.addr %s283, 128
        %s285 = scalar_lea.vmem [#allocation11], %s284
        %s286 = smul.u32 32, %s26
        %s287 = smul.u32 32, %s26
        %v288 = vld [vmem:[%s247] sm:$0xff]
        %v289 = vld [vmem:[%s247 + $0x8] sm:$0xff]
        %v290 = vld [vmem:[%s247 + $0x10] sm:$0xff]
        %v291 = vld [vmem:[%s247 + $0x18] sm:$0xff]
        %v292 = vld [vmem:[%s247 + $0x20] sm:$0xff]
        %v293 = vld [vmem:[%s247 + $0x28] sm:$0xff]
        %v294 = vld [vmem:[%s247 + $0x30] sm:$0xff]
        %v295 = vld [vmem:[%s247 + $0x38] sm:$0xff]
        %v296 = vld [vmem:[%s247 + $0x40] sm:$0xff]
        %v297 = vld [vmem:[%s247 + $0x48] sm:$0xff]
        %v298 = vld [vmem:[%s247 + $0x50] sm:$0xff]
        %v299 = vld [vmem:[%s247 + $0x58] sm:$0xff]
        %v300 = vld [vmem:[%s247 + $0x60] sm:$0xff]
        %v301 = vld [vmem:[%s247 + $0x68] sm:$0xff]
        %v302 = vld [vmem:[%s247 + $0x70] sm:$0xff]
        %v303 = vld [vmem:[%s247 + $0x78] sm:$0xff]
        %v304 = vld [vmem:[%s247 + $0x80] sm:$0xff]
        %v305 = vld [vmem:[%s247 + $0x88] sm:$0xff]
        %v306 = vld [vmem:[%s247 + $0x90] sm:$0xff]
        %v307 = vld [vmem:[%s247 + $0x98] sm:$0xff]
        %v308 = vld [vmem:[%s247 + $0xa0] sm:$0xff]
        %v309 = vld [vmem:[%s247 + $0xa8] sm:$0xff]
        %v310 = vld [vmem:[%s247 + $0xb0] sm:$0xff]
        %v311 = vld [vmem:[%s247 + $0xb8] sm:$0xff]
        %v312 = vld [vmem:[%s247 + $0xc0] sm:$0xff]
        %v313 = vld [vmem:[%s247 + $0xc8] sm:$0xff]
        %v314 = vld [vmem:[%s247 + $0xd0] sm:$0xff]
        %v315 = vld [vmem:[%s247 + $0xd8] sm:$0xff]
        %v316 = vld [vmem:[%s247 + $0xe0] sm:$0xff]
        %v317 = vld [vmem:[%s247 + $0xe8] sm:$0xff]
        %v318 = vld [vmem:[%s247 + $0xf0] sm:$0xff]
        %v319 = vld [vmem:[%s247 + $0xf8] sm:$0xff]
        %v320 = vld [vmem:[%s247 + $0x100] sm:$0xff]
        %v321 = vld [vmem:[%s247 + $0x108] sm:$0xff]
        %v322 = vld [vmem:[%s247 + $0x110] sm:$0xff]
        %v323 = vld [vmem:[%s247 + $0x118] sm:$0xff]
        %v324 = vld [vmem:[%s247 + $0x120] sm:$0xff]
        %v325 = vld [vmem:[%s247 + $0x128] sm:$0xff]
        %v326 = vld [vmem:[%s247 + $0x130] sm:$0xff]
        %v327 = vld [vmem:[%s247 + $0x138] sm:$0xff]
        %v328 = vld [vmem:[%s247 + $0x140] sm:$0xff]
        %v329 = vld [vmem:[%s247 + $0x148] sm:$0xff]
        %v330 = vld [vmem:[%s247 + $0x150] sm:$0xff]
        %v331 = vld [vmem:[%s247 + $0x158] sm:$0xff]
        %v332 = vld [vmem:[%s247 + $0x160] sm:$0xff]
        %v333 = vld [vmem:[%s247 + $0x168] sm:$0xff]
        %v334 = vld [vmem:[%s247 + $0x170] sm:$0xff]
        %v335 = vld [vmem:[%s247 + $0x178] sm:$0xff]
        %v336 = vld [vmem:[%s247 + $0x180] sm:$0xff]
        %v337 = vld [vmem:[%s247 + $0x188] sm:$0xff]
        %v338 = vld [vmem:[%s247 + $0x190] sm:$0xff]
        %v339 = vld [vmem:[%s247 + $0x198] sm:$0xff]
        %v340 = vld [vmem:[%s247 + $0x1a0] sm:$0xff]
        %v341 = vld [vmem:[%s247 + $0x1a8] sm:$0xff]
        %v342 = vld [vmem:[%s247 + $0x1b0] sm:$0xff]
        %v343 = vld [vmem:[%s247 + $0x1b8] sm:$0xff]
        %v344 = vld [vmem:[%s247 + $0x1c0] sm:$0xff]
        %v345 = vld [vmem:[%s247 + $0x1c8] sm:$0xff]
        %v346 = vld [vmem:[%s247 + $0x1d0] sm:$0xff]
        %v347 = vld [vmem:[%s247 + $0x1d8] sm:$0xff]
        %v348 = vld [vmem:[%s247 + $0x1e0] sm:$0xff]
        %v349 = vld [vmem:[%s247 + $0x1e8] sm:$0xff]
        %v350 = vld [vmem:[%s247 + $0x1f0] sm:$0xff]
        %v351 = vld [vmem:[%s247 + $0x1f8] sm:$0xff]
        %v352 = vld [vmem:[%s247 + $0x200] sm:$0xff]
        %v353 = vld [vmem:[%s247 + $0x208] sm:$0xff]
        %v354 = vld [vmem:[%s247 + $0x210] sm:$0xff]
        %v355 = vld [vmem:[%s247 + $0x218] sm:$0xff]
        %v356 = vld [vmem:[%s247 + $0x220] sm:$0xff]
        %v357 = vld [vmem:[%s247 + $0x228] sm:$0xff]
        %v358 = vld [vmem:[%s247 + $0x230] sm:$0xff]
        %v359 = vld [vmem:[%s247 + $0x238] sm:$0xff]
        %v360 = vld [vmem:[%s247 + $0x240] sm:$0xff]
        %v361 = vld [vmem:[%s247 + $0x248] sm:$0xff]
        %v362 = vld [vmem:[%s247 + $0x250] sm:$0xff]
        %v363 = vld [vmem:[%s247 + $0x258] sm:$0xff]
        %v364 = vld [vmem:[%s247 + $0x260] sm:$0xff]
        %v365 = vld [vmem:[%s247 + $0x268] sm:$0xff]
        %v366 = vld [vmem:[%s247 + $0x270] sm:$0xff]
        %v367 = vld [vmem:[%s247 + $0x278] sm:$0xff]
        %v368 = vld [vmem:[%s247 + $0x280] sm:$0xff]
        %v369 = vld [vmem:[%s247 + $0x288] sm:$0xff]
        %v370 = vld [vmem:[%s247 + $0x290] sm:$0xff]
        %v371 = vld [vmem:[%s247 + $0x298] sm:$0xff]
        %v372 = vld [vmem:[%s247 + $0x2a0] sm:$0xff]
        %v373 = vld [vmem:[%s247 + $0x2a8] sm:$0xff]
        %v374 = vld [vmem:[%s247 + $0x2b0] sm:$0xff]
        %v375 = vld [vmem:[%s247 + $0x2b8] sm:$0xff]
        %v376 = vld [vmem:[%s247 + $0x2c0] sm:$0xff]
        %v377 = vld [vmem:[%s247 + $0x2c8] sm:$0xff]
        %v378 = vld [vmem:[%s247 + $0x2d0] sm:$0xff]
        %v379 = vld [vmem:[%s247 + $0x2d8] sm:$0xff]
        %v380 = vld [vmem:[%s247 + $0x2e0] sm:$0xff]
        %v381 = vld [vmem:[%s247 + $0x2e8] sm:$0xff]
        %v382 = vld [vmem:[%s247 + $0x2f0] sm:$0xff]
        %v383 = vld [vmem:[%s247 + $0x2f8] sm:$0xff]
        %v384 = vld [vmem:[%s247 + $0x300] sm:$0xff]
        %v385 = vld [vmem:[%s247 + $0x308] sm:$0xff]
        %v386 = vld [vmem:[%s247 + $0x310] sm:$0xff]
        %v387 = vld [vmem:[%s247 + $0x318] sm:$0xff]
        %v388 = vld [vmem:[%s247 + $0x320] sm:$0xff]
        %v389 = vld [vmem:[%s247 + $0x328] sm:$0xff]
        %v390 = vld [vmem:[%s247 + $0x330] sm:$0xff]
        %v391 = vld [vmem:[%s247 + $0x338] sm:$0xff]
        %v392 = vld [vmem:[%s247 + $0x340] sm:$0xff]
        %v393 = vld [vmem:[%s247 + $0x348] sm:$0xff]
        %v394 = vld [vmem:[%s247 + $0x350] sm:$0xff]
        %v395 = vld [vmem:[%s247 + $0x358] sm:$0xff]
        %v396 = vld [vmem:[%s247 + $0x360] sm:$0xff]
        %v397 = vld [vmem:[%s247 + $0x368] sm:$0xff]
        %v398 = vld [vmem:[%s247 + $0x370] sm:$0xff]
        %v399 = vld [vmem:[%s247 + $0x378] sm:$0xff]
        %v400 = vld [vmem:[%s247 + $0x380] sm:$0xff]
        %v401 = vld [vmem:[%s247 + $0x388] sm:$0xff]
        %v402 = vld [vmem:[%s247 + $0x390] sm:$0xff]
        %v403 = vld [vmem:[%s247 + $0x398] sm:$0xff]
        %v404 = vld [vmem:[%s247 + $0x3a0] sm:$0xff]
        %v405 = vld [vmem:[%s247 + $0x3a8] sm:$0xff]
        %v406 = vld [vmem:[%s247 + $0x3b0] sm:$0xff]
        %v407 = vld [vmem:[%s247 + $0x3b8] sm:$0xff]
        %v408 = vld [vmem:[%s247 + $0x3c0] sm:$0xff]
        %v409 = vld [vmem:[%s247 + $0x3c8] sm:$0xff]
        %v410 = vld [vmem:[%s247 + $0x3d0] sm:$0xff]
        %v411 = vld [vmem:[%s247 + $0x3d8] sm:$0xff]
        %v412 = vld [vmem:[%s247 + $0x3e0] sm:$0xff]
        %v413 = vld [vmem:[%s247 + $0x3e8] sm:$0xff]
        %v414 = vld [vmem:[%s247 + $0x3f0] sm:$0xff]
        %v415 = vld [vmem:[%s247 + $0x3f8] sm:$0xff]
        %v416 = vld [vmem:[%s247 + $0x400] sm:$0xff]
        %v417 = vld [vmem:[%s247 + $0x408] sm:$0xff]
        %v418 = vld [vmem:[%s247 + $0x410] sm:$0xff]
        %v419 = vld [vmem:[%s247 + $0x418] sm:$0xff]
        %v420 = vld [vmem:[%s247 + $0x420] sm:$0xff]
        %v421 = vld [vmem:[%s247 + $0x428] sm:$0xff]
        %v422 = vld [vmem:[%s247 + $0x430] sm:$0xff]
        %v423 = vld [vmem:[%s247 + $0x438] sm:$0xff]
        %v424 = vld [vmem:[%s247 + $0x440] sm:$0xff]
        %v425 = vld [vmem:[%s247 + $0x448] sm:$0xff]
        %v426 = vld [vmem:[%s247 + $0x450] sm:$0xff]
        %v427 = vld [vmem:[%s247 + $0x458] sm:$0xff]
        %v428 = vld [vmem:[%s247 + $0x460] sm:$0xff]
        %v429 = vld [vmem:[%s247 + $0x468] sm:$0xff]
        %v430 = vld [vmem:[%s247 + $0x470] sm:$0xff]
        %v431 = vld [vmem:[%s247 + $0x478] sm:$0xff]
        %v432 = vld [vmem:[%s247 + $0x480] sm:$0xff]
        %v433 = vld [vmem:[%s247 + $0x488] sm:$0xff]
        %v434 = vld [vmem:[%s247 + $0x490] sm:$0xff]
        %v435 = vld [vmem:[%s247 + $0x498] sm:$0xff]
        %v436 = vld [vmem:[%s247 + $0x4a0] sm:$0xff]
        %v437 = vld [vmem:[%s247 + $0x4a8] sm:$0xff]
        %v438 = vld [vmem:[%s247 + $0x4b0] sm:$0xff]
        %v439 = vld [vmem:[%s247 + $0x4b8] sm:$0xff]
        %v440 = vld [vmem:[%s247 + $0x4c0] sm:$0xff]
        %v441 = vld [vmem:[%s247 + $0x4c8] sm:$0xff]
        %v442 = vld [vmem:[%s247 + $0x4d0] sm:$0xff]
        %v443 = vld [vmem:[%s247 + $0x4d8] sm:$0xff]
        %v444 = vld [vmem:[%s247 + $0x4e0] sm:$0xff]
        %v445 = vld [vmem:[%s247 + $0x4e8] sm:$0xff]
        %v446 = vld [vmem:[%s247 + $0x4f0] sm:$0xff]
        %v447 = vld [vmem:[%s247 + $0x4f8] sm:$0xff]
        %v448 = vld [vmem:[%s247 + $0x500] sm:$0xff]
        %v449 = vld [vmem:[%s247 + $0x508] sm:$0xff]
        %v450 = vld [vmem:[%s247 + $0x510] sm:$0xff]
        %v451 = vld [vmem:[%s247 + $0x518] sm:$0xff]
        %v452 = vld [vmem:[%s247 + $0x520] sm:$0xff]
        %v453 = vld [vmem:[%s247 + $0x528] sm:$0xff]
        %v454 = vld [vmem:[%s247 + $0x530] sm:$0xff]
        %v455 = vld [vmem:[%s247 + $0x538] sm:$0xff]
        %v456 = vld [vmem:[%s247 + $0x540] sm:$0xff]
        %v457 = vld [vmem:[%s247 + $0x548] sm:$0xff]
        %v458 = vld [vmem:[%s247 + $0x550] sm:$0xff]
        %v459 = vld [vmem:[%s247 + $0x558] sm:$0xff]
        %v460 = vld [vmem:[%s247 + $0x560] sm:$0xff]
        %v461 = vld [vmem:[%s247 + $0x568] sm:$0xff]
        %v462 = vld [vmem:[%s247 + $0x570] sm:$0xff]
        %v463 = vld [vmem:[%s247 + $0x578] sm:$0xff]
        %v464 = vld [vmem:[%s247 + $0x580] sm:$0xff]
        %v465 = vld [vmem:[%s247 + $0x588] sm:$0xff]
        %v466 = vld [vmem:[%s247 + $0x590] sm:$0xff]
        %v467 = vld [vmem:[%s247 + $0x598] sm:$0xff]
        %v468 = vld [vmem:[%s247 + $0x5a0] sm:$0xff]
        %v469 = vld [vmem:[%s247 + $0x5a8] sm:$0xff]
        %v470 = vld [vmem:[%s247 + $0x5b0] sm:$0xff]
        %v471 = vld [vmem:[%s247 + $0x5b8] sm:$0xff]
        %v472 = vld [vmem:[%s247 + $0x5c0] sm:$0xff]
        %v473 = vld [vmem:[%s247 + $0x5c8] sm:$0xff]
        %v474 = vld [vmem:[%s247 + $0x5d0] sm:$0xff]
        %v475 = vld [vmem:[%s247 + $0x5d8] sm:$0xff]
        %v476 = vld [vmem:[%s247 + $0x5e0] sm:$0xff]
        %v477 = vld [vmem:[%s247 + $0x5e8] sm:$0xff]
        %v478 = vld [vmem:[%s247 + $0x5f0] sm:$0xff]
        %v479 = vld [vmem:[%s247 + $0x5f8] sm:$0xff]
        %v480 = vpack.c.bf16 %v294, %v288
        %v481 = vpack.c.bf16 %v295, %v289
        %v482 = vpack.c.bf16 %v296, %v290
        %v483 = vpack.c.bf16 %v297, %v291
        %v484 = vpack.c.bf16 %v298, %v292
        %v485 = vpack.c.bf16 %v299, %v293
        %v486 = vpack.c.bf16 %v306, %v300
        %v487 = vpack.c.bf16 %v307, %v301
        %v488 = vpack.c.bf16 %v308, %v302
        %v489 = vpack.c.bf16 %v309, %v303
        %v490 = vpack.c.bf16 %v310, %v304
        %v491 = vpack.c.bf16 %v311, %v305
        %v492 = vpack.c.bf16 %v318, %v312
        %v493 = vpack.c.bf16 %v319, %v313
        %v494 = vpack.c.bf16 %v320, %v314
        %v495 = vpack.c.bf16 %v321, %v315
        %v496 = vpack.c.bf16 %v322, %v316
        %v497 = vpack.c.bf16 %v323, %v317
        %v498 = vpack.c.bf16 %v330, %v324
        %v499 = vpack.c.bf16 %v331, %v325
        %v500 = vpack.c.bf16 %v332, %v326
        %v501 = vpack.c.bf16 %v333, %v327
        %v502 = vpack.c.bf16 %v334, %v328
        %v503 = vpack.c.bf16 %v335, %v329
        %v504 = vpack.c.bf16 %v342, %v336
        %v505 = vpack.c.bf16 %v343, %v337
        %v506 = vpack.c.bf16 %v344, %v338
        %v507 = vpack.c.bf16 %v345, %v339
        %v508 = vpack.c.bf16 %v346, %v340
        %v509 = vpack.c.bf16 %v347, %v341
        %v510 = vpack.c.bf16 %v354, %v348
        %v511 = vpack.c.bf16 %v355, %v349
        %v512 = vpack.c.bf16 %v356, %v350
        %v513 = vpack.c.bf16 %v357, %v351
        %v514 = vpack.c.bf16 %v358, %v352
        %v515 = vpack.c.bf16 %v359, %v353
        %v516 = vpack.c.bf16 %v366, %v360
        %v517 = vpack.c.bf16 %v367, %v361
        %v518 = vpack.c.bf16 %v368, %v362
        %v519 = vpack.c.bf16 %v369, %v363
        %v520 = vpack.c.bf16 %v370, %v364
        %v521 = vpack.c.bf16 %v371, %v365
        %v522 = vpack.c.bf16 %v378, %v372
        %v523 = vpack.c.bf16 %v379, %v373
        %v524 = vpack.c.bf16 %v380, %v374
        %v525 = vpack.c.bf16 %v381, %v375
        %v526 = vpack.c.bf16 %v382, %v376
        %v527 = vpack.c.bf16 %v383, %v377
        %v528 = vpack.c.bf16 %v390, %v384
        %v529 = vpack.c.bf16 %v391, %v385
        %v530 = vpack.c.bf16 %v392, %v386
        %v531 = vpack.c.bf16 %v393, %v387
        %v532 = vpack.c.bf16 %v394, %v388
        %v533 = vpack.c.bf16 %v395, %v389
        %v534 = vpack.c.bf16 %v402, %v396
        %v535 = vpack.c.bf16 %v403, %v397
        %v536 = vpack.c.bf16 %v404, %v398
        %v537 = vpack.c.bf16 %v405, %v399
        %v538 = vpack.c.bf16 %v406, %v400
        %v539 = vpack.c.bf16 %v407, %v401
        %v540 = vpack.c.bf16 %v414, %v408
        %v541 = vpack.c.bf16 %v415, %v409
        %v542 = vpack.c.bf16 %v416, %v410
        %v543 = vpack.c.bf16 %v417, %v411
        %v544 = vpack.c.bf16 %v418, %v412
        %v545 = vpack.c.bf16 %v419, %v413
        %v546 = vpack.c.bf16 %v426, %v420
        %v547 = vpack.c.bf16 %v427, %v421
        %v548 = vpack.c.bf16 %v428, %v422
        %v549 = vpack.c.bf16 %v429, %v423
        %v550 = vpack.c.bf16 %v430, %v424
        %v551 = vpack.c.bf16 %v431, %v425
        %v552 = vpack.c.bf16 %v438, %v432
        %v553 = vpack.c.bf16 %v439, %v433
        %v554 = vpack.c.bf16 %v440, %v434
        %v555 = vpack.c.bf16 %v441, %v435
        %v556 = vpack.c.bf16 %v442, %v436
        %v557 = vpack.c.bf16 %v443, %v437
        %v558 = vpack.c.bf16 %v450, %v444
        %v559 = vpack.c.bf16 %v451, %v445
        %v560 = vpack.c.bf16 %v452, %v446
        %v561 = vpack.c.bf16 %v453, %v447
        %v562 = vpack.c.bf16 %v454, %v448
        %v563 = vpack.c.bf16 %v455, %v449
        %v564 = vpack.c.bf16 %v462, %v456
        %v565 = vpack.c.bf16 %v463, %v457
        %v566 = vpack.c.bf16 %v464, %v458
        %v567 = vpack.c.bf16 %v465, %v459
        %v568 = vpack.c.bf16 %v466, %v460
        %v569 = vpack.c.bf16 %v467, %v461
        %v570 = vpack.c.bf16 %v474, %v468
        %v571 = vpack.c.bf16 %v475, %v469
        %v572 = vpack.c.bf16 %v476, %v470
        %v573 = vpack.c.bf16 %v477, %v471
        %v574 = vpack.c.bf16 %v478, %v472
        %v575 = vpack.c.bf16 %v479, %v473
        %v576 = vld [vmem:[#allocation6] sm:$0xff]
        %v577 = vld [vmem:[#allocation6 + $0x8] sm:$0xff]
        %v578 = vld [vmem:[#allocation6 + $0x10] sm:$0xff]
        %v579 = vld [vmem:[#allocation6 + $0x18] sm:$0xff]
        %v580 = vld [vmem:[#allocation6 + $0x20] sm:$0xff]
        %v581 = vld [vmem:[#allocation6 + $0x28] sm:$0xff]
        %v582 = vld [vmem:[#allocation6 + $0x30] sm:$0xff]
        %v583 = vld [vmem:[#allocation6 + $0x38] sm:$0xff]
        %v584 = vld [vmem:[#allocation6 + $0x40] sm:$0xff]
        %v585 = vld [vmem:[#allocation6 + $0x48] sm:$0xff]
        %v586 = vld [vmem:[#allocation6 + $0x50] sm:$0xff]
        %v587 = vld [vmem:[#allocation6 + $0x58] sm:$0xff]
        %v588 = vld [vmem:[#allocation6 + $0x60] sm:$0xff]
        %v589 = vld [vmem:[#allocation6 + $0x68] sm:$0xff]
        %v590 = vld [vmem:[#allocation6 + $0x70] sm:$0xff]
        %v591 = vld [vmem:[#allocation6 + $0x78] sm:$0xff]
        %v592 = vld [vmem:[#allocation6 + $0x80] sm:$0xff]
        %v593 = vld [vmem:[#allocation6 + $0x88] sm:$0xff]
        %v594 = vld [vmem:[#allocation6 + $0x90] sm:$0xff]
        %v595 = vld [vmem:[#allocation6 + $0x98] sm:$0xff]
        %v596 = vld [vmem:[#allocation6 + $0xa0] sm:$0xff]
        %v597 = vld [vmem:[#allocation6 + $0xa8] sm:$0xff]
        %v598 = vld [vmem:[#allocation6 + $0xb0] sm:$0xff]
        %v599 = vld [vmem:[#allocation6 + $0xb8] sm:$0xff]
        %v600 = vld [vmem:[#allocation6 + $0xc0] sm:$0xff]
        %v601 = vld [vmem:[#allocation6 + $0xc8] sm:$0xff]
        %v602 = vld [vmem:[#allocation6 + $0xd0] sm:$0xff]
        %v603 = vld [vmem:[#allocation6 + $0xd8] sm:$0xff]
        %v604 = vld [vmem:[#allocation6 + $0xe0] sm:$0xff]
        %v605 = vld [vmem:[#allocation6 + $0xe8] sm:$0xff]
        %v606 = vld [vmem:[#allocation6 + $0xf0] sm:$0xff]
        %v607 = vld [vmem:[#allocation6 + $0xf8] sm:$0xff]
        %v608 = vld [vmem:[#allocation6 + $0x100] sm:$0xff]
        %v609 = vld [vmem:[#allocation6 + $0x108] sm:$0xff]
        %v610 = vld [vmem:[#allocation6 + $0x110] sm:$0xff]
        %v611 = vld [vmem:[#allocation6 + $0x118] sm:$0xff]
        %v612 = vld [vmem:[#allocation6 + $0x120] sm:$0xff]
        %v613 = vld [vmem:[#allocation6 + $0x128] sm:$0xff]
        %v614 = vld [vmem:[#allocation6 + $0x130] sm:$0xff]
        %v615 = vld [vmem:[#allocation6 + $0x138] sm:$0xff]
        %v616 = vld [vmem:[#allocation6 + $0x140] sm:$0xff]
        %v617 = vld [vmem:[#allocation6 + $0x148] sm:$0xff]
        %v618 = vld [vmem:[#allocation6 + $0x150] sm:$0xff]
        %v619 = vld [vmem:[#allocation6 + $0x158] sm:$0xff]
        %v620 = vld [vmem:[#allocation6 + $0x160] sm:$0xff]
        %v621 = vld [vmem:[#allocation6 + $0x168] sm:$0xff]
        %v622 = vld [vmem:[#allocation6 + $0x170] sm:$0xff]
        %v623 = vld [vmem:[#allocation6 + $0x178] sm:$0xff]
        %v624 = vld [vmem:[#allocation6 + $0x180] sm:$0xff]
        %v625 = vld [vmem:[#allocation6 + $0x188] sm:$0xff]
        %v626 = vld [vmem:[#allocation6 + $0x190] sm:$0xff]
        %v627 = vld [vmem:[#allocation6 + $0x198] sm:$0xff]
        %v628 = vld [vmem:[#allocation6 + $0x1a0] sm:$0xff]
        %v629 = vld [vmem:[#allocation6 + $0x1a8] sm:$0xff]
        %v630 = vld [vmem:[#allocation6 + $0x1b0] sm:$0xff]
        %v631 = vld [vmem:[#allocation6 + $0x1b8] sm:$0xff]
        %v632 = vld [vmem:[#allocation6 + $0x1c0] sm:$0xff]
        %v633 = vld [vmem:[#allocation6 + $0x1c8] sm:$0xff]
        %v634 = vld [vmem:[#allocation6 + $0x1d0] sm:$0xff]
        %v635 = vld [vmem:[#allocation6 + $0x1d8] sm:$0xff]
        %v636 = vld [vmem:[#allocation6 + $0x1e0] sm:$0xff]
        %v637 = vld [vmem:[#allocation6 + $0x1e8] sm:$0xff]
        %v638 = vld [vmem:[#allocation6 + $0x1f0] sm:$0xff]
        %v639 = vld [vmem:[#allocation6 + $0x1f8] sm:$0xff]
        %v640 = vld [vmem:[#allocation6 + $0x200] sm:$0xff]
        %v641 = vld [vmem:[#allocation6 + $0x208] sm:$0xff]
        %v642 = vld [vmem:[#allocation6 + $0x210] sm:$0xff]
        %v643 = vld [vmem:[#allocation6 + $0x218] sm:$0xff]
        %v644 = vld [vmem:[#allocation6 + $0x220] sm:$0xff]
        %v645 = vld [vmem:[#allocation6 + $0x228] sm:$0xff]
        %v646 = vld [vmem:[#allocation6 + $0x230] sm:$0xff]
        %v647 = vld [vmem:[#allocation6 + $0x238] sm:$0xff]
        %v648 = vld [vmem:[#allocation6 + $0x240] sm:$0xff]
        %v649 = vld [vmem:[#allocation6 + $0x248] sm:$0xff]
        %v650 = vld [vmem:[#allocation6 + $0x250] sm:$0xff]
        %v651 = vld [vmem:[#allocation6 + $0x258] sm:$0xff]
        %v652 = vld [vmem:[#allocation6 + $0x260] sm:$0xff]
        %v653 = vld [vmem:[#allocation6 + $0x268] sm:$0xff]
        %v654 = vld [vmem:[#allocation6 + $0x270] sm:$0xff]
        %v655 = vld [vmem:[#allocation6 + $0x278] sm:$0xff]
        %v656 = vld [vmem:[#allocation6 + $0x280] sm:$0xff]
        %v657 = vld [vmem:[#allocation6 + $0x288] sm:$0xff]
        %v658 = vld [vmem:[#allocation6 + $0x290] sm:$0xff]
        %v659 = vld [vmem:[#allocation6 + $0x298] sm:$0xff]
        %v660 = vld [vmem:[#allocation6 + $0x2a0] sm:$0xff]
        %v661 = vld [vmem:[#allocation6 + $0x2a8] sm:$0xff]
        %v662 = vld [vmem:[#allocation6 + $0x2b0] sm:$0xff]
        %v663 = vld [vmem:[#allocation6 + $0x2b8] sm:$0xff]
        %v664 = vld [vmem:[#allocation6 + $0x2c0] sm:$0xff]
        %v665 = vld [vmem:[#allocation6 + $0x2c8] sm:$0xff]
        %v666 = vld [vmem:[#allocation6 + $0x2d0] sm:$0xff]
        %v667 = vld [vmem:[#allocation6 + $0x2d8] sm:$0xff]
        %v668 = vld [vmem:[#allocation6 + $0x2e0] sm:$0xff]
        %v669 = vld [vmem:[#allocation6 + $0x2e8] sm:$0xff]
        %v670 = vld [vmem:[#allocation6 + $0x2f0] sm:$0xff]
        %v671 = vld [vmem:[#allocation6 + $0x2f8] sm:$0xff]
        %v672 = vld [vmem:[#allocation6 + $0x300] sm:$0xff]
        %v673 = vld [vmem:[#allocation6 + $0x308] sm:$0xff]
        %v674 = vld [vmem:[#allocation6 + $0x310] sm:$0xff]
        %v675 = vld [vmem:[#allocation6 + $0x318] sm:$0xff]
        %v676 = vld [vmem:[#allocation6 + $0x320] sm:$0xff]
        %v677 = vld [vmem:[#allocation6 + $0x328] sm:$0xff]
        %v678 = vld [vmem:[#allocation6 + $0x330] sm:$0xff]
        %v679 = vld [vmem:[#allocation6 + $0x338] sm:$0xff]
        %v680 = vld [vmem:[#allocation6 + $0x340] sm:$0xff]
        %v681 = vld [vmem:[#allocation6 + $0x348] sm:$0xff]
        %v682 = vld [vmem:[#allocation6 + $0x350] sm:$0xff]
        %v683 = vld [vmem:[#allocation6 + $0x358] sm:$0xff]
        %v684 = vld [vmem:[#allocation6 + $0x360] sm:$0xff]
        %v685 = vld [vmem:[#allocation6 + $0x368] sm:$0xff]
        %v686 = vld [vmem:[#allocation6 + $0x370] sm:$0xff]
        %v687 = vld [vmem:[#allocation6 + $0x378] sm:$0xff]
        %v688 = vld [vmem:[#allocation6 + $0x380] sm:$0xff]
        %v689 = vld [vmem:[#allocation6 + $0x388] sm:$0xff]
        %v690 = vld [vmem:[#allocation6 + $0x390] sm:$0xff]
        %v691 = vld [vmem:[#allocation6 + $0x398] sm:$0xff]
        %v692 = vld [vmem:[#allocation6 + $0x3a0] sm:$0xff]
        %v693 = vld [vmem:[#allocation6 + $0x3a8] sm:$0xff]
        %v694 = vld [vmem:[#allocation6 + $0x3b0] sm:$0xff]
        %v695 = vld [vmem:[#allocation6 + $0x3b8] sm:$0xff]
        %v696 = vld [vmem:[#allocation6 + $0x3c0] sm:$0xff]
        %v697 = vld [vmem:[#allocation6 + $0x3c8] sm:$0xff]
        %v698 = vld [vmem:[#allocation6 + $0x3d0] sm:$0xff]
        %v699 = vld [vmem:[#allocation6 + $0x3d8] sm:$0xff]
        %v700 = vld [vmem:[#allocation6 + $0x3e0] sm:$0xff]
        %v701 = vld [vmem:[#allocation6 + $0x3e8] sm:$0xff]
        %v702 = vld [vmem:[#allocation6 + $0x3f0] sm:$0xff]
        %v703 = vld [vmem:[#allocation6 + $0x3f8] sm:$0xff]
        %v704 = vld [vmem:[#allocation6 + $0x400] sm:$0xff]
        %v705 = vld [vmem:[#allocation6 + $0x408] sm:$0xff]
        %v706 = vld [vmem:[#allocation6 + $0x410] sm:$0xff]
        %v707 = vld [vmem:[#allocation6 + $0x418] sm:$0xff]
        %v708 = vld [vmem:[#allocation6 + $0x420] sm:$0xff]
        %v709 = vld [vmem:[#allocation6 + $0x428] sm:$0xff]
        %v710 = vld [vmem:[#allocation6 + $0x430] sm:$0xff]
        %v711 = vld [vmem:[#allocation6 + $0x438] sm:$0xff]
        %v712 = vld [vmem:[#allocation6 + $0x440] sm:$0xff]
        %v713 = vld [vmem:[#allocation6 + $0x448] sm:$0xff]
        %v714 = vld [vmem:[#allocation6 + $0x450] sm:$0xff]
        %v715 = vld [vmem:[#allocation6 + $0x458] sm:$0xff]
        %v716 = vld [vmem:[#allocation6 + $0x460] sm:$0xff]
        %v717 = vld [vmem:[#allocation6 + $0x468] sm:$0xff]
        %v718 = vld [vmem:[#allocation6 + $0x470] sm:$0xff]
        %v719 = vld [vmem:[#allocation6 + $0x478] sm:$0xff]
        %v720 = vld [vmem:[#allocation6 + $0x480] sm:$0xff]
        %v721 = vld [vmem:[#allocation6 + $0x488] sm:$0xff]
        %v722 = vld [vmem:[#allocation6 + $0x490] sm:$0xff]
        %v723 = vld [vmem:[#allocation6 + $0x498] sm:$0xff]
        %v724 = vld [vmem:[#allocation6 + $0x4a0] sm:$0xff]
        %v725 = vld [vmem:[#allocation6 + $0x4a8] sm:$0xff]
        %v726 = vld [vmem:[#allocation6 + $0x4b0] sm:$0xff]
        %v727 = vld [vmem:[#allocation6 + $0x4b8] sm:$0xff]
        %v728 = vld [vmem:[#allocation6 + $0x4c0] sm:$0xff]
        %v729 = vld [vmem:[#allocation6 + $0x4c8] sm:$0xff]
        %v730 = vld [vmem:[#allocation6 + $0x4d0] sm:$0xff]
        %v731 = vld [vmem:[#allocation6 + $0x4d8] sm:$0xff]
        %v732 = vld [vmem:[#allocation6 + $0x4e0] sm:$0xff]
        %v733 = vld [vmem:[#allocation6 + $0x4e8] sm:$0xff]
        %v734 = vld [vmem:[#allocation6 + $0x4f0] sm:$0xff]
        %v735 = vld [vmem:[#allocation6 + $0x4f8] sm:$0xff]
        %v736 = vld [vmem:[#allocation6 + $0x500] sm:$0xff]
        %v737 = vld [vmem:[#allocation6 + $0x508] sm:$0xff]
        %v738 = vld [vmem:[#allocation6 + $0x510] sm:$0xff]
        %v739 = vld [vmem:[#allocation6 + $0x518] sm:$0xff]
        %v740 = vld [vmem:[#allocation6 + $0x520] sm:$0xff]
        %v741 = vld [vmem:[#allocation6 + $0x528] sm:$0xff]
        %v742 = vld [vmem:[#allocation6 + $0x530] sm:$0xff]
        %v743 = vld [vmem:[#allocation6 + $0x538] sm:$0xff]
        %v744 = vld [vmem:[#allocation6 + $0x540] sm:$0xff]
        %v745 = vld [vmem:[#allocation6 + $0x548] sm:$0xff]
        %v746 = vld [vmem:[#allocation6 + $0x550] sm:$0xff]
        %v747 = vld [vmem:[#allocation6 + $0x558] sm:$0xff]
        %v748 = vld [vmem:[#allocation6 + $0x560] sm:$0xff]
        %v749 = vld [vmem:[#allocation6 + $0x568] sm:$0xff]
        %v750 = vld [vmem:[#allocation6 + $0x570] sm:$0xff]
        %v751 = vld [vmem:[#allocation6 + $0x578] sm:$0xff]
        %v752 = vld [vmem:[#allocation6 + $0x580] sm:$0xff]
        %v753 = vld [vmem:[#allocation6 + $0x588] sm:$0xff]
        %v754 = vld [vmem:[#allocation6 + $0x590] sm:$0xff]
        %v755 = vld [vmem:[#allocation6 + $0x598] sm:$0xff]
        %v756 = vld [vmem:[#allocation6 + $0x5a0] sm:$0xff]
        %v757 = vld [vmem:[#allocation6 + $0x5a8] sm:$0xff]
        %v758 = vld [vmem:[#allocation6 + $0x5b0] sm:$0xff]
        %v759 = vld [vmem:[#allocation6 + $0x5b8] sm:$0xff]
        %v760 = vld [vmem:[#allocation6 + $0x5c0] sm:$0xff]
        %v761 = vld [vmem:[#allocation6 + $0x5c8] sm:$0xff]
        %v762 = vld [vmem:[#allocation6 + $0x5d0] sm:$0xff]
        %v763 = vld [vmem:[#allocation6 + $0x5d8] sm:$0xff]
        %v764 = vld [vmem:[#allocation6 + $0x5e0] sm:$0xff]
        %v765 = vld [vmem:[#allocation6 + $0x5e8] sm:$0xff]
        %v766 = vld [vmem:[#allocation6 + $0x5f0] sm:$0xff]
        %v767 = vld [vmem:[#allocation6 + $0x5f8] sm:$0xff]
        %v768 = vld [vmem:[#allocation6 + $0x600] sm:$0xff]
        %v769 = vld [vmem:[#allocation6 + $0x608] sm:$0xff]
        %v770 = vld [vmem:[#allocation6 + $0x610] sm:$0xff]
        %v771 = vld [vmem:[#allocation6 + $0x618] sm:$0xff]
        %v772 = vld [vmem:[#allocation6 + $0x620] sm:$0xff]
        %v773 = vld [vmem:[#allocation6 + $0x628] sm:$0xff]
        %v774 = vld [vmem:[#allocation6 + $0x630] sm:$0xff]
        %v775 = vld [vmem:[#allocation6 + $0x638] sm:$0xff]
        %v776 = vld [vmem:[#allocation6 + $0x640] sm:$0xff]
        %v777 = vld [vmem:[#allocation6 + $0x648] sm:$0xff]
        %v778 = vld [vmem:[#allocation6 + $0x650] sm:$0xff]
        %v779 = vld [vmem:[#allocation6 + $0x658] sm:$0xff]
        %v780 = vld [vmem:[#allocation6 + $0x660] sm:$0xff]
        %v781 = vld [vmem:[#allocation6 + $0x668] sm:$0xff]
        %v782 = vld [vmem:[#allocation6 + $0x670] sm:$0xff]
        %v783 = vld [vmem:[#allocation6 + $0x678] sm:$0xff]
        %v784 = vld [vmem:[#allocation6 + $0x680] sm:$0xff]
        %v785 = vld [vmem:[#allocation6 + $0x688] sm:$0xff]
        %v786 = vld [vmem:[#allocation6 + $0x690] sm:$0xff]
        %v787 = vld [vmem:[#allocation6 + $0x698] sm:$0xff]
        %v788 = vld [vmem:[#allocation6 + $0x6a0] sm:$0xff]
        %v789 = vld [vmem:[#allocation6 + $0x6a8] sm:$0xff]
        %v790 = vld [vmem:[#allocation6 + $0x6b0] sm:$0xff]
        %v791 = vld [vmem:[#allocation6 + $0x6b8] sm:$0xff]
        %v792 = vld [vmem:[#allocation6 + $0x6c0] sm:$0xff]
        %v793 = vld [vmem:[#allocation6 + $0x6c8] sm:$0xff]
        %v794 = vld [vmem:[#allocation6 + $0x6d0] sm:$0xff]
        %v795 = vld [vmem:[#allocation6 + $0x6d8] sm:$0xff]
        %v796 = vld [vmem:[#allocation6 + $0x6e0] sm:$0xff]
        %v797 = vld [vmem:[#allocation6 + $0x6e8] sm:$0xff]
        %v798 = vld [vmem:[#allocation6 + $0x6f0] sm:$0xff]
        %v799 = vld [vmem:[#allocation6 + $0x6f8] sm:$0xff]
        %v800 = vld [vmem:[#allocation6 + $0x700] sm:$0xff]
        %v801 = vld [vmem:[#allocation6 + $0x708] sm:$0xff]
        %v802 = vld [vmem:[#allocation6 + $0x710] sm:$0xff]
        %v803 = vld [vmem:[#allocation6 + $0x718] sm:$0xff]
        %v804 = vld [vmem:[#allocation6 + $0x720] sm:$0xff]
        %v805 = vld [vmem:[#allocation6 + $0x728] sm:$0xff]
        %v806 = vld [vmem:[#allocation6 + $0x730] sm:$0xff]
        %v807 = vld [vmem:[#allocation6 + $0x738] sm:$0xff]
        %v808 = vld [vmem:[#allocation6 + $0x740] sm:$0xff]
        %v809 = vld [vmem:[#allocation6 + $0x748] sm:$0xff]
        %v810 = vld [vmem:[#allocation6 + $0x750] sm:$0xff]
        %v811 = vld [vmem:[#allocation6 + $0x758] sm:$0xff]
        %v812 = vld [vmem:[#allocation6 + $0x760] sm:$0xff]
        %v813 = vld [vmem:[#allocation6 + $0x768] sm:$0xff]
        %v814 = vld [vmem:[#allocation6 + $0x770] sm:$0xff]
        %v815 = vld [vmem:[#allocation6 + $0x778] sm:$0xff]
        %v816 = vld [vmem:[#allocation6 + $0x780] sm:$0xff]
        %v817 = vld [vmem:[#allocation6 + $0x788] sm:$0xff]
        %v818 = vld [vmem:[#allocation6 + $0x790] sm:$0xff]
        %v819 = vld [vmem:[#allocation6 + $0x798] sm:$0xff]
        %v820 = vld [vmem:[#allocation6 + $0x7a0] sm:$0xff]
        %v821 = vld [vmem:[#allocation6 + $0x7a8] sm:$0xff]
        %v822 = vld [vmem:[#allocation6 + $0x7b0] sm:$0xff]
        %v823 = vld [vmem:[#allocation6 + $0x7b8] sm:$0xff]
        %v824 = vld [vmem:[#allocation6 + $0x7c0] sm:$0xff]
        %v825 = vld [vmem:[#allocation6 + $0x7c8] sm:$0xff]
        %v826 = vld [vmem:[#allocation6 + $0x7d0] sm:$0xff]
        %v827 = vld [vmem:[#allocation6 + $0x7d8] sm:$0xff]
        %v828 = vld [vmem:[#allocation6 + $0x7e0] sm:$0xff]
        %v829 = vld [vmem:[#allocation6 + $0x7e8] sm:$0xff]
        %v830 = vld [vmem:[#allocation6 + $0x7f0] sm:$0xff]
        %v831 = vld [vmem:[#allocation6 + $0x7f8] sm:$0xff]
        %v832 = vld [vmem:[#allocation6 + $0x800] sm:$0xff]
        %v833 = vld [vmem:[#allocation6 + $0x808] sm:$0xff]
        %v834 = vld [vmem:[#allocation6 + $0x810] sm:$0xff]
        %v835 = vld [vmem:[#allocation6 + $0x818] sm:$0xff]
        %v836 = vld [vmem:[#allocation6 + $0x820] sm:$0xff]
        %v837 = vld [vmem:[#allocation6 + $0x828] sm:$0xff]
        %v838 = vld [vmem:[#allocation6 + $0x830] sm:$0xff]
        %v839 = vld [vmem:[#allocation6 + $0x838] sm:$0xff]
        %v840 = vld [vmem:[#allocation6 + $0x840] sm:$0xff]
        %v841 = vld [vmem:[#allocation6 + $0x848] sm:$0xff]
        %v842 = vld [vmem:[#allocation6 + $0x850] sm:$0xff]
        %v843 = vld [vmem:[#allocation6 + $0x858] sm:$0xff]
        %v844 = vld [vmem:[#allocation6 + $0x860] sm:$0xff]
        %v845 = vld [vmem:[#allocation6 + $0x868] sm:$0xff]
        %v846 = vld [vmem:[#allocation6 + $0x870] sm:$0xff]
        %v847 = vld [vmem:[#allocation6 + $0x878] sm:$0xff]
        %v848 = vld [vmem:[#allocation6 + $0x880] sm:$0xff]
        %v849 = vld [vmem:[#allocation6 + $0x888] sm:$0xff]
        %v850 = vld [vmem:[#allocation6 + $0x890] sm:$0xff]
        %v851 = vld [vmem:[#allocation6 + $0x898] sm:$0xff]
        %v852 = vld [vmem:[#allocation6 + $0x8a0] sm:$0xff]
        %v853 = vld [vmem:[#allocation6 + $0x8a8] sm:$0xff]
        %v854 = vld [vmem:[#allocation6 + $0x8b0] sm:$0xff]
        %v855 = vld [vmem:[#allocation6 + $0x8b8] sm:$0xff]
        %v856 = vld [vmem:[#allocation6 + $0x8c0] sm:$0xff]
        %v857 = vld [vmem:[#allocation6 + $0x8c8] sm:$0xff]
        %v858 = vld [vmem:[#allocation6 + $0x8d0] sm:$0xff]
        %v859 = vld [vmem:[#allocation6 + $0x8d8] sm:$0xff]
        %v860 = vld [vmem:[#allocation6 + $0x8e0] sm:$0xff]
        %v861 = vld [vmem:[#allocation6 + $0x8e8] sm:$0xff]
        %v862 = vld [vmem:[#allocation6 + $0x8f0] sm:$0xff]
        %v863 = vld [vmem:[#allocation6 + $0x8f8] sm:$0xff]
        %v864 = vld [vmem:[#allocation8] sm:$0x3f]
        %v866 = vlaneseq
        %v867 = vshrl.u32 %v866, 7
        %v868 = vsub.s32 0, %v867
        %v869 = vrot.slane %v864, %v868
        %v870 = vlaneseq
        %v871 = vshrl.u32 %v870, 7
        %v872 = vsub.s32 1, %v871
        %v873 = vrot.slane %v864, %v872
        %v874 = vlaneseq
        %v875 = vshrl.u32 %v874, 7
        %v876 = vsub.s32 2, %v875
        %v877 = vrot.slane %v864, %v876
        %v878 = vlaneseq
        %v879 = vshrl.u32 %v878, 7
        %v880 = vsub.s32 3, %v879
        %v881 = vrot.slane %v864, %v880
        %v882 = vlaneseq
        %v883 = vshrl.u32 %v882, 7
        %v884 = vsub.s32 4, %v883
        %v885 = vrot.slane %v864, %v884
        %v886 = vlaneseq
        %v887 = vshrl.u32 %v886, 7
        %v888 = vsub.s32 5, %v887
        %v889 = vrot.slane %v864, %v888
        %v1184 = vunpack.c.l.b16 %v576
        %v1185 = vunpack.c.h.b16 %v576
        %v1186 = vunpack.c.l.b16 %v577
        %v1187 = vunpack.c.h.b16 %v577
        %v1188 = vunpack.c.l.b16 %v578
        %v1189 = vunpack.c.h.b16 %v578
        %v1190 = vunpack.c.l.b16 %v579
        %v1191 = vunpack.c.h.b16 %v579
        %v1192 = vunpack.c.l.b16 %v580
        %v1193 = vunpack.c.h.b16 %v580
        %v1194 = vunpack.c.l.b16 %v581
        %v1195 = vunpack.c.h.b16 %v581
        %v1196 = vunpack.c.l.b16 %v582
        %v1197 = vunpack.c.h.b16 %v582
        %v1198 = vunpack.c.l.b16 %v583
        %v1199 = vunpack.c.h.b16 %v583
        %v1200 = vunpack.c.l.b16 %v584
        %v1201 = vunpack.c.h.b16 %v584
        %v1202 = vunpack.c.l.b16 %v585
        %v1203 = vunpack.c.h.b16 %v585
        %v1204 = vunpack.c.l.b16 %v586
        %v1205 = vunpack.c.h.b16 %v586
        %v1206 = vunpack.c.l.b16 %v587
        %v1207 = vunpack.c.h.b16 %v587
        %v1208 = vunpack.c.l.b16 %v588
        %v1209 = vunpack.c.h.b16 %v588
        %v1210 = vunpack.c.l.b16 %v589
        %v1211 = vunpack.c.h.b16 %v589
        %v1212 = vunpack.c.l.b16 %v590
        %v1213 = vunpack.c.h.b16 %v590
        %v1214 = vunpack.c.l.b16 %v591
        %v1215 = vunpack.c.h.b16 %v591
        %v1216 = vunpack.c.l.b16 %v592
        %v1217 = vunpack.c.h.b16 %v592
        %v1218 = vunpack.c.l.b16 %v593
        %v1219 = vunpack.c.h.b16 %v593
        %v1220 = vunpack.c.l.b16 %v594
        %v1221 = vunpack.c.h.b16 %v594
        %v1222 = vunpack.c.l.b16 %v595
        %v1223 = vunpack.c.h.b16 %v595
        %v1224 = vunpack.c.l.b16 %v596
        %v1225 = vunpack.c.h.b16 %v596
        %v1226 = vunpack.c.l.b16 %v597
        %v1227 = vunpack.c.h.b16 %v597
        %v1228 = vunpack.c.l.b16 %v598
        %v1229 = vunpack.c.h.b16 %v598
        %v1230 = vunpack.c.l.b16 %v599
        %v1231 = vunpack.c.h.b16 %v599
        %v1232 = vunpack.c.l.b16 %v600
        %v1233 = vunpack.c.h.b16 %v600
        %v1234 = vunpack.c.l.b16 %v601
        %v1235 = vunpack.c.h.b16 %v601
        %v1236 = vunpack.c.l.b16 %v602
        %v1237 = vunpack.c.h.b16 %v602
        %v1238 = vunpack.c.l.b16 %v603
        %v1239 = vunpack.c.h.b16 %v603
        %v1240 = vunpack.c.l.b16 %v604
        %v1241 = vunpack.c.h.b16 %v604
        %v1242 = vunpack.c.l.b16 %v605
        %v1243 = vunpack.c.h.b16 %v605
        %v1244 = vunpack.c.l.b16 %v606
        %v1245 = vunpack.c.h.b16 %v606
        %v1246 = vunpack.c.l.b16 %v607
        %v1247 = vunpack.c.h.b16 %v607
        %v1248 = vunpack.c.l.b16 %v608
        %v1249 = vunpack.c.h.b16 %v608
        %v1250 = vunpack.c.l.b16 %v609
        %v1251 = vunpack.c.h.b16 %v609
        %v1252 = vunpack.c.l.b16 %v610
        %v1253 = vunpack.c.h.b16 %v610
        %v1254 = vunpack.c.l.b16 %v611
        %v1255 = vunpack.c.h.b16 %v611
        %v1256 = vunpack.c.l.b16 %v612
        %v1257 = vunpack.c.h.b16 %v612
        %v1258 = vunpack.c.l.b16 %v613
        %v1259 = vunpack.c.h.b16 %v613
        %v1260 = vunpack.c.l.b16 %v614
        %v1261 = vunpack.c.h.b16 %v614
        %v1262 = vunpack.c.l.b16 %v615
        %v1263 = vunpack.c.h.b16 %v615
        %v1264 = vunpack.c.l.b16 %v616
        %v1265 = vunpack.c.h.b16 %v616
        %v1266 = vunpack.c.l.b16 %v617
        %v1267 = vunpack.c.h.b16 %v617
        %v1268 = vunpack.c.l.b16 %v618
        %v1269 = vunpack.c.h.b16 %v618
        %v1270 = vunpack.c.l.b16 %v619
        %v1271 = vunpack.c.h.b16 %v619
        %v1272 = vunpack.c.l.b16 %v620
        %v1273 = vunpack.c.h.b16 %v620
        %v1274 = vunpack.c.l.b16 %v621
        %v1275 = vunpack.c.h.b16 %v621
        %v1276 = vunpack.c.l.b16 %v622
        %v1277 = vunpack.c.h.b16 %v622
        %v1278 = vunpack.c.l.b16 %v623
        %v1279 = vunpack.c.h.b16 %v623
        %v1280 = vunpack.c.l.b16 %v624
        %v1281 = vunpack.c.h.b16 %v624
        %v1282 = vunpack.c.l.b16 %v625
        %v1283 = vunpack.c.h.b16 %v625
        %v1284 = vunpack.c.l.b16 %v626
        %v1285 = vunpack.c.h.b16 %v626
        %v1286 = vunpack.c.l.b16 %v627
        %v1287 = vunpack.c.h.b16 %v627
        %v1288 = vunpack.c.l.b16 %v628
        %v1289 = vunpack.c.h.b16 %v628
        %v1290 = vunpack.c.l.b16 %v629
        %v1291 = vunpack.c.h.b16 %v629
        %v1292 = vunpack.c.l.b16 %v630
        %v1293 = vunpack.c.h.b16 %v630
        %v1294 = vunpack.c.l.b16 %v631
        %v1295 = vunpack.c.h.b16 %v631
        %v1296 = vunpack.c.l.b16 %v632
        %v1297 = vunpack.c.h.b16 %v632
        %v1298 = vunpack.c.l.b16 %v633
        %v1299 = vunpack.c.h.b16 %v633
        %v1300 = vunpack.c.l.b16 %v634
        %v1301 = vunpack.c.h.b16 %v634
        %v1302 = vunpack.c.l.b16 %v635
        %v1303 = vunpack.c.h.b16 %v635
        %v1304 = vunpack.c.l.b16 %v636
        %v1305 = vunpack.c.h.b16 %v636
        %v1306 = vunpack.c.l.b16 %v637
        %v1307 = vunpack.c.h.b16 %v637
        %v1308 = vunpack.c.l.b16 %v638
        %v1309 = vunpack.c.h.b16 %v638
        %v1310 = vunpack.c.l.b16 %v639
        %v1311 = vunpack.c.h.b16 %v639
        %v1312 = vunpack.c.l.b16 %v640
        %v1313 = vunpack.c.h.b16 %v640
        %v1314 = vunpack.c.l.b16 %v641
        %v1315 = vunpack.c.h.b16 %v641
        %v1316 = vunpack.c.l.b16 %v642
        %v1317 = vunpack.c.h.b16 %v642
        %v1318 = vunpack.c.l.b16 %v643
        %v1319 = vunpack.c.h.b16 %v643
        %v1320 = vunpack.c.l.b16 %v644
        %v1321 = vunpack.c.h.b16 %v644
        %v1322 = vunpack.c.l.b16 %v645
        %v1323 = vunpack.c.h.b16 %v645
        %v1324 = vunpack.c.l.b16 %v646
        %v1325 = vunpack.c.h.b16 %v646
        %v1326 = vunpack.c.l.b16 %v647
        %v1327 = vunpack.c.h.b16 %v647
        %v1328 = vunpack.c.l.b16 %v648
        %v1329 = vunpack.c.h.b16 %v648
        %v1330 = vunpack.c.l.b16 %v649
        %v1331 = vunpack.c.h.b16 %v649
        %v1332 = vunpack.c.l.b16 %v650
        %v1333 = vunpack.c.h.b16 %v650
        %v1334 = vunpack.c.l.b16 %v651
        %v1335 = vunpack.c.h.b16 %v651
        %v1336 = vunpack.c.l.b16 %v652
        %v1337 = vunpack.c.h.b16 %v652
        %v1338 = vunpack.c.l.b16 %v653
        %v1339 = vunpack.c.h.b16 %v653
        %v1340 = vunpack.c.l.b16 %v654
        %v1341 = vunpack.c.h.b16 %v654
        %v1342 = vunpack.c.l.b16 %v655
        %v1343 = vunpack.c.h.b16 %v655
        %v1344 = vunpack.c.l.b16 %v656
        %v1345 = vunpack.c.h.b16 %v656
        %v1346 = vunpack.c.l.b16 %v657
        %v1347 = vunpack.c.h.b16 %v657
        %v1348 = vunpack.c.l.b16 %v658
        %v1349 = vunpack.c.h.b16 %v658
        %v1350 = vunpack.c.l.b16 %v659
        %v1351 = vunpack.c.h.b16 %v659
        %v1352 = vunpack.c.l.b16 %v660
        %v1353 = vunpack.c.h.b16 %v660
        %v1354 = vunpack.c.l.b16 %v661
        %v1355 = vunpack.c.h.b16 %v661
        %v1356 = vunpack.c.l.b16 %v662
        %v1357 = vunpack.c.h.b16 %v662
        %v1358 = vunpack.c.l.b16 %v663
        %v1359 = vunpack.c.h.b16 %v663
        %v1360 = vunpack.c.l.b16 %v664
        %v1361 = vunpack.c.h.b16 %v664
        %v1362 = vunpack.c.l.b16 %v665
        %v1363 = vunpack.c.h.b16 %v665
        %v1364 = vunpack.c.l.b16 %v666
        %v1365 = vunpack.c.h.b16 %v666
        %v1366 = vunpack.c.l.b16 %v667
        %v1367 = vunpack.c.h.b16 %v667
        %v1368 = vunpack.c.l.b16 %v668
        %v1369 = vunpack.c.h.b16 %v668
        %v1370 = vunpack.c.l.b16 %v669
        %v1371 = vunpack.c.h.b16 %v669
        %v1372 = vunpack.c.l.b16 %v670
        %v1373 = vunpack.c.h.b16 %v670
        %v1374 = vunpack.c.l.b16 %v671
        %v1375 = vunpack.c.h.b16 %v671
        %v1376 = vunpack.c.l.b16 %v672
        %v1377 = vunpack.c.h.b16 %v672
        %v1378 = vunpack.c.l.b16 %v673
        %v1379 = vunpack.c.h.b16 %v673
        %v1380 = vunpack.c.l.b16 %v674
        %v1381 = vunpack.c.h.b16 %v674
        %v1382 = vunpack.c.l.b16 %v675
        %v1383 = vunpack.c.h.b16 %v675
        %v1384 = vunpack.c.l.b16 %v676
        %v1385 = vunpack.c.h.b16 %v676
        %v1386 = vunpack.c.l.b16 %v677
        %v1387 = vunpack.c.h.b16 %v677
        %v1388 = vunpack.c.l.b16 %v678
        %v1389 = vunpack.c.h.b16 %v678
        %v1390 = vunpack.c.l.b16 %v679
        %v1391 = vunpack.c.h.b16 %v679
        %v1392 = vunpack.c.l.b16 %v680
        %v1393 = vunpack.c.h.b16 %v680
        %v1394 = vunpack.c.l.b16 %v681
        %v1395 = vunpack.c.h.b16 %v681
        %v1396 = vunpack.c.l.b16 %v682
        %v1397 = vunpack.c.h.b16 %v682
        %v1398 = vunpack.c.l.b16 %v683
        %v1399 = vunpack.c.h.b16 %v683
        %v1400 = vunpack.c.l.b16 %v684
        %v1401 = vunpack.c.h.b16 %v684
        %v1402 = vunpack.c.l.b16 %v685
        %v1403 = vunpack.c.h.b16 %v685
        %v1404 = vunpack.c.l.b16 %v686
        %v1405 = vunpack.c.h.b16 %v686
        %v1406 = vunpack.c.l.b16 %v687
        %v1407 = vunpack.c.h.b16 %v687
        %v1408 = vunpack.c.l.b16 %v688
        %v1409 = vunpack.c.h.b16 %v688
        %v1410 = vunpack.c.l.b16 %v689
        %v1411 = vunpack.c.h.b16 %v689
        %v1412 = vunpack.c.l.b16 %v690
        %v1413 = vunpack.c.h.b16 %v690
        %v1414 = vunpack.c.l.b16 %v691
        %v1415 = vunpack.c.h.b16 %v691
        %v1416 = vunpack.c.l.b16 %v692
        %v1417 = vunpack.c.h.b16 %v692
        %v1418 = vunpack.c.l.b16 %v693
        %v1419 = vunpack.c.h.b16 %v693
        %v1420 = vunpack.c.l.b16 %v694
        %v1421 = vunpack.c.h.b16 %v694
        %v1422 = vunpack.c.l.b16 %v695
        %v1423 = vunpack.c.h.b16 %v695
        %v1424 = vunpack.c.l.b16 %v696
        %v1425 = vunpack.c.h.b16 %v696
        %v1426 = vunpack.c.l.b16 %v697
        %v1427 = vunpack.c.h.b16 %v697
        %v1428 = vunpack.c.l.b16 %v698
        %v1429 = vunpack.c.h.b16 %v698
        %v1430 = vunpack.c.l.b16 %v699
        %v1431 = vunpack.c.h.b16 %v699
        %v1432 = vunpack.c.l.b16 %v700
        %v1433 = vunpack.c.h.b16 %v700
        %v1434 = vunpack.c.l.b16 %v701
        %v1435 = vunpack.c.h.b16 %v701
        %v1436 = vunpack.c.l.b16 %v702
        %v1437 = vunpack.c.h.b16 %v702
        %v1438 = vunpack.c.l.b16 %v703
        %v1439 = vunpack.c.h.b16 %v703
        %v1440 = vunpack.c.l.b16 %v704
        %v1441 = vunpack.c.h.b16 %v704
        %v1442 = vunpack.c.l.b16 %v705
        %v1443 = vunpack.c.h.b16 %v705
        %v1444 = vunpack.c.l.b16 %v706
        %v1445 = vunpack.c.h.b16 %v706
        %v1446 = vunpack.c.l.b16 %v707
        %v1447 = vunpack.c.h.b16 %v707
        %v1448 = vunpack.c.l.b16 %v708
        %v1449 = vunpack.c.h.b16 %v708
        %v1450 = vunpack.c.l.b16 %v709
        %v1451 = vunpack.c.h.b16 %v709
        %v1452 = vunpack.c.l.b16 %v710
        %v1453 = vunpack.c.h.b16 %v710
        %v1454 = vunpack.c.l.b16 %v711
        %v1455 = vunpack.c.h.b16 %v711
        %v1456 = vunpack.c.l.b16 %v712
        %v1457 = vunpack.c.h.b16 %v712
        %v1458 = vunpack.c.l.b16 %v713
        %v1459 = vunpack.c.h.b16 %v713
        %v1460 = vunpack.c.l.b16 %v714
        %v1461 = vunpack.c.h.b16 %v714
        %v1462 = vunpack.c.l.b16 %v715
        %v1463 = vunpack.c.h.b16 %v715
        %v1464 = vunpack.c.l.b16 %v716
        %v1465 = vunpack.c.h.b16 %v716
        %v1466 = vunpack.c.l.b16 %v717
        %v1467 = vunpack.c.h.b16 %v717
        %v1468 = vunpack.c.l.b16 %v718
        %v1469 = vunpack.c.h.b16 %v718
        %v1470 = vunpack.c.l.b16 %v719
        %v1471 = vunpack.c.h.b16 %v719
        %v1472 = vunpack.c.l.b16 %v720
        %v1473 = vunpack.c.h.b16 %v720
        %v1474 = vunpack.c.l.b16 %v721
        %v1475 = vunpack.c.h.b16 %v721
        %v1476 = vunpack.c.l.b16 %v722
        %v1477 = vunpack.c.h.b16 %v722
        %v1478 = vunpack.c.l.b16 %v723
        %v1479 = vunpack.c.h.b16 %v723
        %v1480 = vunpack.c.l.b16 %v724
        %v1481 = vunpack.c.h.b16 %v724
        %v1482 = vunpack.c.l.b16 %v725
        %v1483 = vunpack.c.h.b16 %v725
        %v1484 = vunpack.c.l.b16 %v726
        %v1485 = vunpack.c.h.b16 %v726
        %v1486 = vunpack.c.l.b16 %v727
        %v1487 = vunpack.c.h.b16 %v727
        %v1488 = vunpack.c.l.b16 %v728
        %v1489 = vunpack.c.h.b16 %v728
        %v1490 = vunpack.c.l.b16 %v729
        %v1491 = vunpack.c.h.b16 %v729
        %v1492 = vunpack.c.l.b16 %v730
        %v1493 = vunpack.c.h.b16 %v730
        %v1494 = vunpack.c.l.b16 %v731
        %v1495 = vunpack.c.h.b16 %v731
        %v1496 = vunpack.c.l.b16 %v732
        %v1497 = vunpack.c.h.b16 %v732
        %v1498 = vunpack.c.l.b16 %v733
        %v1499 = vunpack.c.h.b16 %v733
        %v1500 = vunpack.c.l.b16 %v734
        %v1501 = vunpack.c.h.b16 %v734
        %v1502 = vunpack.c.l.b16 %v735
        %v1503 = vunpack.c.h.b16 %v735
        %v1504 = vunpack.c.l.b16 %v736
        %v1505 = vunpack.c.h.b16 %v736
        %v1506 = vunpack.c.l.b16 %v737
        %v1507 = vunpack.c.h.b16 %v737
        %v1508 = vunpack.c.l.b16 %v738
        %v1509 = vunpack.c.h.b16 %v738
        %v1510 = vunpack.c.l.b16 %v739
        %v1511 = vunpack.c.h.b16 %v739
        %v1512 = vunpack.c.l.b16 %v740
        %v1513 = vunpack.c.h.b16 %v740
        %v1514 = vunpack.c.l.b16 %v741
        %v1515 = vunpack.c.h.b16 %v741
        %v1516 = vunpack.c.l.b16 %v742
        %v1517 = vunpack.c.h.b16 %v742
        %v1518 = vunpack.c.l.b16 %v743
        %v1519 = vunpack.c.h.b16 %v743
        %v1520 = vunpack.c.l.b16 %v744
        %v1521 = vunpack.c.h.b16 %v744
        %v1522 = vunpack.c.l.b16 %v745
        %v1523 = vunpack.c.h.b16 %v745
        %v1524 = vunpack.c.l.b16 %v746
        %v1525 = vunpack.c.h.b16 %v746
        %v1526 = vunpack.c.l.b16 %v747
        %v1527 = vunpack.c.h.b16 %v747
        %v1528 = vunpack.c.l.b16 %v748
        %v1529 = vunpack.c.h.b16 %v748
        %v1530 = vunpack.c.l.b16 %v749
        %v1531 = vunpack.c.h.b16 %v749
        %v1532 = vunpack.c.l.b16 %v750
        %v1533 = vunpack.c.h.b16 %v750
        %v1534 = vunpack.c.l.b16 %v751
        %v1535 = vunpack.c.h.b16 %v751
        %v1536 = vunpack.c.l.b16 %v752
        %v1537 = vunpack.c.h.b16 %v752
        %v1538 = vunpack.c.l.b16 %v753
        %v1539 = vunpack.c.h.b16 %v753
        %v1540 = vunpack.c.l.b16 %v754
        %v1541 = vunpack.c.h.b16 %v754
        %v1542 = vunpack.c.l.b16 %v755
        %v1543 = vunpack.c.h.b16 %v755
        %v1544 = vunpack.c.l.b16 %v756
        %v1545 = vunpack.c.h.b16 %v756
        %v1546 = vunpack.c.l.b16 %v757
        %v1547 = vunpack.c.h.b16 %v757
        %v1548 = vunpack.c.l.b16 %v758
        %v1549 = vunpack.c.h.b16 %v758
        %v1550 = vunpack.c.l.b16 %v759
        %v1551 = vunpack.c.h.b16 %v759
        %v1552 = vunpack.c.l.b16 %v760
        %v1553 = vunpack.c.h.b16 %v760
        %v1554 = vunpack.c.l.b16 %v761
        %v1555 = vunpack.c.h.b16 %v761
        %v1556 = vunpack.c.l.b16 %v762
        %v1557 = vunpack.c.h.b16 %v762
        %v1558 = vunpack.c.l.b16 %v763
        %v1559 = vunpack.c.h.b16 %v763
        %v1560 = vunpack.c.l.b16 %v764
        %v1561 = vunpack.c.h.b16 %v764
        %v1562 = vunpack.c.l.b16 %v765
        %v1563 = vunpack.c.h.b16 %v765
        %v1564 = vunpack.c.l.b16 %v766
        %v1565 = vunpack.c.h.b16 %v766
        %v1566 = vunpack.c.l.b16 %v767
        %v1567 = vunpack.c.h.b16 %v767
        %v1568 = vunpack.c.l.b16 %v768
        %v1569 = vunpack.c.h.b16 %v768
        %v1570 = vunpack.c.l.b16 %v769
        %v1571 = vunpack.c.h.b16 %v769
        %v1572 = vunpack.c.l.b16 %v770
        %v1573 = vunpack.c.h.b16 %v770
        %v1574 = vunpack.c.l.b16 %v771
        %v1575 = vunpack.c.h.b16 %v771
        %v1576 = vunpack.c.l.b16 %v772
        %v1577 = vunpack.c.h.b16 %v772
        %v1578 = vunpack.c.l.b16 %v773
        %v1579 = vunpack.c.h.b16 %v773
        %v1580 = vunpack.c.l.b16 %v774
        %v1581 = vunpack.c.h.b16 %v774
        %v1582 = vunpack.c.l.b16 %v775
        %v1583 = vunpack.c.h.b16 %v775
        %v1584 = vunpack.c.l.b16 %v776
        %v1585 = vunpack.c.h.b16 %v776
        %v1586 = vunpack.c.l.b16 %v777
        %v1587 = vunpack.c.h.b16 %v777
        %v1588 = vunpack.c.l.b16 %v778
        %v1589 = vunpack.c.h.b16 %v778
        %v1590 = vunpack.c.l.b16 %v779
        %v1591 = vunpack.c.h.b16 %v779
        %v1592 = vunpack.c.l.b16 %v780
        %v1593 = vunpack.c.h.b16 %v780
        %v1594 = vunpack.c.l.b16 %v781
        %v1595 = vunpack.c.h.b16 %v781
        %v1596 = vunpack.c.l.b16 %v782
        %v1597 = vunpack.c.h.b16 %v782
        %v1598 = vunpack.c.l.b16 %v783
        %v1599 = vunpack.c.h.b16 %v783
        %v1600 = vunpack.c.l.b16 %v784
        %v1601 = vunpack.c.h.b16 %v784
        %v1602 = vunpack.c.l.b16 %v785
        %v1603 = vunpack.c.h.b16 %v785
        %v1604 = vunpack.c.l.b16 %v786
        %v1605 = vunpack.c.h.b16 %v786
        %v1606 = vunpack.c.l.b16 %v787
        %v1607 = vunpack.c.h.b16 %v787
        %v1608 = vunpack.c.l.b16 %v788
        %v1609 = vunpack.c.h.b16 %v788
        %v1610 = vunpack.c.l.b16 %v789
        %v1611 = vunpack.c.h.b16 %v789
        %v1612 = vunpack.c.l.b16 %v790
        %v1613 = vunpack.c.h.b16 %v790
        %v1614 = vunpack.c.l.b16 %v791
        %v1615 = vunpack.c.h.b16 %v791
        %v1616 = vunpack.c.l.b16 %v792
        %v1617 = vunpack.c.h.b16 %v792
        %v1618 = vunpack.c.l.b16 %v793
        %v1619 = vunpack.c.h.b16 %v793
        %v1620 = vunpack.c.l.b16 %v794
        %v1621 = vunpack.c.h.b16 %v794
        %v1622 = vunpack.c.l.b16 %v795
        %v1623 = vunpack.c.h.b16 %v795
        %v1624 = vunpack.c.l.b16 %v796
        %v1625 = vunpack.c.h.b16 %v796
        %v1626 = vunpack.c.l.b16 %v797
        %v1627 = vunpack.c.h.b16 %v797
        %v1628 = vunpack.c.l.b16 %v798
        %v1629 = vunpack.c.h.b16 %v798
        %v1630 = vunpack.c.l.b16 %v799
        %v1631 = vunpack.c.h.b16 %v799
        %v1632 = vunpack.c.l.b16 %v800
        %v1633 = vunpack.c.h.b16 %v800
        %v1634 = vunpack.c.l.b16 %v801
        %v1635 = vunpack.c.h.b16 %v801
        %v1636 = vunpack.c.l.b16 %v802
        %v1637 = vunpack.c.h.b16 %v802
        %v1638 = vunpack.c.l.b16 %v803
        %v1639 = vunpack.c.h.b16 %v803
        %v1640 = vunpack.c.l.b16 %v804
        %v1641 = vunpack.c.h.b16 %v804
        %v1642 = vunpack.c.l.b16 %v805
        %v1643 = vunpack.c.h.b16 %v805
        %v1644 = vunpack.c.l.b16 %v806
        %v1645 = vunpack.c.h.b16 %v806
        %v1646 = vunpack.c.l.b16 %v807
        %v1647 = vunpack.c.h.b16 %v807
        %v1648 = vunpack.c.l.b16 %v808
        %v1649 = vunpack.c.h.b16 %v808
        %v1650 = vunpack.c.l.b16 %v809
        %v1651 = vunpack.c.h.b16 %v809
        %v1652 = vunpack.c.l.b16 %v810
        %v1653 = vunpack.c.h.b16 %v810
        %v1654 = vunpack.c.l.b16 %v811
        %v1655 = vunpack.c.h.b16 %v811
        %v1656 = vunpack.c.l.b16 %v812
        %v1657 = vunpack.c.h.b16 %v812
        %v1658 = vunpack.c.l.b16 %v813
        %v1659 = vunpack.c.h.b16 %v813
        %v1660 = vunpack.c.l.b16 %v814
        %v1661 = vunpack.c.h.b16 %v814
        %v1662 = vunpack.c.l.b16 %v815
        %v1663 = vunpack.c.h.b16 %v815
        %v1664 = vunpack.c.l.b16 %v816
        %v1665 = vunpack.c.h.b16 %v816
        %v1666 = vunpack.c.l.b16 %v817
        %v1667 = vunpack.c.h.b16 %v817
        %v1668 = vunpack.c.l.b16 %v818
        %v1669 = vunpack.c.h.b16 %v818
        %v1670 = vunpack.c.l.b16 %v819
        %v1671 = vunpack.c.h.b16 %v819
        %v1672 = vunpack.c.l.b16 %v820
        %v1673 = vunpack.c.h.b16 %v820
        %v1674 = vunpack.c.l.b16 %v821
        %v1675 = vunpack.c.h.b16 %v821
        %v1676 = vunpack.c.l.b16 %v822
        %v1677 = vunpack.c.h.b16 %v822
        %v1678 = vunpack.c.l.b16 %v823
        %v1679 = vunpack.c.h.b16 %v823
        %v1680 = vunpack.c.l.b16 %v824
        %v1681 = vunpack.c.h.b16 %v824
        %v1682 = vunpack.c.l.b16 %v825
        %v1683 = vunpack.c.h.b16 %v825
        %v1684 = vunpack.c.l.b16 %v826
        %v1685 = vunpack.c.h.b16 %v826
        %v1686 = vunpack.c.l.b16 %v827
        %v1687 = vunpack.c.h.b16 %v827
        %v1688 = vunpack.c.l.b16 %v828
        %v1689 = vunpack.c.h.b16 %v828
        %v1690 = vunpack.c.l.b16 %v829
        %v1691 = vunpack.c.h.b16 %v829
        %v1692 = vunpack.c.l.b16 %v830
        %v1693 = vunpack.c.h.b16 %v830
        %v1694 = vunpack.c.l.b16 %v831
        %v1695 = vunpack.c.h.b16 %v831
        %v1696 = vunpack.c.l.b16 %v832
        %v1697 = vunpack.c.h.b16 %v832
        %v1698 = vunpack.c.l.b16 %v833
        %v1699 = vunpack.c.h.b16 %v833
        %v1700 = vunpack.c.l.b16 %v834
        %v1701 = vunpack.c.h.b16 %v834
        %v1702 = vunpack.c.l.b16 %v835
        %v1703 = vunpack.c.h.b16 %v835
        %v1704 = vunpack.c.l.b16 %v836
        %v1705 = vunpack.c.h.b16 %v836
        %v1706 = vunpack.c.l.b16 %v837
        %v1707 = vunpack.c.h.b16 %v837
        %v1708 = vunpack.c.l.b16 %v838
        %v1709 = vunpack.c.h.b16 %v838
        %v1710 = vunpack.c.l.b16 %v839
        %v1711 = vunpack.c.h.b16 %v839
        %v1712 = vunpack.c.l.b16 %v840
        %v1713 = vunpack.c.h.b16 %v840
        %v1714 = vunpack.c.l.b16 %v841
        %v1715 = vunpack.c.h.b16 %v841
        %v1716 = vunpack.c.l.b16 %v842
        %v1717 = vunpack.c.h.b16 %v842
        %v1718 = vunpack.c.l.b16 %v843
        %v1719 = vunpack.c.h.b16 %v843
        %v1720 = vunpack.c.l.b16 %v844
        %v1721 = vunpack.c.h.b16 %v844
        %v1722 = vunpack.c.l.b16 %v845
        %v1723 = vunpack.c.h.b16 %v845
        %v1724 = vunpack.c.l.b16 %v846
        %v1725 = vunpack.c.h.b16 %v846
        %v1726 = vunpack.c.l.b16 %v847
        %v1727 = vunpack.c.h.b16 %v847
        %v1728 = vunpack.c.l.b16 %v848
        %v1729 = vunpack.c.h.b16 %v848
        %v1730 = vunpack.c.l.b16 %v849
        %v1731 = vunpack.c.h.b16 %v849
        %v1732 = vunpack.c.l.b16 %v850
        %v1733 = vunpack.c.h.b16 %v850
        %v1734 = vunpack.c.l.b16 %v851
        %v1735 = vunpack.c.h.b16 %v851
        %v1736 = vunpack.c.l.b16 %v852
        %v1737 = vunpack.c.h.b16 %v852
        %v1738 = vunpack.c.l.b16 %v853
        %v1739 = vunpack.c.h.b16 %v853
        %v1740 = vunpack.c.l.b16 %v854
        %v1741 = vunpack.c.h.b16 %v854
        %v1742 = vunpack.c.l.b16 %v855
        %v1743 = vunpack.c.h.b16 %v855
        %v1744 = vunpack.c.l.b16 %v856
        %v1745 = vunpack.c.h.b16 %v856
        %v1746 = vunpack.c.l.b16 %v857
        %v1747 = vunpack.c.h.b16 %v857
        %v1748 = vunpack.c.l.b16 %v858
        %v1749 = vunpack.c.h.b16 %v858
        %v1750 = vunpack.c.l.b16 %v859
        %v1751 = vunpack.c.h.b16 %v859
        %v1752 = vunpack.c.l.b16 %v860
        %v1753 = vunpack.c.h.b16 %v860
        %v1754 = vunpack.c.l.b16 %v861
        %v1755 = vunpack.c.h.b16 %v861
        %v1756 = vunpack.c.l.b16 %v862
        %v1757 = vunpack.c.h.b16 %v862
        %v1758 = vunpack.c.l.b16 %v863
        %v1759 = vunpack.c.h.b16 %v863
        %v1760 = vpack.c.b16 %v1190, %v1184
        %v1761 = vpack.c.b16 %v1191, %v1185
        %v1762 = vpack.c.b16 %v1192, %v1186
        %v1763 = vpack.c.b16 %v1193, %v1187
        %v1764 = vpack.c.b16 %v1194, %v1188
        %v1765 = vpack.c.b16 %v1195, %v1189
        %v1766 = vpack.c.b16 %v1202, %v1196
        %v1767 = vpack.c.b16 %v1203, %v1197
        %v1768 = vpack.c.b16 %v1204, %v1198
        %v1769 = vpack.c.b16 %v1205, %v1199
        %v1770 = vpack.c.b16 %v1206, %v1200
        %v1771 = vpack.c.b16 %v1207, %v1201
        %v1772 = vpack.c.b16 %v1214, %v1208
        %v1773 = vpack.c.b16 %v1215, %v1209
        %v1774 = vpack.c.b16 %v1216, %v1210
        %v1775 = vpack.c.b16 %v1217, %v1211
        %v1776 = vpack.c.b16 %v1218, %v1212
        %v1777 = vpack.c.b16 %v1219, %v1213
        %v1778 = vpack.c.b16 %v1226, %v1220
        %v1779 = vpack.c.b16 %v1227, %v1221
        %v1780 = vpack.c.b16 %v1228, %v1222
        %v1781 = vpack.c.b16 %v1229, %v1223
        %v1782 = vpack.c.b16 %v1230, %v1224
        %v1783 = vpack.c.b16 %v1231, %v1225
        %v1784 = vpack.c.b16 %v1238, %v1232
        %v1785 = vpack.c.b16 %v1239, %v1233
        %v1786 = vpack.c.b16 %v1240, %v1234
        %v1787 = vpack.c.b16 %v1241, %v1235
        %v1788 = vpack.c.b16 %v1242, %v1236
        %v1789 = vpack.c.b16 %v1243, %v1237
        %v1790 = vpack.c.b16 %v1250, %v1244
        %v1791 = vpack.c.b16 %v1251, %v1245
        %v1792 = vpack.c.b16 %v1252, %v1246
        %v1793 = vpack.c.b16 %v1253, %v1247
        %v1794 = vpack.c.b16 %v1254, %v1248
        %v1795 = vpack.c.b16 %v1255, %v1249
        %v1796 = vpack.c.b16 %v1262, %v1256
        %v1797 = vpack.c.b16 %v1263, %v1257
        %v1798 = vpack.c.b16 %v1264, %v1258
        %v1799 = vpack.c.b16 %v1265, %v1259
        %v1800 = vpack.c.b16 %v1266, %v1260
        %v1801 = vpack.c.b16 %v1267, %v1261
        %v1802 = vpack.c.b16 %v1274, %v1268
        %v1803 = vpack.c.b16 %v1275, %v1269
        %v1804 = vpack.c.b16 %v1276, %v1270
        %v1805 = vpack.c.b16 %v1277, %v1271
        %v1806 = vpack.c.b16 %v1278, %v1272
        %v1807 = vpack.c.b16 %v1279, %v1273
        %v1808 = vpack.c.b16 %v1286, %v1280
        %v1809 = vpack.c.b16 %v1287, %v1281
        %v1810 = vpack.c.b16 %v1288, %v1282
        %v1811 = vpack.c.b16 %v1289, %v1283
        %v1812 = vpack.c.b16 %v1290, %v1284
        %v1813 = vpack.c.b16 %v1291, %v1285
        %v1814 = vpack.c.b16 %v1298, %v1292
        %v1815 = vpack.c.b16 %v1299, %v1293
        %v1816 = vpack.c.b16 %v1300, %v1294
        %v1817 = vpack.c.b16 %v1301, %v1295
        %v1818 = vpack.c.b16 %v1302, %v1296
        %v1819 = vpack.c.b16 %v1303, %v1297
        %v1820 = vpack.c.b16 %v1310, %v1304
        %v1821 = vpack.c.b16 %v1311, %v1305
        %v1822 = vpack.c.b16 %v1312, %v1306
        %v1823 = vpack.c.b16 %v1313, %v1307
        %v1824 = vpack.c.b16 %v1314, %v1308
        %v1825 = vpack.c.b16 %v1315, %v1309
        %v1826 = vpack.c.b16 %v1322, %v1316
        %v1827 = vpack.c.b16 %v1323, %v1317
        %v1828 = vpack.c.b16 %v1324, %v1318
        %v1829 = vpack.c.b16 %v1325, %v1319
        %v1830 = vpack.c.b16 %v1326, %v1320
        %v1831 = vpack.c.b16 %v1327, %v1321
        %v1832 = vpack.c.b16 %v1334, %v1328
        %v1833 = vpack.c.b16 %v1335, %v1329
        %v1834 = vpack.c.b16 %v1336, %v1330
        %v1835 = vpack.c.b16 %v1337, %v1331
        %v1836 = vpack.c.b16 %v1338, %v1332
        %v1837 = vpack.c.b16 %v1339, %v1333
        %v1838 = vpack.c.b16 %v1346, %v1340
        %v1839 = vpack.c.b16 %v1347, %v1341
        %v1840 = vpack.c.b16 %v1348, %v1342
        %v1841 = vpack.c.b16 %v1349, %v1343
        %v1842 = vpack.c.b16 %v1350, %v1344
        %v1843 = vpack.c.b16 %v1351, %v1345
        %v1844 = vpack.c.b16 %v1358, %v1352
        %v1845 = vpack.c.b16 %v1359, %v1353
        %v1846 = vpack.c.b16 %v1360, %v1354
        %v1847 = vpack.c.b16 %v1361, %v1355
        %v1848 = vpack.c.b16 %v1362, %v1356
        %v1849 = vpack.c.b16 %v1363, %v1357
        %v1850 = vpack.c.b16 %v1370, %v1364
        %v1851 = vpack.c.b16 %v1371, %v1365
        %v1852 = vpack.c.b16 %v1372, %v1366
        %v1853 = vpack.c.b16 %v1373, %v1367
        %v1854 = vpack.c.b16 %v1374, %v1368
        %v1855 = vpack.c.b16 %v1375, %v1369
        %v1856 = vpack.c.b16 %v1382, %v1376
        %v1857 = vpack.c.b16 %v1383, %v1377
        %v1858 = vpack.c.b16 %v1384, %v1378
        %v1859 = vpack.c.b16 %v1385, %v1379
        %v1860 = vpack.c.b16 %v1386, %v1380
        %v1861 = vpack.c.b16 %v1387, %v1381
        %v1862 = vpack.c.b16 %v1394, %v1388
        %v1863 = vpack.c.b16 %v1395, %v1389
        %v1864 = vpack.c.b16 %v1396, %v1390
        %v1865 = vpack.c.b16 %v1397, %v1391
        %v1866 = vpack.c.b16 %v1398, %v1392
        %v1867 = vpack.c.b16 %v1399, %v1393
        %v1868 = vpack.c.b16 %v1406, %v1400
        %v1869 = vpack.c.b16 %v1407, %v1401
        %v1870 = vpack.c.b16 %v1408, %v1402
        %v1871 = vpack.c.b16 %v1409, %v1403
        %v1872 = vpack.c.b16 %v1410, %v1404
        %v1873 = vpack.c.b16 %v1411, %v1405
        %v1874 = vpack.c.b16 %v1418, %v1412
        %v1875 = vpack.c.b16 %v1419, %v1413
        %v1876 = vpack.c.b16 %v1420, %v1414
        %v1877 = vpack.c.b16 %v1421, %v1415
        %v1878 = vpack.c.b16 %v1422, %v1416
        %v1879 = vpack.c.b16 %v1423, %v1417
        %v1880 = vpack.c.b16 %v1430, %v1424
        %v1881 = vpack.c.b16 %v1431, %v1425
        %v1882 = vpack.c.b16 %v1432, %v1426
        %v1883 = vpack.c.b16 %v1433, %v1427
        %v1884 = vpack.c.b16 %v1434, %v1428
        %v1885 = vpack.c.b16 %v1435, %v1429
        %v1886 = vpack.c.b16 %v1442, %v1436
        %v1887 = vpack.c.b16 %v1443, %v1437
        %v1888 = vpack.c.b16 %v1444, %v1438
        %v1889 = vpack.c.b16 %v1445, %v1439
        %v1890 = vpack.c.b16 %v1446, %v1440
        %v1891 = vpack.c.b16 %v1447, %v1441
        %v1892 = vpack.c.b16 %v1454, %v1448
        %v1893 = vpack.c.b16 %v1455, %v1449
        %v1894 = vpack.c.b16 %v1456, %v1450
        %v1895 = vpack.c.b16 %v1457, %v1451
        %v1896 = vpack.c.b16 %v1458, %v1452
        %v1897 = vpack.c.b16 %v1459, %v1453
        %v1898 = vpack.c.b16 %v1466, %v1460
        %v1899 = vpack.c.b16 %v1467, %v1461
        %v1900 = vpack.c.b16 %v1468, %v1462
        %v1901 = vpack.c.b16 %v1469, %v1463
        %v1902 = vpack.c.b16 %v1470, %v1464
        %v1903 = vpack.c.b16 %v1471, %v1465
        %v1904 = vpack.c.b16 %v1478, %v1472
        %v1905 = vpack.c.b16 %v1479, %v1473
        %v1906 = vpack.c.b16 %v1480, %v1474
        %v1907 = vpack.c.b16 %v1481, %v1475
        %v1908 = vpack.c.b16 %v1482, %v1476
        %v1909 = vpack.c.b16 %v1483, %v1477
        %v1910 = vpack.c.b16 %v1490, %v1484
        %v1911 = vpack.c.b16 %v1491, %v1485
        %v1912 = vpack.c.b16 %v1492, %v1486
        %v1913 = vpack.c.b16 %v1493, %v1487
        %v1914 = vpack.c.b16 %v1494, %v1488
        %v1915 = vpack.c.b16 %v1495, %v1489
        %v1916 = vpack.c.b16 %v1502, %v1496
        %v1917 = vpack.c.b16 %v1503, %v1497
        %v1918 = vpack.c.b16 %v1504, %v1498
        %v1919 = vpack.c.b16 %v1505, %v1499
        %v1920 = vpack.c.b16 %v1506, %v1500
        %v1921 = vpack.c.b16 %v1507, %v1501
        %v1922 = vpack.c.b16 %v1514, %v1508
        %v1923 = vpack.c.b16 %v1515, %v1509
        %v1924 = vpack.c.b16 %v1516, %v1510
        %v1925 = vpack.c.b16 %v1517, %v1511
        %v1926 = vpack.c.b16 %v1518, %v1512
        %v1927 = vpack.c.b16 %v1519, %v1513
        %v1928 = vpack.c.b16 %v1526, %v1520
        %v1929 = vpack.c.b16 %v1527, %v1521
        %v1930 = vpack.c.b16 %v1528, %v1522
        %v1931 = vpack.c.b16 %v1529, %v1523
        %v1932 = vpack.c.b16 %v1530, %v1524
        %v1933 = vpack.c.b16 %v1531, %v1525
        %v1934 = vpack.c.b16 %v1538, %v1532
        %v1935 = vpack.c.b16 %v1539, %v1533
        %v1936 = vpack.c.b16 %v1540, %v1534
        %v1937 = vpack.c.b16 %v1541, %v1535
        %v1938 = vpack.c.b16 %v1542, %v1536
        %v1939 = vpack.c.b16 %v1543, %v1537
        %v1940 = vpack.c.b16 %v1550, %v1544
        %v1941 = vpack.c.b16 %v1551, %v1545
        %v1942 = vpack.c.b16 %v1552, %v1546
        %v1943 = vpack.c.b16 %v1553, %v1547
        %v1944 = vpack.c.b16 %v1554, %v1548
        %v1945 = vpack.c.b16 %v1555, %v1549
        %v1946 = vpack.c.b16 %v1562, %v1556
        %v1947 = vpack.c.b16 %v1563, %v1557
        %v1948 = vpack.c.b16 %v1564, %v1558
        %v1949 = vpack.c.b16 %v1565, %v1559
        %v1950 = vpack.c.b16 %v1566, %v1560
        %v1951 = vpack.c.b16 %v1567, %v1561
        %v1952 = vpack.c.b16 %v1574, %v1568
        %v1953 = vpack.c.b16 %v1575, %v1569
        %v1954 = vpack.c.b16 %v1576, %v1570
        %v1955 = vpack.c.b16 %v1577, %v1571
        %v1956 = vpack.c.b16 %v1578, %v1572
        %v1957 = vpack.c.b16 %v1579, %v1573
        %v1958 = vpack.c.b16 %v1586, %v1580
        %v1959 = vpack.c.b16 %v1587, %v1581
        %v1960 = vpack.c.b16 %v1588, %v1582
        %v1961 = vpack.c.b16 %v1589, %v1583
        %v1962 = vpack.c.b16 %v1590, %v1584
        %v1963 = vpack.c.b16 %v1591, %v1585
        %v1964 = vpack.c.b16 %v1598, %v1592
        %v1965 = vpack.c.b16 %v1599, %v1593
        %v1966 = vpack.c.b16 %v1600, %v1594
        %v1967 = vpack.c.b16 %v1601, %v1595
        %v1968 = vpack.c.b16 %v1602, %v1596
        %v1969 = vpack.c.b16 %v1603, %v1597
        %v1970 = vpack.c.b16 %v1610, %v1604
        %v1971 = vpack.c.b16 %v1611, %v1605
        %v1972 = vpack.c.b16 %v1612, %v1606
        %v1973 = vpack.c.b16 %v1613, %v1607
        %v1974 = vpack.c.b16 %v1614, %v1608
        %v1975 = vpack.c.b16 %v1615, %v1609
        %v1976 = vpack.c.b16 %v1622, %v1616
        %v1977 = vpack.c.b16 %v1623, %v1617
        %v1978 = vpack.c.b16 %v1624, %v1618
        %v1979 = vpack.c.b16 %v1625, %v1619
        %v1980 = vpack.c.b16 %v1626, %v1620
        %v1981 = vpack.c.b16 %v1627, %v1621
        %v1982 = vpack.c.b16 %v1634, %v1628
        %v1983 = vpack.c.b16 %v1635, %v1629
        %v1984 = vpack.c.b16 %v1636, %v1630
        %v1985 = vpack.c.b16 %v1637, %v1631
        %v1986 = vpack.c.b16 %v1638, %v1632
        %v1987 = vpack.c.b16 %v1639, %v1633
        %v1988 = vpack.c.b16 %v1646, %v1640
        %v1989 = vpack.c.b16 %v1647, %v1641
        %v1990 = vpack.c.b16 %v1648, %v1642
        %v1991 = vpack.c.b16 %v1649, %v1643
        %v1992 = vpack.c.b16 %v1650, %v1644
        %v1993 = vpack.c.b16 %v1651, %v1645
        %v1994 = vpack.c.b16 %v1658, %v1652
        %v1995 = vpack.c.b16 %v1659, %v1653
        %v1996 = vpack.c.b16 %v1660, %v1654
        %v1997 = vpack.c.b16 %v1661, %v1655
        %v1998 = vpack.c.b16 %v1662, %v1656
        %v1999 = vpack.c.b16 %v1663, %v1657
        %v2000 = vpack.c.b16 %v1670, %v1664
        %v2001 = vpack.c.b16 %v1671, %v1665
        %v2002 = vpack.c.b16 %v1672, %v1666
        %v2003 = vpack.c.b16 %v1673, %v1667
        %v2004 = vpack.c.b16 %v1674, %v1668
        %v2005 = vpack.c.b16 %v1675, %v1669
        %v2006 = vpack.c.b16 %v1682, %v1676
        %v2007 = vpack.c.b16 %v1683, %v1677
        %v2008 = vpack.c.b16 %v1684, %v1678
        %v2009 = vpack.c.b16 %v1685, %v1679
        %v2010 = vpack.c.b16 %v1686, %v1680
        %v2011 = vpack.c.b16 %v1687, %v1681
        %v2012 = vpack.c.b16 %v1694, %v1688
        %v2013 = vpack.c.b16 %v1695, %v1689
        %v2014 = vpack.c.b16 %v1696, %v1690
        %v2015 = vpack.c.b16 %v1697, %v1691
        %v2016 = vpack.c.b16 %v1698, %v1692
        %v2017 = vpack.c.b16 %v1699, %v1693
        %v2018 = vpack.c.b16 %v1706, %v1700
        %v2019 = vpack.c.b16 %v1707, %v1701
        %v2020 = vpack.c.b16 %v1708, %v1702
        %v2021 = vpack.c.b16 %v1709, %v1703
        %v2022 = vpack.c.b16 %v1710, %v1704
        %v2023 = vpack.c.b16 %v1711, %v1705
        %v2024 = vpack.c.b16 %v1718, %v1712
        %v2025 = vpack.c.b16 %v1719, %v1713
        %v2026 = vpack.c.b16 %v1720, %v1714
        %v2027 = vpack.c.b16 %v1721, %v1715
        %v2028 = vpack.c.b16 %v1722, %v1716
        %v2029 = vpack.c.b16 %v1723, %v1717
        %v2030 = vpack.c.b16 %v1730, %v1724
        %v2031 = vpack.c.b16 %v1731, %v1725
        %v2032 = vpack.c.b16 %v1732, %v1726
        %v2033 = vpack.c.b16 %v1733, %v1727
        %v2034 = vpack.c.b16 %v1734, %v1728
        %v2035 = vpack.c.b16 %v1735, %v1729
        %v2036 = vpack.c.b16 %v1742, %v1736
        %v2037 = vpack.c.b16 %v1743, %v1737
        %v2038 = vpack.c.b16 %v1744, %v1738
        %v2039 = vpack.c.b16 %v1745, %v1739
        %v2040 = vpack.c.b16 %v1746, %v1740
        %v2041 = vpack.c.b16 %v1747, %v1741
        %v2042 = vpack.c.b16 %v1754, %v1748
        %v2043 = vpack.c.b16 %v1755, %v1749
        %v2044 = vpack.c.b16 %v1756, %v1750
        %v2045 = vpack.c.b16 %v1757, %v1751
        %v2046 = vpack.c.b16 %v1758, %v1752
        %v2047 = vpack.c.b16 %v1759, %v1753
        %2336 = vmatprep.subr.bf16.mxu0 %v1761
        %2337 = vmatpush1.bf16.msra.mxu0 %v1760
        %2338 = vmatprep.subr.bf16.mxu0 %v1767
        %2339 = vmatpush1.bf16.msra.mxu0 %v1766
        %2340 = vmatprep.subr.bf16.mxu0 %v1773
        %2341 = vmatpush1.bf16.msra.mxu0 %v1772
        %2342 = vmatprep.subr.bf16.mxu0 %v1779
        %2343 = vmatpush1.bf16.msra.mxu0 %v1778
        %2344 = vmatprep.subr.bf16.mxu0 %v1785
        %2345 = vmatpush1.bf16.msra.mxu0 %v1784
        %2346 = vmatprep.subr.bf16.mxu0 %v1791
        %2347 = vmatpush1.bf16.msra.mxu0 %v1790
        %2348 = vmatprep.subr.bf16.mxu0 %v1797
        %2349 = vmatpush1.bf16.msra.mxu0 %v1796
        %2350 = vmatprep.subr.bf16.mxu0 %v1803
        %2351 = vmatpush1.bf16.msra.mxu0 %v1802
        %2352 = vmatprep.subr.bf16.mxu0 %v1809
        %2353 = vmatpush1.bf16.msra.mxu0 %v1808
        %2354 = vmatprep.subr.bf16.mxu0 %v1815
        %2355 = vmatpush1.bf16.msra.mxu0 %v1814
        %2356 = vmatprep.subr.bf16.mxu0 %v1821
        %2357 = vmatpush1.bf16.msra.mxu0 %v1820
        %2358 = vmatprep.subr.bf16.mxu0 %v1827
        %2359 = vmatpush1.bf16.msra.mxu0 %v1826
        %2360 = vmatprep.subr.bf16.mxu0 %v1833
        %2361 = vmatpush1.bf16.msra.mxu0 %v1832
        %2362 = vmatprep.subr.bf16.mxu0 %v1839
        %2363 = vmatpush1.bf16.msra.mxu0 %v1838
        %2364 = vmatprep.subr.bf16.mxu0 %v1845
        %2365 = vmatpush1.bf16.msra.mxu0 %v1844
        %2366 = vmatprep.subr.bf16.mxu0 %v1851
        %2367 = vmatpush1.bf16.msra.mxu0 %v1850
        %2368 = vmatprep.mubr.bf16.mxu0 %v481
        %2369 = vmatmul.mubr.bf16.gmra.mrb[0].mxu0 %v480
        %v2370 = vpop.f32.mrb[0].mxu0
        %v2371 = vadd.f32 %v869, %v2370
        %v2372 = vpop.f32.mrb[0].mxu0
        %v2373 = vadd.f32 %v873, %v2372
        %v2374 = vpop.f32.mrb[0].mxu0
        %v2375 = vadd.f32 %v869, %v2374
        %v2376 = vpop.f32.mrb[0].mxu0
        %v2377 = vadd.f32 %v873, %v2376
        %2378 = vmatprep.mubr.bf16.mxu0 %v487
        %2379 = vmatmul.mubr.bf16.gmra.mrb[0].mxu0 %v486
        %v2380 = vpop.f32.mrb[0].mxu0
        %v2381 = vadd.f32 %v869, %v2380
        %v2382 = vpop.f32.mrb[0].mxu0
        %v2383 = vadd.f32 %v873, %v2382
        %v2384 = vpop.f32.mrb[0].mxu0
        %v2385 = vadd.f32 %v869, %v2384
        %v2386 = vpop.f32.mrb[0].mxu0
        %v2387 = vadd.f32 %v873, %v2386
        %2388 = vmatprep.mubr.bf16.mxu0 %v493
        %2389 = vmatmul.mubr.bf16.gmra.mrb[0].mxu0 %v492
        %v2390 = vpop.f32.mrb[0].mxu0
        %v2391 = vadd.f32 %v869, %v2390
        %v2392 = vpop.f32.mrb[0].mxu0
        %v2393 = vadd.f32 %v873, %v2392
        %v2394 = vpop.f32.mrb[0].mxu0
        %v2395 = vadd.f32 %v869, %v2394
        %v2396 = vpop.f32.mrb[0].mxu0
        %v2397 = vadd.f32 %v873, %v2396
        %2398 = vmatprep.mubr.bf16.mxu0 %v499
        %2399 = vmatmul.mubr.bf16.gmra.mrb[0].mxu0 %v498
        %v2400 = vpop.f32.mrb[0].mxu0
        %v2401 = vadd.f32 %v869, %v2400
        %v2402 = vpop.f32.mrb[0].mxu0
        %v2403 = vadd.f32 %v873, %v2402
        %v2404 = vpop.f32.mrb[0].mxu0
        %v2405 = vadd.f32 %v869, %v2404
        %v2406 = vpop.f32.mrb[0].mxu0
        %v2407 = vadd.f32 %v873, %v2406
        %2408 = vmatprep.mubr.bf16.mxu0 %v505
        %2409 = vmatmul.mubr.bf16.gmra.mrb[0].mxu0 %v504
        %v2410 = vpop.f32.mrb[0].mxu0
        %v2411 = vadd.f32 %v869, %v2410
        %v2412 = vpop.f32.mrb[0].mxu0
        %v2413 = vadd.f32 %v873, %v2412
        %v2414 = vpop.f32.mrb[0].mxu0
        %v2415 = vadd.f32 %v869, %v2414
        %v2416 = vpop.f32.mrb[0].mxu0
        %v2417 = vadd.f32 %v873, %v2416
        %2418 = vmatprep.mubr.bf16.mxu0 %v511
        %2419 = vmatmul.mubr.bf16.gmra.mrb[0].mxu0 %v510
        %v2420 = vpop.f32.mrb[0].mxu0
        %v2421 = vadd.f32 %v869, %v2420
        %v2422 = vpop.f32.mrb[0].mxu0
        %v2423 = vadd.f32 %v873, %v2422
        %v2424 = vpop.f32.mrb[0].mxu0
        %v2425 = vadd.f32 %v869, %v2424
        %v2426 = vpop.f32.mrb[0].mxu0
        %v2427 = vadd.f32 %v873, %v2426
        %2428 = vmatprep.mubr.bf16.mxu0 %v517
        %2429 = vmatmul.mubr.bf16.gmra.mrb[0].mxu0 %v516
        %v2430 = vpop.f32.mrb[0].mxu0
        %v2431 = vadd.f32 %v869, %v2430
        %v2432 = vpop.f32.mrb[0].mxu0
        %v2433 = vadd.f32 %v873, %v2432
        %v2434 = vpop.f32.mrb[0].mxu0
        %v2435 = vadd.f32 %v869, %v2434
        %v2436 = vpop.f32.mrb[0].mxu0
        %v2437 = vadd.f32 %v873, %v2436
        %2438 = vmatprep.mubr.bf16.mxu0 %v523
        %2439 = vmatmul.mubr.bf16.gmra.mrb[0].mxu0 %v522
        %v2440 = vpop.f32.mrb[0].mxu0
        %v2441 = vadd.f32 %v869, %v2440
        %v2442 = vpop.f32.mrb[0].mxu0
        %v2443 = vadd.f32 %v873, %v2442
        %v2444 = vpop.f32.mrb[0].mxu0
        %v2445 = vadd.f32 %v869, %v2444
        %v2446 = vpop.f32.mrb[0].mxu0
        %v2447 = vadd.f32 %v873, %v2446
        %2448 = vmatprep.mubr.bf16.mxu0 %v529
        %2449 = vmatmul.mubr.bf16.gmra.mrb[0].mxu0 %v528
        %v2450 = vpop.f32.mrb[0].mxu0
        %v2451 = vadd.f32 %v869, %v2450
        %v2452 = vpop.f32.mrb[0].mxu0
        %v2453 = vadd.f32 %v873, %v2452
        %v2454 = vpop.f32.mrb[0].mxu0
        %v2455 = vadd.f32 %v869, %v2454
        %v2456 = vpop.f32.mrb[0].mxu0
        %v2457 = vadd.f32 %v873, %v2456
        %2458 = vmatprep.mubr.bf16.mxu0 %v535
        %2459 = vmatmul.mubr.bf16.gmra.mrb[0].mxu0 %v534
        %v2460 = vpop.f32.mrb[0].mxu0
        %v2461 = vadd.f32 %v869, %v2460
        %v2462 = vpop.f32.mrb[0].mxu0
        %v2463 = vadd.f32 %v873, %v2462
        %v2464 = vpop.f32.mrb[0].mxu0
        %v2465 = vadd.f32 %v869, %v2464
        %v2466 = vpop.f32.mrb[0].mxu0
        %v2467 = vadd.f32 %v873, %v2466
        %2468 = vmatprep.mubr.bf16.mxu0 %v541
        %2469 = vmatmul.mubr.bf16.gmra.mrb[0].mxu0 %v540
        %v2470 = vpop.f32.mrb[0].mxu0
        %v2471 = vadd.f32 %v869, %v2470
        %v2472 = vpop.f32.mrb[0].mxu0
        %v2473 = vadd.f32 %v873, %v2472
        %v2474 = vpop.f32.mrb[0].mxu0
        %v2475 = vadd.f32 %v869, %v2474
        %v2476 = vpop.f32.mrb[0].mxu0
        %v2477 = vadd.f32 %v873, %v2476
        %2478 = vmatprep.mubr.bf16.mxu0 %v547
        %2479 = vmatmul.mubr.bf16.gmra.mrb[0].mxu0 %v546
        %v2480 = vpop.f32.mrb[0].mxu0
        %v2481 = vadd.f32 %v869, %v2480
        %v2482 = vpop.f32.mrb[0].mxu0
        %v2483 = vadd.f32 %v873, %v2482
        %v2484 = vpop.f32.mrb[0].mxu0
        %v2485 = vadd.f32 %v869, %v2484
        %v2486 = vpop.f32.mrb[0].mxu0
        %v2487 = vadd.f32 %v873, %v2486
        %2488 = vmatprep.mubr.bf16.mxu0 %v553
        %2489 = vmatmul.mubr.bf16.gmra.mrb[0].mxu0 %v552
        %v2490 = vpop.f32.mrb[0].mxu0
        %v2491 = vadd.f32 %v869, %v2490
        %v2492 = vpop.f32.mrb[0].mxu0
        %v2493 = vadd.f32 %v873, %v2492
        %v2494 = vpop.f32.mrb[0].mxu0
        %v2495 = vadd.f32 %v869, %v2494
        %v2496 = vpop.f32.mrb[0].mxu0
        %v2497 = vadd.f32 %v873, %v2496
        %2498 = vmatprep.mubr.bf16.mxu0 %v559
        %2499 = vmatmul.mubr.bf16.gmra.mrb[0].mxu0 %v558
        %v2500 = vpop.f32.mrb[0].mxu0
        %v2501 = vadd.f32 %v869, %v2500
        %v2502 = vpop.f32.mrb[0].mxu0
        %v2503 = vadd.f32 %v873, %v2502
        %v2504 = vpop.f32.mrb[0].mxu0
        %v2505 = vadd.f32 %v869, %v2504
        %v2506 = vpop.f32.mrb[0].mxu0
        %v2507 = vadd.f32 %v873, %v2506
        %2508 = vmatprep.mubr.bf16.mxu0 %v565
        %2509 = vmatmul.mubr.bf16.gmra.mrb[0].mxu0 %v564
        %v2510 = vpop.f32.mrb[0].mxu0
        %v2511 = vadd.f32 %v869, %v2510
        %v2512 = vpop.f32.mrb[0].mxu0
        %v2513 = vadd.f32 %v873, %v2512
        %v2514 = vpop.f32.mrb[0].mxu0
        %v2515 = vadd.f32 %v869, %v2514
        %v2516 = vpop.f32.mrb[0].mxu0
        %v2517 = vadd.f32 %v873, %v2516
        %2518 = vmatprep.mubr.bf16.mxu0 %v571
        %2519 = vmatmul.mubr.bf16.gmra.mrb[0].mxu0 %v570
        %v2520 = vpop.f32.mrb[0].mxu0
        %v2521 = vadd.f32 %v869, %v2520
        %v2522 = vpop.f32.mrb[0].mxu0
        %v2523 = vadd.f32 %v873, %v2522
        %v2524 = vpop.f32.mrb[0].mxu0
        %v2525 = vadd.f32 %v869, %v2524
        %v2526 = vpop.f32.mrb[0].mxu0
        %v2527 = vadd.f32 %v873, %v2526
        %2528 = vdwg.mxu0
        %2529 = vmatprep.subr.bf16.mxu0 %v1857
        %2530 = vmatpush1.bf16.msra.mxu0 %v1856
        %2531 = vmatprep.subr.bf16.mxu0 %v1863
        %2532 = vmatpush1.bf16.msra.mxu0 %v1862
        %2533 = vmatprep.subr.bf16.mxu0 %v1869
        %2534 = vmatpush1.bf16.msra.mxu0 %v1868
        %2535 = vmatprep.subr.bf16.mxu0 %v1875
        %2536 = vmatpush1.bf16.msra.mxu0 %v1874
        %2537 = vmatprep.subr.bf16.mxu0 %v1881
        %2538 = vmatpush1.bf16.msra.mxu0 %v1880
        %2539 = vmatprep.subr.bf16.mxu0 %v1887
        %2540 = vmatpush1.bf16.msra.mxu0 %v1886
        %2541 = vmatprep.subr.bf16.mxu0 %v1893
        %2542 = vmatpush1.bf16.msra.mxu0 %v1892
        %2543 = vmatprep.subr.bf16.mxu0 %v1899
        %2544 = vmatpush1.bf16.msra.mxu0 %v1898
        %2545 = vmatprep.subr.bf16.mxu0 %v1905
        %2546 = vmatpush1.bf16.msra.mxu0 %v1904
        %2547 = vmatprep.subr.bf16.mxu0 %v1911
        %2548 = vmatpush1.bf16.msra.mxu0 %v1910
        %2549 = vmatprep.subr.bf16.mxu0 %v1917
        %2550 = vmatpush1.bf16.msra.mxu0 %v1916
        %2551 = vmatprep.subr.bf16.mxu0 %v1923
        %2552 = vmatpush1.bf16.msra.mxu0 %v1922
        %2553 = vmatprep.subr.bf16.mxu0 %v1929
        %2554 = vmatpush1.bf16.msra.mxu0 %v1928
        %2555 = vmatprep.subr.bf16.mxu0 %v1935
        %2556 = vmatpush1.bf16.msra.mxu0 %v1934
        %2557 = vmatprep.subr.bf16.mxu0 %v1941
        %2558 = vmatpush1.bf16.msra.mxu0 %v1940
        %2559 = vmatprep.subr.bf16.mxu0 %v1947
        %2560 = vmatpush1.bf16.msra.mxu0 %v1946
        %2561 = vmatprep.mubr.bf16.mxu0 %v483
        %2562 = vmatmul.mubr.bf16.gmra.mrb[0].mxu0 %v482
        %v2563 = vpop.f32.mrb[0].mxu0
        %v2564 = vadd.f32 %v2371, %v2563
        %v2565 = vpop.f32.mrb[0].mxu0
        %v2566 = vadd.f32 %v2373, %v2565
        %v2567 = vpop.f32.mrb[0].mxu0
        %v2568 = vadd.f32 %v2375, %v2567
        %v2569 = vpop.f32.mrb[0].mxu0
        %v2570 = vadd.f32 %v2377, %v2569
        %2571 = vmatprep.mubr.bf16.mxu0 %v489
        %2572 = vmatmul.mubr.bf16.gmra.mrb[0].mxu0 %v488
        %v2573 = vpop.f32.mrb[0].mxu0
        %v2574 = vadd.f32 %v2381, %v2573
        %v2575 = vpop.f32.mrb[0].mxu0
        %v2576 = vadd.f32 %v2383, %v2575
        %v2577 = vpop.f32.mrb[0].mxu0
        %v2578 = vadd.f32 %v2385, %v2577
        %v2579 = vpop.f32.mrb[0].mxu0
        %v2580 = vadd.f32 %v2387, %v2579
        %2581 = vmatprep.mubr.bf16.mxu0 %v495
        %2582 = vmatmul.mubr.bf16.gmra.mrb[0].mxu0 %v494
        %v2583 = vpop.f32.mrb[0].mxu0
        %v2584 = vadd.f32 %v2391, %v2583
        %v2585 = vpop.f32.mrb[0].mxu0
        %v2586 = vadd.f32 %v2393, %v2585
        %v2587 = vpop.f32.mrb[0].mxu0
        %v2588 = vadd.f32 %v2395, %v2587
        %v2589 = vpop.f32.mrb[0].mxu0
        %v2590 = vadd.f32 %v2397, %v2589
        %2591 = vmatprep.mubr.bf16.mxu0 %v501
        %2592 = vmatmul.mubr.bf16.gmra.mrb[0].mxu0 %v500
        %v2593 = vpop.f32.mrb[0].mxu0
        %v2594 = vadd.f32 %v2401, %v2593
        %v2595 = vpop.f32.mrb[0].mxu0
        %v2596 = vadd.f32 %v2403, %v2595
        %v2597 = vpop.f32.mrb[0].mxu0
        %v2598 = vadd.f32 %v2405, %v2597
        %v2599 = vpop.f32.mrb[0].mxu0
        %v2600 = vadd.f32 %v2407, %v2599
        %2601 = vmatprep.mubr.bf16.mxu0 %v507
        %2602 = vmatmul.mubr.bf16.gmra.mrb[0].mxu0 %v506
        %v2603 = vpop.f32.mrb[0].mxu0
        %v2604 = vadd.f32 %v2411, %v2603
        %v2605 = vpop.f32.mrb[0].mxu0
        %v2606 = vadd.f32 %v2413, %v2605
        %v2607 = vpop.f32.mrb[0].mxu0
        %v2608 = vadd.f32 %v2415, %v2607
        %v2609 = vpop.f32.mrb[0].mxu0
        %v2610 = vadd.f32 %v2417, %v2609
        %2611 = vmatprep.mubr.bf16.mxu0 %v513
        %2612 = vmatmul.mubr.bf16.gmra.mrb[0].mxu0 %v512
        %v2613 = vpop.f32.mrb[0].mxu0
        %v2614 = vadd.f32 %v2421, %v2613
        %v2615 = vpop.f32.mrb[0].mxu0
        %v2616 = vadd.f32 %v2423, %v2615
        %v2617 = vpop.f32.mrb[0].mxu0
        %v2618 = vadd.f32 %v2425, %v2617
        %v2619 = vpop.f32.mrb[0].mxu0
        %v2620 = vadd.f32 %v2427, %v2619
        %2621 = vmatprep.mubr.bf16.mxu0 %v519
        %2622 = vmatmul.mubr.bf16.gmra.mrb[0].mxu0 %v518
        %v2623 = vpop.f32.mrb[0].mxu0
        %v2624 = vadd.f32 %v2431, %v2623
        %v2625 = vpop.f32.mrb[0].mxu0
        %v2626 = vadd.f32 %v2433, %v2625
        %v2627 = vpop.f32.mrb[0].mxu0
        %v2628 = vadd.f32 %v2435, %v2627
        %v2629 = vpop.f32.mrb[0].mxu0
        %v2630 = vadd.f32 %v2437, %v2629
        %2631 = vmatprep.mubr.bf16.mxu0 %v525
        %2632 = vmatmul.mubr.bf16.gmra.mrb[0].mxu0 %v524
        %v2633 = vpop.f32.mrb[0].mxu0
        %v2634 = vadd.f32 %v2441, %v2633
        %v2635 = vpop.f32.mrb[0].mxu0
        %v2636 = vadd.f32 %v2443, %v2635
        %v2637 = vpop.f32.mrb[0].mxu0
        %v2638 = vadd.f32 %v2445, %v2637
        %v2639 = vpop.f32.mrb[0].mxu0
        %v2640 = vadd.f32 %v2447, %v2639
        %2641 = vmatprep.mubr.bf16.mxu0 %v531
        %2642 = vmatmul.mubr.bf16.gmra.mrb[0].mxu0 %v530
        %v2643 = vpop.f32.mrb[0].mxu0
        %v2644 = vadd.f32 %v2451, %v2643
        %v2645 = vpop.f32.mrb[0].mxu0
        %v2646 = vadd.f32 %v2453, %v2645
        %v2647 = vpop.f32.mrb[0].mxu0
        %v2648 = vadd.f32 %v2455, %v2647
        %v2649 = vpop.f32.mrb[0].mxu0
        %v2650 = vadd.f32 %v2457, %v2649
        %2651 = vmatprep.mubr.bf16.mxu0 %v537
        %2652 = vmatmul.mubr.bf16.gmra.mrb[0].mxu0 %v536
        %v2653 = vpop.f32.mrb[0].mxu0
        %v2654 = vadd.f32 %v2461, %v2653
        %v2655 = vpop.f32.mrb[0].mxu0
        %v2656 = vadd.f32 %v2463, %v2655
        %v2657 = vpop.f32.mrb[0].mxu0
        %v2658 = vadd.f32 %v2465, %v2657
        %v2659 = vpop.f32.mrb[0].mxu0
        %v2660 = vadd.f32 %v2467, %v2659
        %2661 = vmatprep.mubr.bf16.mxu0 %v543
        %2662 = vmatmul.mubr.bf16.gmra.mrb[0].mxu0 %v542
        %v2663 = vpop.f32.mrb[0].mxu0
        %v2664 = vadd.f32 %v2471, %v2663
        %v2665 = vpop.f32.mrb[0].mxu0
        %v2666 = vadd.f32 %v2473, %v2665
        %v2667 = vpop.f32.mrb[0].mxu0
        %v2668 = vadd.f32 %v2475, %v2667
        %v2669 = vpop.f32.mrb[0].mxu0
        %v2670 = vadd.f32 %v2477, %v2669
        %2671 = vmatprep.mubr.bf16.mxu0 %v549
        %2672 = vmatmul.mubr.bf16.gmra.mrb[0].mxu0 %v548
        %v2673 = vpop.f32.mrb[0].mxu0
        %v2674 = vadd.f32 %v2481, %v2673
        %v2675 = vpop.f32.mrb[0].mxu0
        %v2676 = vadd.f32 %v2483, %v2675
        %v2677 = vpop.f32.mrb[0].mxu0
        %v2678 = vadd.f32 %v2485, %v2677
        %v2679 = vpop.f32.mrb[0].mxu0
        %v2680 = vadd.f32 %v2487, %v2679
        %2681 = vmatprep.mubr.bf16.mxu0 %v555
        %2682 = vmatmul.mubr.bf16.gmra.mrb[0].mxu0 %v554
        %v2683 = vpop.f32.mrb[0].mxu0
        %v2684 = vadd.f32 %v2491, %v2683
        %v2685 = vpop.f32.mrb[0].mxu0
        %v2686 = vadd.f32 %v2493, %v2685
        %v2687 = vpop.f32.mrb[0].mxu0
        %v2688 = vadd.f32 %v2495, %v2687
        %v2689 = vpop.f32.mrb[0].mxu0
        %v2690 = vadd.f32 %v2497, %v2689
        %2691 = vmatprep.mubr.bf16.mxu0 %v561
        %2692 = vmatmul.mubr.bf16.gmra.mrb[0].mxu0 %v560
        %v2693 = vpop.f32.mrb[0].mxu0
        %v2694 = vadd.f32 %v2501, %v2693
        %v2695 = vpop.f32.mrb[0].mxu0
        %v2696 = vadd.f32 %v2503, %v2695
        %v2697 = vpop.f32.mrb[0].mxu0
        %v2698 = vadd.f32 %v2505, %v2697
        %v2699 = vpop.f32.mrb[0].mxu0
        %v2700 = vadd.f32 %v2507, %v2699
        %2701 = vmatprep.mubr.bf16.mxu0 %v567
        %2702 = vmatmul.mubr.bf16.gmra.mrb[0].mxu0 %v566
        %v2703 = vpop.f32.mrb[0].mxu0
        %v2704 = vadd.f32 %v2511, %v2703
        %v2705 = vpop.f32.mrb[0].mxu0
        %v2706 = vadd.f32 %v2513, %v2705
        %v2707 = vpop.f32.mrb[0].mxu0
        %v2708 = vadd.f32 %v2515, %v2707
        %v2709 = vpop.f32.mrb[0].mxu0
        %v2710 = vadd.f32 %v2517, %v2709
        %2711 = vmatprep.mubr.bf16.mxu0 %v573
        %2712 = vmatmul.mubr.bf16.gmra.mrb[0].mxu0 %v572
        %v2713 = vpop.f32.mrb[0].mxu0
        %v2714 = vadd.f32 %v2521, %v2713
        %v2715 = vpop.f32.mrb[0].mxu0
        %v2716 = vadd.f32 %v2523, %v2715
        %v2717 = vpop.f32.mrb[0].mxu0
        %v2718 = vadd.f32 %v2525, %v2717
        %v2719 = vpop.f32.mrb[0].mxu0
        %v2720 = vadd.f32 %v2527, %v2719
        %2721 = vdwg.mxu0
        %2722 = vmatprep.subr.bf16.mxu0 %v1953
        %2723 = vmatpush1.bf16.msra.mxu0 %v1952
        %2724 = vmatprep.subr.bf16.mxu0 %v1959
        %2725 = vmatpush1.bf16.msra.mxu0 %v1958
        %2726 = vmatprep.subr.bf16.mxu0 %v1965
        %2727 = vmatpush1.bf16.msra.mxu0 %v1964
        %2728 = vmatprep.subr.bf16.mxu0 %v1971
        %2729 = vmatpush1.bf16.msra.mxu0 %v1970
        %2730 = vmatprep.subr.bf16.mxu0 %v1977
        %2731 = vmatpush1.bf16.msra.mxu0 %v1976
        %2732 = vmatprep.subr.bf16.mxu0 %v1983
        %2733 = vmatpush1.bf16.msra.mxu0 %v1982
        %2734 = vmatprep.subr.bf16.mxu0 %v1989
        %2735 = vmatpush1.bf16.msra.mxu0 %v1988
        %2736 = vmatprep.subr.bf16.mxu0 %v1995
        %2737 = vmatpush1.bf16.msra.mxu0 %v1994
        %2738 = vmatprep.subr.bf16.mxu0 %v2001
        %2739 = vmatpush1.bf16.msra.mxu0 %v2000
        %2740 = vmatprep.subr.bf16.mxu0 %v2007
        %2741 = vmatpush1.bf16.msra.mxu0 %v2006
        %2742 = vmatprep.subr.bf16.mxu0 %v2013
        %2743 = vmatpush1.bf16.msra.mxu0 %v2012
        %2744 = vmatprep.subr.bf16.mxu0 %v2019
        %2745 = vmatpush1.bf16.msra.mxu0 %v2018
        %2746 = vmatprep.subr.bf16.mxu0 %v2025
        %2747 = vmatpush1.bf16.msra.mxu0 %v2024
        %2748 = vmatprep.subr.bf16.mxu0 %v2031
        %2749 = vmatpush1.bf16.msra.mxu0 %v2030
        %2750 = vmatprep.subr.bf16.mxu0 %v2037
        %2751 = vmatpush1.bf16.msra.mxu0 %v2036
        %2752 = vmatprep.subr.bf16.mxu0 %v2043
        %2753 = vmatpush1.bf16.msra.mxu0 %v2042
        %2754 = vmatprep.mubr.bf16.mxu0 %v485
        %2755 = vmatmul.mubr.bf16.gmra.mrb[0].mxu0 %v484
        %v2756 = vpop.f32.mrb[0].mxu0
        %v2757 = vadd.f32 %v2564, %v2756
        %v2758 = vpop.f32.mrb[0].mxu0
        %v2759 = vadd.f32 %v2566, %v2758
        %v2760 = vpop.f32.mrb[0].mxu0
        %v2761 = vadd.f32 %v2568, %v2760
        %v2762 = vpop.f32.mrb[0].mxu0
        %v2763 = vadd.f32 %v2570, %v2762
        %2764 = vmatprep.mubr.bf16.mxu0 %v491
        %2765 = vmatmul.mubr.bf16.gmra.mrb[0].mxu0 %v490
        %v2766 = vpop.f32.mrb[0].mxu0
        %v2767 = vadd.f32 %v2574, %v2766
        %v2768 = vpop.f32.mrb[0].mxu0
        %v2769 = vadd.f32 %v2576, %v2768
        %v2770 = vpop.f32.mrb[0].mxu0
        %v2771 = vadd.f32 %v2578, %v2770
        %v2772 = vpop.f32.mrb[0].mxu0
        %v2773 = vadd.f32 %v2580, %v2772
        %2774 = vmatprep.mubr.bf16.mxu0 %v497
        %2775 = vmatmul.mubr.bf16.gmra.mrb[0].mxu0 %v496
        %v2776 = vpop.f32.mrb[0].mxu0
        %v2777 = vadd.f32 %v2584, %v2776
        %v2778 = vpop.f32.mrb[0].mxu0
        %v2779 = vadd.f32 %v2586, %v2778
        %v2780 = vpop.f32.mrb[0].mxu0
        %v2781 = vadd.f32 %v2588, %v2780
        %v2782 = vpop.f32.mrb[0].mxu0
        %v2783 = vadd.f32 %v2590, %v2782
        %2784 = vmatprep.mubr.bf16.mxu0 %v503
        %2785 = vmatmul.mubr.bf16.gmra.mrb[0].mxu0 %v502
        %v2786 = vpop.f32.mrb[0].mxu0
        %v2787 = vadd.f32 %v2594, %v2786
        %v2788 = vpop.f32.mrb[0].mxu0
        %v2789 = vadd.f32 %v2596, %v2788
        %v2790 = vpop.f32.mrb[0].mxu0
        %v2791 = vadd.f32 %v2598, %v2790
        %v2792 = vpop.f32.mrb[0].mxu0
        %v2793 = vadd.f32 %v2600, %v2792
        %2794 = vmatprep.mubr.bf16.mxu0 %v509
        %2795 = vmatmul.mubr.bf16.gmra.mrb[0].mxu0 %v508
        %v2796 = vpop.f32.mrb[0].mxu0
        %v2797 = vadd.f32 %v2604, %v2796
        %v2798 = vpop.f32.mrb[0].mxu0
        %v2799 = vadd.f32 %v2606, %v2798
        %v2800 = vpop.f32.mrb[0].mxu0
        %v2801 = vadd.f32 %v2608, %v2800
        %v2802 = vpop.f32.mrb[0].mxu0
        %v2803 = vadd.f32 %v2610, %v2802
        %2804 = vmatprep.mubr.bf16.mxu0 %v515
        %2805 = vmatmul.mubr.bf16.gmra.mrb[0].mxu0 %v514
        %v2806 = vpop.f32.mrb[0].mxu0
        %v2807 = vadd.f32 %v2614, %v2806
        %v2808 = vpop.f32.mrb[0].mxu0
        %v2809 = vadd.f32 %v2616, %v2808
        %v2810 = vpop.f32.mrb[0].mxu0
        %v2811 = vadd.f32 %v2618, %v2810
        %v2812 = vpop.f32.mrb[0].mxu0
        %v2813 = vadd.f32 %v2620, %v2812
        %2814 = vmatprep.mubr.bf16.mxu0 %v521
        %2815 = vmatmul.mubr.bf16.gmra.mrb[0].mxu0 %v520
        %v2816 = vpop.f32.mrb[0].mxu0
        %v2817 = vadd.f32 %v2624, %v2816
        %v2818 = vpop.f32.mrb[0].mxu0
        %v2819 = vadd.f32 %v2626, %v2818
        %v2820 = vpop.f32.mrb[0].mxu0
        %v2821 = vadd.f32 %v2628, %v2820
        %v2822 = vpop.f32.mrb[0].mxu0
        %v2823 = vadd.f32 %v2630, %v2822
        %2824 = vmatprep.mubr.bf16.mxu0 %v527
        %2825 = vmatmul.mubr.bf16.gmra.mrb[0].mxu0 %v526
        %v2826 = vpop.f32.mrb[0].mxu0
        %v2827 = vadd.f32 %v2634, %v2826
        %v2828 = vpop.f32.mrb[0].mxu0
        %v2829 = vadd.f32 %v2636, %v2828
        %v2830 = vpop.f32.mrb[0].mxu0
        %v2831 = vadd.f32 %v2638, %v2830
        %v2832 = vpop.f32.mrb[0].mxu0
        %v2833 = vadd.f32 %v2640, %v2832
        %2834 = vmatprep.mubr.bf16.mxu0 %v533
        %2835 = vmatmul.mubr.bf16.gmra.mrb[0].mxu0 %v532
        %v2836 = vpop.f32.mrb[0].mxu0
        %v2837 = vadd.f32 %v2644, %v2836
        %v2838 = vpop.f32.mrb[0].mxu0
        %v2839 = vadd.f32 %v2646, %v2838
        %v2840 = vpop.f32.mrb[0].mxu0
        %v2841 = vadd.f32 %v2648, %v2840
        %v2842 = vpop.f32.mrb[0].mxu0
        %v2843 = vadd.f32 %v2650, %v2842
        %2844 = vmatprep.mubr.bf16.mxu0 %v539
        %2845 = vmatmul.mubr.bf16.gmra.mrb[0].mxu0 %v538
        %v2846 = vpop.f32.mrb[0].mxu0
        %v2847 = vadd.f32 %v2654, %v2846
        %v2848 = vpop.f32.mrb[0].mxu0
        %v2849 = vadd.f32 %v2656, %v2848
        %v2850 = vpop.f32.mrb[0].mxu0
        %v2851 = vadd.f32 %v2658, %v2850
        %v2852 = vpop.f32.mrb[0].mxu0
        %v2853 = vadd.f32 %v2660, %v2852
        %2854 = vmatprep.mubr.bf16.mxu0 %v545
        %2855 = vmatmul.mubr.bf16.gmra.mrb[0].mxu0 %v544
        %v2856 = vpop.f32.mrb[0].mxu0
        %v2857 = vadd.f32 %v2664, %v2856
        %v2858 = vpop.f32.mrb[0].mxu0
        %v2859 = vadd.f32 %v2666, %v2858
        %v2860 = vpop.f32.mrb[0].mxu0
        %v2861 = vadd.f32 %v2668, %v2860
        %v2862 = vpop.f32.mrb[0].mxu0
        %v2863 = vadd.f32 %v2670, %v2862
        %2864 = vmatprep.mubr.bf16.mxu0 %v551
        %2865 = vmatmul.mubr.bf16.gmra.mrb[0].mxu0 %v550
        %v2866 = vpop.f32.mrb[0].mxu0
        %v2867 = vadd.f32 %v2674, %v2866
        %v2868 = vpop.f32.mrb[0].mxu0
        %v2869 = vadd.f32 %v2676, %v2868
        %v2870 = vpop.f32.mrb[0].mxu0
        %v2871 = vadd.f32 %v2678, %v2870
        %v2872 = vpop.f32.mrb[0].mxu0
        %v2873 = vadd.f32 %v2680, %v2872
        %2874 = vmatprep.mubr.bf16.mxu0 %v557
        %2875 = vmatmul.mubr.bf16.gmra.mrb[0].mxu0 %v556
        %v2876 = vpop.f32.mrb[0].mxu0
        %v2877 = vadd.f32 %v2684, %v2876
        %v2878 = vpop.f32.mrb[0].mxu0
        %v2879 = vadd.f32 %v2686, %v2878
        %v2880 = vpop.f32.mrb[0].mxu0
        %v2881 = vadd.f32 %v2688, %v2880
        %v2882 = vpop.f32.mrb[0].mxu0
        %v2883 = vadd.f32 %v2690, %v2882
        %2884 = vmatprep.mubr.bf16.mxu0 %v563
        %2885 = vmatmul.mubr.bf16.gmra.mrb[0].mxu0 %v562
        %v2886 = vpop.f32.mrb[0].mxu0
        %v2887 = vadd.f32 %v2694, %v2886
        %v2888 = vpop.f32.mrb[0].mxu0
        %v2889 = vadd.f32 %v2696, %v2888
        %v2890 = vpop.f32.mrb[0].mxu0
        %v2891 = vadd.f32 %v2698, %v2890
        %v2892 = vpop.f32.mrb[0].mxu0
        %v2893 = vadd.f32 %v2700, %v2892
        %2894 = vmatprep.mubr.bf16.mxu0 %v569
        %2895 = vmatmul.mubr.bf16.gmra.mrb[0].mxu0 %v568
        %v2896 = vpop.f32.mrb[0].mxu0
        %v2897 = vadd.f32 %v2704, %v2896
        %v2898 = vpop.f32.mrb[0].mxu0
        %v2899 = vadd.f32 %v2706, %v2898
        %v2900 = vpop.f32.mrb[0].mxu0
        %v2901 = vadd.f32 %v2708, %v2900
        %v2902 = vpop.f32.mrb[0].mxu0
        %v2903 = vadd.f32 %v2710, %v2902
        %2904 = vmatprep.mubr.bf16.mxu0 %v575
        %2905 = vmatmul.mubr.bf16.gmra.mrb[0].mxu0 %v574
        %v2906 = vpop.f32.mrb[0].mxu0
        %v2907 = vadd.f32 %v2714, %v2906
        %v2908 = vpop.f32.mrb[0].mxu0
        %v2909 = vadd.f32 %v2716, %v2908
        %v2910 = vpop.f32.mrb[0].mxu0
        %v2911 = vadd.f32 %v2718, %v2910
        %v2912 = vpop.f32.mrb[0].mxu0
        %v2913 = vadd.f32 %v2720, %v2912
        %2914 = vdwg.mxu0
        %2915 = vmatprep.subr.bf16.mxu0 %v1763
        %2916 = vmatpush1.bf16.msra.mxu0 %v1762
        %2917 = vmatprep.subr.bf16.mxu0 %v1769
        %2918 = vmatpush1.bf16.msra.mxu0 %v1768
        %2919 = vmatprep.subr.bf16.mxu0 %v1775
        %2920 = vmatpush1.bf16.msra.mxu0 %v1774
        %2921 = vmatprep.subr.bf16.mxu0 %v1781
        %2922 = vmatpush1.bf16.msra.mxu0 %v1780
        %2923 = vmatprep.subr.bf16.mxu0 %v1787
        %2924 = vmatpush1.bf16.msra.mxu0 %v1786
        %2925 = vmatprep.subr.bf16.mxu0 %v1793
        %2926 = vmatpush1.bf16.msra.mxu0 %v1792
        %2927 = vmatprep.subr.bf16.mxu0 %v1799
        %2928 = vmatpush1.bf16.msra.mxu0 %v1798
        %2929 = vmatprep.subr.bf16.mxu0 %v1805
        %2930 = vmatpush1.bf16.msra.mxu0 %v1804
        %2931 = vmatprep.subr.bf16.mxu0 %v1811
        %2932 = vmatpush1.bf16.msra.mxu0 %v1810
        %2933 = vmatprep.subr.bf16.mxu0 %v1817
        %2934 = vmatpush1.bf16.msra.mxu0 %v1816
        %2935 = vmatprep.subr.bf16.mxu0 %v1823
        %2936 = vmatpush1.bf16.msra.mxu0 %v1822
        %2937 = vmatprep.subr.bf16.mxu0 %v1829
        %2938 = vmatpush1.bf16.msra.mxu0 %v1828
        %2939 = vmatprep.subr.bf16.mxu0 %v1835
        %2940 = vmatpush1.bf16.msra.mxu0 %v1834
        %2941 = vmatprep.subr.bf16.mxu0 %v1841
        %2942 = vmatpush1.bf16.msra.mxu0 %v1840
        %2943 = vmatprep.subr.bf16.mxu0 %v1847
        %2944 = vmatpush1.bf16.msra.mxu0 %v1846
        %2945 = vmatprep.subr.bf16.mxu0 %v1853
        %2946 = vmatpush1.bf16.msra.mxu0 %v1852
        %2947 = vmatprep.mubr.bf16.mxu0 %v481
        %2948 = vmatmul.mubr.bf16.gmra.mrb[0].mxu0 %v480
        %v2949 = vpop.f32.mrb[0].mxu0
        %v2950 = vadd.f32 %v877, %v2949
        %v2951 = vpop.f32.mrb[0].mxu0
        %v2952 = vadd.f32 %v881, %v2951
        %v2953 = vpop.f32.mrb[0].mxu0
        %v2954 = vadd.f32 %v877, %v2953
        %v2955 = vpop.f32.mrb[0].mxu0
        %v2956 = vadd.f32 %v881, %v2955
        %2957 = vmatprep.mubr.bf16.mxu0 %v487
        %2958 = vmatmul.mubr.bf16.gmra.mrb[0].mxu0 %v486
        %v2959 = vpop.f32.mrb[0].mxu0
        %v2960 = vadd.f32 %v877, %v2959
        %v2961 = vpop.f32.mrb[0].mxu0
        %v2962 = vadd.f32 %v881, %v2961
        %v2963 = vpop.f32.mrb[0].mxu0
        %v2964 = vadd.f32 %v877, %v2963
        %v2965 = vpop.f32.mrb[0].mxu0
        %v2966 = vadd.f32 %v881, %v2965
        %2967 = vmatprep.mubr.bf16.mxu0 %v493
        %2968 = vmatmul.mubr.bf16.gmra.mrb[0].mxu0 %v492
        %v2969 = vpop.f32.mrb[0].mxu0
        %v2970 = vadd.f32 %v877, %v2969
        %v2971 = vpop.f32.mrb[0].mxu0
        %v2972 = vadd.f32 %v881, %v2971
        %v2973 = vpop.f32.mrb[0].mxu0
        %v2974 = vadd.f32 %v877, %v2973
        %v2975 = vpop.f32.mrb[0].mxu0
        %v2976 = vadd.f32 %v881, %v2975
        %2977 = vmatprep.mubr.bf16.mxu0 %v499
        %2978 = vmatmul.mubr.bf16.gmra.mrb[0].mxu0 %v498
        %v2979 = vpop.f32.mrb[0].mxu0
        %v2980 = vadd.f32 %v877, %v2979
        %v2981 = vpop.f32.mrb[0].mxu0
        %v2982 = vadd.f32 %v881, %v2981
        %v2983 = vpop.f32.mrb[0].mxu0
        %v2984 = vadd.f32 %v877, %v2983
        %v2985 = vpop.f32.mrb[0].mxu0
        %v2986 = vadd.f32 %v881, %v2985
        %2987 = vmatprep.mubr.bf16.mxu0 %v505
        %2988 = vmatmul.mubr.bf16.gmra.mrb[0].mxu0 %v504
        %v2989 = vpop.f32.mrb[0].mxu0
        %v2990 = vadd.f32 %v877, %v2989
        %v2991 = vpop.f32.mrb[0].mxu0
        %v2992 = vadd.f32 %v881, %v2991
        %v2993 = vpop.f32.mrb[0].mxu0
        %v2994 = vadd.f32 %v877, %v2993
        %v2995 = vpop.f32.mrb[0].mxu0
        %v2996 = vadd.f32 %v881, %v2995
        %2997 = vmatprep.mubr.bf16.mxu0 %v511
        %2998 = vmatmul.mubr.bf16.gmra.mrb[0].mxu0 %v510
        %v2999 = vpop.f32.mrb[0].mxu0
        %v3000 = vadd.f32 %v877, %v2999
        %v3001 = vpop.f32.mrb[0].mxu0
        %v3002 = vadd.f32 %v881, %v3001
        %v3003 = vpop.f32.mrb[0].mxu0
        %v3004 = vadd.f32 %v877, %v3003
        %v3005 = vpop.f32.mrb[0].mxu0
        %v3006 = vadd.f32 %v881, %v3005
        %3007 = vmatprep.mubr.bf16.mxu0 %v517
        %3008 = vmatmul.mubr.bf16.gmra.mrb[0].mxu0 %v516
        %v3009 = vpop.f32.mrb[0].mxu0
        %v3010 = vadd.f32 %v877, %v3009
        %v3011 = vpop.f32.mrb[0].mxu0
        %v3012 = vadd.f32 %v881, %v3011
        %v3013 = vpop.f32.mrb[0].mxu0
        %v3014 = vadd.f32 %v877, %v3013
        %v3015 = vpop.f32.mrb[0].mxu0
        %v3016 = vadd.f32 %v881, %v3015
        %3017 = vmatprep.mubr.bf16.mxu0 %v523
        %3018 = vmatmul.mubr.bf16.gmra.mrb[0].mxu0 %v522
        %v3019 = vpop.f32.mrb[0].mxu0
        %v3020 = vadd.f32 %v877, %v3019
        %v3021 = vpop.f32.mrb[0].mxu0
        %v3022 = vadd.f32 %v881, %v3021
        %v3023 = vpop.f32.mrb[0].mxu0
        %v3024 = vadd.f32 %v877, %v3023
        %v3025 = vpop.f32.mrb[0].mxu0
        %v3026 = vadd.f32 %v881, %v3025
        %3027 = vmatprep.mubr.bf16.mxu0 %v529
        %3028 = vmatmul.mubr.bf16.gmra.mrb[0].mxu0 %v528
        %v3029 = vpop.f32.mrb[0].mxu0
        %v3030 = vadd.f32 %v877, %v3029
        %v3031 = vpop.f32.mrb[0].mxu0
        %v3032 = vadd.f32 %v881, %v3031
        %v3033 = vpop.f32.mrb[0].mxu0
        %v3034 = vadd.f32 %v877, %v3033
        %v3035 = vpop.f32.mrb[0].mxu0
        %v3036 = vadd.f32 %v881, %v3035
        %3037 = vmatprep.mubr.bf16.mxu0 %v535
        %3038 = vmatmul.mubr.bf16.gmra.mrb[0].mxu0 %v534
        %v3039 = vpop.f32.mrb[0].mxu0
        %v3040 = vadd.f32 %v877, %v3039
        %v3041 = vpop.f32.mrb[0].mxu0
        %v3042 = vadd.f32 %v881, %v3041
        %v3043 = vpop.f32.mrb[0].mxu0
        %v3044 = vadd.f32 %v877, %v3043
        %v3045 = vpop.f32.mrb[0].mxu0
        %v3046 = vadd.f32 %v881, %v3045
        %3047 = vmatprep.mubr.bf16.mxu0 %v541
        %3048 = vmatmul.mubr.bf16.gmra.mrb[0].mxu0 %v540
        %v3049 = vpop.f32.mrb[0].mxu0
        %v3050 = vadd.f32 %v877, %v3049
        %v3051 = vpop.f32.mrb[0].mxu0
        %v3052 = vadd.f32 %v881, %v3051
        %v3053 = vpop.f32.mrb[0].mxu0
        %v3054 = vadd.f32 %v877, %v3053
        %v3055 = vpop.f32.mrb[0].mxu0
        %v3056 = vadd.f32 %v881, %v3055
        %3057 = vmatprep.mubr.bf16.mxu0 %v547
        %3058 = vmatmul.mubr.bf16.gmra.mrb[0].mxu0 %v546
        %v3059 = vpop.f32.mrb[0].mxu0
        %v3060 = vadd.f32 %v877, %v3059
        %v3061 = vpop.f32.mrb[0].mxu0
        %v3062 = vadd.f32 %v881, %v3061
        %v3063 = vpop.f32.mrb[0].mxu0
        %v3064 = vadd.f32 %v877, %v3063
        %v3065 = vpop.f32.mrb[0].mxu0
        %v3066 = vadd.f32 %v881, %v3065
        %3067 = vmatprep.mubr.bf16.mxu0 %v553
        %3068 = vmatmul.mubr.bf16.gmra.mrb[0].mxu0 %v552
        %v3069 = vpop.f32.mrb[0].mxu0
        %v3070 = vadd.f32 %v877, %v3069
        %v3071 = vpop.f32.mrb[0].mxu0
        %v3072 = vadd.f32 %v881, %v3071
        %v3073 = vpop.f32.mrb[0].mxu0
        %v3074 = vadd.f32 %v877, %v3073
        %v3075 = vpop.f32.mrb[0].mxu0
        %v3076 = vadd.f32 %v881, %v3075
        %3077 = vmatprep.mubr.bf16.mxu0 %v559
        %3078 = vmatmul.mubr.bf16.gmra.mrb[0].mxu0 %v558
        %v3079 = vpop.f32.mrb[0].mxu0
        %v3080 = vadd.f32 %v877, %v3079
        %v3081 = vpop.f32.mrb[0].mxu0
        %v3082 = vadd.f32 %v881, %v3081
        %v3083 = vpop.f32.mrb[0].mxu0
        %v3084 = vadd.f32 %v877, %v3083
        %v3085 = vpop.f32.mrb[0].mxu0
        %v3086 = vadd.f32 %v881, %v3085
        %3087 = vmatprep.mubr.bf16.mxu0 %v565
        %3088 = vmatmul.mubr.bf16.gmra.mrb[0].mxu0 %v564
        %v3089 = vpop.f32.mrb[0].mxu0
        %v3090 = vadd.f32 %v877, %v3089
        %v3091 = vpop.f32.mrb[0].mxu0
        %v3092 = vadd.f32 %v881, %v3091
        %v3093 = vpop.f32.mrb[0].mxu0
        %v3094 = vadd.f32 %v877, %v3093
        %v3095 = vpop.f32.mrb[0].mxu0
        %v3096 = vadd.f32 %v881, %v3095
        %3097 = vmatprep.mubr.bf16.mxu0 %v571
        %3098 = vmatmul.mubr.bf16.gmra.mrb[0].mxu0 %v570
        %v3099 = vpop.f32.mrb[0].mxu0
        %v3100 = vadd.f32 %v877, %v3099
        %v3101 = vpop.f32.mrb[0].mxu0
        %v3102 = vadd.f32 %v881, %v3101
        %v3103 = vpop.f32.mrb[0].mxu0
        %v3104 = vadd.f32 %v877, %v3103
        %v3105 = vpop.f32.mrb[0].mxu0
        %v3106 = vadd.f32 %v881, %v3105
        %3107 = vdwg.mxu0
        %3108 = vmatprep.subr.bf16.mxu0 %v1859
        %3109 = vmatpush1.bf16.msra.mxu0 %v1858
        %3110 = vmatprep.subr.bf16.mxu0 %v1865
        %3111 = vmatpush1.bf16.msra.mxu0 %v1864
        %3112 = vmatprep.subr.bf16.mxu0 %v1871
        %3113 = vmatpush1.bf16.msra.mxu0 %v1870
        %3114 = vmatprep.subr.bf16.mxu0 %v1877
        %3115 = vmatpush1.bf16.msra.mxu0 %v1876
        %3116 = vmatprep.subr.bf16.mxu0 %v1883
        %3117 = vmatpush1.bf16.msra.mxu0 %v1882
        %3118 = vmatprep.subr.bf16.mxu0 %v1889
        %3119 = vmatpush1.bf16.msra.mxu0 %v1888
        %3120 = vmatprep.subr.bf16.mxu0 %v1895
        %3121 = vmatpush1.bf16.msra.mxu0 %v1894
        %3122 = vmatprep.subr.bf16.mxu0 %v1901
        %3123 = vmatpush1.bf16.msra.mxu0 %v1900
        %3124 = vmatprep.subr.bf16.mxu0 %v1907
        %3125 = vmatpush1.bf16.msra.mxu0 %v1906
        %3126 = vmatprep.subr.bf16.mxu0 %v1913
        %3127 = vmatpush1.bf16.msra.mxu0 %v1912
        %3128 = vmatprep.subr.bf16.mxu0 %v1919
        %3129 = vmatpush1.bf16.msra.mxu0 %v1918
        %3130 = vmatprep.subr.bf16.mxu0 %v1925
        %3131 = vmatpush1.bf16.msra.mxu0 %v1924
        %3132 = vmatprep.subr.bf16.mxu0 %v1931
        %3133 = vmatpush1.bf16.msra.mxu0 %v1930
        %3134 = vmatprep.subr.bf16.mxu0 %v1937
        %3135 = vmatpush1.bf16.msra.mxu0 %v1936
        %3136 = vmatprep.subr.bf16.mxu0 %v1943
        %3137 = vmatpush1.bf16.msra.mxu0 %v1942
        %3138 = vmatprep.subr.bf16.mxu0 %v1949
        %3139 = vmatpush1.bf16.msra.mxu0 %v1948
        %3140 = vmatprep.mubr.bf16.mxu0 %v483
        %3141 = vmatmul.mubr.bf16.gmra.mrb[0].mxu0 %v482
        %v3142 = vpop.f32.mrb[0].mxu0
        %v3143 = vadd.f32 %v2950, %v3142
        %v3144 = vpop.f32.mrb[0].mxu0
        %v3145 = vadd.f32 %v2952, %v3144
        %v3146 = vpop.f32.mrb[0].mxu0
        %v3147 = vadd.f32 %v2954, %v3146
        %v3148 = vpop.f32.mrb[0].mxu0
        %v3149 = vadd.f32 %v2956, %v3148
        %3150 = vmatprep.mubr.bf16.mxu0 %v489
        %3151 = vmatmul.mubr.bf16.gmra.mrb[0].mxu0 %v488
        %v3152 = vpop.f32.mrb[0].mxu0
        %v3153 = vadd.f32 %v2960, %v3152
        %v3154 = vpop.f32.mrb[0].mxu0
        %v3155 = vadd.f32 %v2962, %v3154
        %v3156 = vpop.f32.mrb[0].mxu0
        %v3157 = vadd.f32 %v2964, %v3156
        %v3158 = vpop.f32.mrb[0].mxu0
        %v3159 = vadd.f32 %v2966, %v3158
        %3160 = vmatprep.mubr.bf16.mxu0 %v495
        %3161 = vmatmul.mubr.bf16.gmra.mrb[0].mxu0 %v494
        %v3162 = vpop.f32.mrb[0].mxu0
        %v3163 = vadd.f32 %v2970, %v3162
        %v3164 = vpop.f32.mrb[0].mxu0
        %v3165 = vadd.f32 %v2972, %v3164
        %v3166 = vpop.f32.mrb[0].mxu0
        %v3167 = vadd.f32 %v2974, %v3166
        %v3168 = vpop.f32.mrb[0].mxu0
        %v3169 = vadd.f32 %v2976, %v3168
        %3170 = vmatprep.mubr.bf16.mxu0 %v501
        %3171 = vmatmul.mubr.bf16.gmra.mrb[0].mxu0 %v500
        %v3172 = vpop.f32.mrb[0].mxu0
        %v3173 = vadd.f32 %v2980, %v3172
        %v3174 = vpop.f32.mrb[0].mxu0
        %v3175 = vadd.f32 %v2982, %v3174
        %v3176 = vpop.f32.mrb[0].mxu0
        %v3177 = vadd.f32 %v2984, %v3176
        %v3178 = vpop.f32.mrb[0].mxu0
        %v3179 = vadd.f32 %v2986, %v3178
        %3180 = vmatprep.mubr.bf16.mxu0 %v507
        %3181 = vmatmul.mubr.bf16.gmra.mrb[0].mxu0 %v506
        %v3182 = vpop.f32.mrb[0].mxu0
        %v3183 = vadd.f32 %v2990, %v3182
        %v3184 = vpop.f32.mrb[0].mxu0
        %v3185 = vadd.f32 %v2992, %v3184
        %v3186 = vpop.f32.mrb[0].mxu0
        %v3187 = vadd.f32 %v2994, %v3186
        %v3188 = vpop.f32.mrb[0].mxu0
        %v3189 = vadd.f32 %v2996, %v3188
        %3190 = vmatprep.mubr.bf16.mxu0 %v513
        %3191 = vmatmul.mubr.bf16.gmra.mrb[0].mxu0 %v512
        %v3192 = vpop.f32.mrb[0].mxu0
        %v3193 = vadd.f32 %v3000, %v3192
        %v3194 = vpop.f32.mrb[0].mxu0
        %v3195 = vadd.f32 %v3002, %v3194
        %v3196 = vpop.f32.mrb[0].mxu0
        %v3197 = vadd.f32 %v3004, %v3196
        %v3198 = vpop.f32.mrb[0].mxu0
        %v3199 = vadd.f32 %v3006, %v3198
        %3200 = vmatprep.mubr.bf16.mxu0 %v519
        %3201 = vmatmul.mubr.bf16.gmra.mrb[0].mxu0 %v518
        %v3202 = vpop.f32.mrb[0].mxu0
        %v3203 = vadd.f32 %v3010, %v3202
        %v3204 = vpop.f32.mrb[0].mxu0
        %v3205 = vadd.f32 %v3012, %v3204
        %v3206 = vpop.f32.mrb[0].mxu0
        %v3207 = vadd.f32 %v3014, %v3206
        %v3208 = vpop.f32.mrb[0].mxu0
        %v3209 = vadd.f32 %v3016, %v3208
        %3210 = vmatprep.mubr.bf16.mxu0 %v525
        %3211 = vmatmul.mubr.bf16.gmra.mrb[0].mxu0 %v524
        %v3212 = vpop.f32.mrb[0].mxu0
        %v3213 = vadd.f32 %v3020, %v3212
        %v3214 = vpop.f32.mrb[0].mxu0
        %v3215 = vadd.f32 %v3022, %v3214
        %v3216 = vpop.f32.mrb[0].mxu0
        %v3217 = vadd.f32 %v3024, %v3216
        %v3218 = vpop.f32.mrb[0].mxu0
        %v3219 = vadd.f32 %v3026, %v3218
        %3220 = vmatprep.mubr.bf16.mxu0 %v531
        %3221 = vmatmul.mubr.bf16.gmra.mrb[0].mxu0 %v530
        %v3222 = vpop.f32.mrb[0].mxu0
        %v3223 = vadd.f32 %v3030, %v3222
        %v3224 = vpop.f32.mrb[0].mxu0
        %v3225 = vadd.f32 %v3032, %v3224
        %v3226 = vpop.f32.mrb[0].mxu0
        %v3227 = vadd.f32 %v3034, %v3226
        %v3228 = vpop.f32.mrb[0].mxu0
        %v3229 = vadd.f32 %v3036, %v3228
        %3230 = vmatprep.mubr.bf16.mxu0 %v537
        %3231 = vmatmul.mubr.bf16.gmra.mrb[0].mxu0 %v536
        %v3232 = vpop.f32.mrb[0].mxu0
        %v3233 = vadd.f32 %v3040, %v3232
        %v3234 = vpop.f32.mrb[0].mxu0
        %v3235 = vadd.f32 %v3042, %v3234
        %v3236 = vpop.f32.mrb[0].mxu0
        %v3237 = vadd.f32 %v3044, %v3236
        %v3238 = vpop.f32.mrb[0].mxu0
        %v3239 = vadd.f32 %v3046, %v3238
        %3240 = vmatprep.mubr.bf16.mxu0 %v543
        %3241 = vmatmul.mubr.bf16.gmra.mrb[0].mxu0 %v542
        %v3242 = vpop.f32.mrb[0].mxu0
        %v3243 = vadd.f32 %v3050, %v3242
        %v3244 = vpop.f32.mrb[0].mxu0
        %v3245 = vadd.f32 %v3052, %v3244
        %v3246 = vpop.f32.mrb[0].mxu0
        %v3247 = vadd.f32 %v3054, %v3246
        %v3248 = vpop.f32.mrb[0].mxu0
        %v3249 = vadd.f32 %v3056, %v3248
        %3250 = vmatprep.mubr.bf16.mxu0 %v549
        %3251 = vmatmul.mubr.bf16.gmra.mrb[0].mxu0 %v548
        %v3252 = vpop.f32.mrb[0].mxu0
        %v3253 = vadd.f32 %v3060, %v3252
        %v3254 = vpop.f32.mrb[0].mxu0
        %v3255 = vadd.f32 %v3062, %v3254
        %v3256 = vpop.f32.mrb[0].mxu0
        %v3257 = vadd.f32 %v3064, %v3256
        %v3258 = vpop.f32.mrb[0].mxu0
        %v3259 = vadd.f32 %v3066, %v3258
        %3260 = vmatprep.mubr.bf16.mxu0 %v555
        %3261 = vmatmul.mubr.bf16.gmra.mrb[0].mxu0 %v554
        %v3262 = vpop.f32.mrb[0].mxu0
        %v3263 = vadd.f32 %v3070, %v3262
        %v3264 = vpop.f32.mrb[0].mxu0
        %v3265 = vadd.f32 %v3072, %v3264
        %v3266 = vpop.f32.mrb[0].mxu0
        %v3267 = vadd.f32 %v3074, %v3266
        %v3268 = vpop.f32.mrb[0].mxu0
        %v3269 = vadd.f32 %v3076, %v3268
        %3270 = vmatprep.mubr.bf16.mxu0 %v561
        %3271 = vmatmul.mubr.bf16.gmra.mrb[0].mxu0 %v560
        %v3272 = vpop.f32.mrb[0].mxu0
        %v3273 = vadd.f32 %v3080, %v3272
        %v3274 = vpop.f32.mrb[0].mxu0
        %v3275 = vadd.f32 %v3082, %v3274
        %v3276 = vpop.f32.mrb[0].mxu0
        %v3277 = vadd.f32 %v3084, %v3276
        %v3278 = vpop.f32.mrb[0].mxu0
        %v3279 = vadd.f32 %v3086, %v3278
        %3280 = vmatprep.mubr.bf16.mxu0 %v567
        %3281 = vmatmul.mubr.bf16.gmra.mrb[0].mxu0 %v566
        %v3282 = vpop.f32.mrb[0].mxu0
        %v3283 = vadd.f32 %v3090, %v3282
        %v3284 = vpop.f32.mrb[0].mxu0
        %v3285 = vadd.f32 %v3092, %v3284
        %v3286 = vpop.f32.mrb[0].mxu0
        %v3287 = vadd.f32 %v3094, %v3286
        %v3288 = vpop.f32.mrb[0].mxu0
        %v3289 = vadd.f32 %v3096, %v3288
        %3290 = vmatprep.mubr.bf16.mxu0 %v573
        %3291 = vmatmul.mubr.bf16.gmra.mrb[0].mxu0 %v572
        %v3292 = vpop.f32.mrb[0].mxu0
        %v3293 = vadd.f32 %v3100, %v3292
        %v3294 = vpop.f32.mrb[0].mxu0
        %v3295 = vadd.f32 %v3102, %v3294
        %v3296 = vpop.f32.mrb[0].mxu0
        %v3297 = vadd.f32 %v3104, %v3296
        %v3298 = vpop.f32.mrb[0].mxu0
        %v3299 = vadd.f32 %v3106, %v3298
        %3300 = vdwg.mxu0
        %3301 = vmatprep.subr.bf16.mxu0 %v1955
        %3302 = vmatpush1.bf16.msra.mxu0 %v1954
        %3303 = vmatprep.subr.bf16.mxu0 %v1961
        %3304 = vmatpush1.bf16.msra.mxu0 %v1960
        %3305 = vmatprep.subr.bf16.mxu0 %v1967
        %3306 = vmatpush1.bf16.msra.mxu0 %v1966
        %3307 = vmatprep.subr.bf16.mxu0 %v1973
        %3308 = vmatpush1.bf16.msra.mxu0 %v1972
        %3309 = vmatprep.subr.bf16.mxu0 %v1979
        %3310 = vmatpush1.bf16.msra.mxu0 %v1978
        %3311 = vmatprep.subr.bf16.mxu0 %v1985
        %3312 = vmatpush1.bf16.msra.mxu0 %v1984
        %3313 = vmatprep.subr.bf16.mxu0 %v1991
        %3314 = vmatpush1.bf16.msra.mxu0 %v1990
        %3315 = vmatprep.subr.bf16.mxu0 %v1997
        %3316 = vmatpush1.bf16.msra.mxu0 %v1996
        %3317 = vmatprep.subr.bf16.mxu0 %v2003
        %3318 = vmatpush1.bf16.msra.mxu0 %v2002
        %3319 = vmatprep.subr.bf16.mxu0 %v2009
        %3320 = vmatpush1.bf16.msra.mxu0 %v2008
        %3321 = vmatprep.subr.bf16.mxu0 %v2015
        %3322 = vmatpush1.bf16.msra.mxu0 %v2014
        %3323 = vmatprep.subr.bf16.mxu0 %v2021
        %3324 = vmatpush1.bf16.msra.mxu0 %v2020
        %3325 = vmatprep.subr.bf16.mxu0 %v2027
        %3326 = vmatpush1.bf16.msra.mxu0 %v2026
        %3327 = vmatprep.subr.bf16.mxu0 %v2033
        %3328 = vmatpush1.bf16.msra.mxu0 %v2032
        %3329 = vmatprep.subr.bf16.mxu0 %v2039
        %3330 = vmatpush1.bf16.msra.mxu0 %v2038
        %3331 = vmatprep.subr.bf16.mxu0 %v2045
        %3332 = vmatpush1.bf16.msra.mxu0 %v2044
        %3333 = vmatprep.mubr.bf16.mxu0 %v485
        %3334 = vmatmul.mubr.bf16.gmra.mrb[0].mxu0 %v484
        %v3335 = vpop.f32.mrb[0].mxu0
        %v3336 = vadd.f32 %v3143, %v3335
        %v3337 = vpop.f32.mrb[0].mxu0
        %v3338 = vadd.f32 %v3145, %v3337
        %v3339 = vpop.f32.mrb[0].mxu0
        %v3340 = vadd.f32 %v3147, %v3339
        %v3341 = vpop.f32.mrb[0].mxu0
        %v3342 = vadd.f32 %v3149, %v3341
        %3343 = vmatprep.mubr.bf16.mxu0 %v491
        %3344 = vmatmul.mubr.bf16.gmra.mrb[0].mxu0 %v490
        %v3345 = vpop.f32.mrb[0].mxu0
        %v3346 = vadd.f32 %v3153, %v3345
        %v3347 = vpop.f32.mrb[0].mxu0
        %v3348 = vadd.f32 %v3155, %v3347
        %v3349 = vpop.f32.mrb[0].mxu0
        %v3350 = vadd.f32 %v3157, %v3349
        %v3351 = vpop.f32.mrb[0].mxu0
        %v3352 = vadd.f32 %v3159, %v3351
        %3353 = vmatprep.mubr.bf16.mxu0 %v497
        %3354 = vmatmul.mubr.bf16.gmra.mrb[0].mxu0 %v496
        %v3355 = vpop.f32.mrb[0].mxu0
        %v3356 = vadd.f32 %v3163, %v3355
        %v3357 = vpop.f32.mrb[0].mxu0
        %v3358 = vadd.f32 %v3165, %v3357
        %v3359 = vpop.f32.mrb[0].mxu0
        %v3360 = vadd.f32 %v3167, %v3359
        %v3361 = vpop.f32.mrb[0].mxu0
        %v3362 = vadd.f32 %v3169, %v3361
        %3363 = vmatprep.mubr.bf16.mxu0 %v503
        %3364 = vmatmul.mubr.bf16.gmra.mrb[0].mxu0 %v502
        %v3365 = vpop.f32.mrb[0].mxu0
        %v3366 = vadd.f32 %v3173, %v3365
        %v3367 = vpop.f32.mrb[0].mxu0
        %v3368 = vadd.f32 %v3175, %v3367
        %v3369 = vpop.f32.mrb[0].mxu0
        %v3370 = vadd.f32 %v3177, %v3369
        %v3371 = vpop.f32.mrb[0].mxu0
        %v3372 = vadd.f32 %v3179, %v3371
        %3373 = vmatprep.mubr.bf16.mxu0 %v509
        %3374 = vmatmul.mubr.bf16.gmra.mrb[0].mxu0 %v508
        %v3375 = vpop.f32.mrb[0].mxu0
        %v3376 = vadd.f32 %v3183, %v3375
        %v3377 = vpop.f32.mrb[0].mxu0
        %v3378 = vadd.f32 %v3185, %v3377
        %v3379 = vpop.f32.mrb[0].mxu0
        %v3380 = vadd.f32 %v3187, %v3379
        %v3381 = vpop.f32.mrb[0].mxu0
        %v3382 = vadd.f32 %v3189, %v3381
        %3383 = vmatprep.mubr.bf16.mxu0 %v515
        %3384 = vmatmul.mubr.bf16.gmra.mrb[0].mxu0 %v514
        %v3385 = vpop.f32.mrb[0].mxu0
        %v3386 = vadd.f32 %v3193, %v3385
        %v3387 = vpop.f32.mrb[0].mxu0
        %v3388 = vadd.f32 %v3195, %v3387
        %v3389 = vpop.f32.mrb[0].mxu0
        %v3390 = vadd.f32 %v3197, %v3389
        %v3391 = vpop.f32.mrb[0].mxu0
        %v3392 = vadd.f32 %v3199, %v3391
        %3393 = vmatprep.mubr.bf16.mxu0 %v521
        %3394 = vmatmul.mubr.bf16.gmra.mrb[0].mxu0 %v520
        %v3395 = vpop.f32.mrb[0].mxu0
        %v3396 = vadd.f32 %v3203, %v3395
        %v3397 = vpop.f32.mrb[0].mxu0
        %v3398 = vadd.f32 %v3205, %v3397
        %v3399 = vpop.f32.mrb[0].mxu0
        %v3400 = vadd.f32 %v3207, %v3399
        %v3401 = vpop.f32.mrb[0].mxu0
        %v3402 = vadd.f32 %v3209, %v3401
        %3403 = vmatprep.mubr.bf16.mxu0 %v527
        %3404 = vmatmul.mubr.bf16.gmra.mrb[0].mxu0 %v526
        %v3405 = vpop.f32.mrb[0].mxu0
        %v3406 = vadd.f32 %v3213, %v3405
        %v3407 = vpop.f32.mrb[0].mxu0
        %v3408 = vadd.f32 %v3215, %v3407
        %v3409 = vpop.f32.mrb[0].mxu0
        %v3410 = vadd.f32 %v3217, %v3409
        %v3411 = vpop.f32.mrb[0].mxu0
        %v3412 = vadd.f32 %v3219, %v3411
        %3413 = vmatprep.mubr.bf16.mxu0 %v533
        %3414 = vmatmul.mubr.bf16.gmra.mrb[0].mxu0 %v532
        %v3415 = vpop.f32.mrb[0].mxu0
        %v3416 = vadd.f32 %v3223, %v3415
        %v3417 = vpop.f32.mrb[0].mxu0
        %v3418 = vadd.f32 %v3225, %v3417
        %v3419 = vpop.f32.mrb[0].mxu0
        %v3420 = vadd.f32 %v3227, %v3419
        %v3421 = vpop.f32.mrb[0].mxu0
        %v3422 = vadd.f32 %v3229, %v3421
        %3423 = vmatprep.mubr.bf16.mxu0 %v539
        %3424 = vmatmul.mubr.bf16.gmra.mrb[0].mxu0 %v538
        %v3425 = vpop.f32.mrb[0].mxu0
        %v3426 = vadd.f32 %v3233, %v3425
        %v3427 = vpop.f32.mrb[0].mxu0
        %v3428 = vadd.f32 %v3235, %v3427
        %v3429 = vpop.f32.mrb[0].mxu0
        %v3430 = vadd.f32 %v3237, %v3429
        %v3431 = vpop.f32.mrb[0].mxu0
        %v3432 = vadd.f32 %v3239, %v3431
        %3433 = vmatprep.mubr.bf16.mxu0 %v545
        %3434 = vmatmul.mubr.bf16.gmra.mrb[0].mxu0 %v544
        %v3435 = vpop.f32.mrb[0].mxu0
        %v3436 = vadd.f32 %v3243, %v3435
        %v3437 = vpop.f32.mrb[0].mxu0
        %v3438 = vadd.f32 %v3245, %v3437
        %v3439 = vpop.f32.mrb[0].mxu0
        %v3440 = vadd.f32 %v3247, %v3439
        %v3441 = vpop.f32.mrb[0].mxu0
        %v3442 = vadd.f32 %v3249, %v3441
        %3443 = vmatprep.mubr.bf16.mxu0 %v551
        %3444 = vmatmul.mubr.bf16.gmra.mrb[0].mxu0 %v550
        %v3445 = vpop.f32.mrb[0].mxu0
        %v3446 = vadd.f32 %v3253, %v3445
        %v3447 = vpop.f32.mrb[0].mxu0
        %v3448 = vadd.f32 %v3255, %v3447
        %v3449 = vpop.f32.mrb[0].mxu0
        %v3450 = vadd.f32 %v3257, %v3449
        %v3451 = vpop.f32.mrb[0].mxu0
        %v3452 = vadd.f32 %v3259, %v3451
        %3453 = vmatprep.mubr.bf16.mxu0 %v557
        %3454 = vmatmul.mubr.bf16.gmra.mrb[0].mxu0 %v556
        %v3455 = vpop.f32.mrb[0].mxu0
        %v3456 = vadd.f32 %v3263, %v3455
        %v3457 = vpop.f32.mrb[0].mxu0
        %v3458 = vadd.f32 %v3265, %v3457
        %v3459 = vpop.f32.mrb[0].mxu0
        %v3460 = vadd.f32 %v3267, %v3459
        %v3461 = vpop.f32.mrb[0].mxu0
        %v3462 = vadd.f32 %v3269, %v3461
        %3463 = vmatprep.mubr.bf16.mxu0 %v563
        %3464 = vmatmul.mubr.bf16.gmra.mrb[0].mxu0 %v562
        %v3465 = vpop.f32.mrb[0].mxu0
        %v3466 = vadd.f32 %v3273, %v3465
        %v3467 = vpop.f32.mrb[0].mxu0
        %v3468 = vadd.f32 %v3275, %v3467
        %v3469 = vpop.f32.mrb[0].mxu0
        %v3470 = vadd.f32 %v3277, %v3469
        %v3471 = vpop.f32.mrb[0].mxu0
        %v3472 = vadd.f32 %v3279, %v3471
        %3473 = vmatprep.mubr.bf16.mxu0 %v569
        %3474 = vmatmul.mubr.bf16.gmra.mrb[0].mxu0 %v568
        %v3475 = vpop.f32.mrb[0].mxu0
        %v3476 = vadd.f32 %v3283, %v3475
        %v3477 = vpop.f32.mrb[0].mxu0
        %v3478 = vadd.f32 %v3285, %v3477
        %v3479 = vpop.f32.mrb[0].mxu0
        %v3480 = vadd.f32 %v3287, %v3479
        %v3481 = vpop.f32.mrb[0].mxu0
        %v3482 = vadd.f32 %v3289, %v3481
        %3483 = vmatprep.mubr.bf16.mxu0 %v575
        %3484 = vmatmul.mubr.bf16.gmra.mrb[0].mxu0 %v574
        %v3485 = vpop.f32.mrb[0].mxu0
        %v3486 = vadd.f32 %v3293, %v3485
        %v3487 = vpop.f32.mrb[0].mxu0
        %v3488 = vadd.f32 %v3295, %v3487
        %v3489 = vpop.f32.mrb[0].mxu0
        %v3490 = vadd.f32 %v3297, %v3489
        %v3491 = vpop.f32.mrb[0].mxu0
        %v3492 = vadd.f32 %v3299, %v3491
        %3493 = vdwg.mxu0
        %3494 = vmatprep.subr.bf16.mxu0 %v1765
        %3495 = vmatpush1.bf16.msra.mxu0 %v1764
        %3496 = vmatprep.subr.bf16.mxu0 %v1771
        %3497 = vmatpush1.bf16.msra.mxu0 %v1770
        %3498 = vmatprep.subr.bf16.mxu0 %v1777
        %3499 = vmatpush1.bf16.msra.mxu0 %v1776
        %3500 = vmatprep.subr.bf16.mxu0 %v1783
        %3501 = vmatpush1.bf16.msra.mxu0 %v1782
        %3502 = vmatprep.subr.bf16.mxu0 %v1789
        %3503 = vmatpush1.bf16.msra.mxu0 %v1788
        %3504 = vmatprep.subr.bf16.mxu0 %v1795
        %3505 = vmatpush1.bf16.msra.mxu0 %v1794
        %3506 = vmatprep.subr.bf16.mxu0 %v1801
        %3507 = vmatpush1.bf16.msra.mxu0 %v1800
        %3508 = vmatprep.subr.bf16.mxu0 %v1807
        %3509 = vmatpush1.bf16.msra.mxu0 %v1806
        %3510 = vmatprep.subr.bf16.mxu0 %v1813
        %3511 = vmatpush1.bf16.msra.mxu0 %v1812
        %3512 = vmatprep.subr.bf16.mxu0 %v1819
        %3513 = vmatpush1.bf16.msra.mxu0 %v1818
        %3514 = vmatprep.subr.bf16.mxu0 %v1825
        %3515 = vmatpush1.bf16.msra.mxu0 %v1824
        %3516 = vmatprep.subr.bf16.mxu0 %v1831
        %3517 = vmatpush1.bf16.msra.mxu0 %v1830
        %3518 = vmatprep.subr.bf16.mxu0 %v1837
        %3519 = vmatpush1.bf16.msra.mxu0 %v1836
        %3520 = vmatprep.subr.bf16.mxu0 %v1843
        %3521 = vmatpush1.bf16.msra.mxu0 %v1842
        %3522 = vmatprep.subr.bf16.mxu0 %v1849
        %3523 = vmatpush1.bf16.msra.mxu0 %v1848
        %3524 = vmatprep.subr.bf16.mxu0 %v1855
        %3525 = vmatpush1.bf16.msra.mxu0 %v1854
        %3526 = vmatprep.mubr.bf16.mxu0 %v481
        %3527 = vmatmul.mubr.bf16.gmra.mrb[0].mxu0 %v480
        %v3528 = vpop.f32.mrb[0].mxu0
        %v3529 = vadd.f32 %v885, %v3528
        %v3530 = vpop.f32.mrb[0].mxu0
        %v3531 = vadd.f32 %v889, %v3530
        %v3532 = vpop.f32.mrb[0].mxu0
        %v3533 = vadd.f32 %v885, %v3532
        %v3534 = vpop.f32.mrb[0].mxu0
        %v3535 = vadd.f32 %v889, %v3534
        %3536 = vmatprep.mubr.bf16.mxu0 %v487
        %3537 = vmatmul.mubr.bf16.gmra.mrb[0].mxu0 %v486
        %v3538 = vpop.f32.mrb[0].mxu0
        %v3539 = vadd.f32 %v885, %v3538
        %v3540 = vpop.f32.mrb[0].mxu0
        %v3541 = vadd.f32 %v889, %v3540
        %v3542 = vpop.f32.mrb[0].mxu0
        %v3543 = vadd.f32 %v885, %v3542
        %v3544 = vpop.f32.mrb[0].mxu0
        %v3545 = vadd.f32 %v889, %v3544
        %3546 = vmatprep.mubr.bf16.mxu0 %v493
        %3547 = vmatmul.mubr.bf16.gmra.mrb[0].mxu0 %v492
        %v3548 = vpop.f32.mrb[0].mxu0
        %v3549 = vadd.f32 %v885, %v3548
        %v3550 = vpop.f32.mrb[0].mxu0
        %v3551 = vadd.f32 %v889, %v3550
        %v3552 = vpop.f32.mrb[0].mxu0
        %v3553 = vadd.f32 %v885, %v3552
        %v3554 = vpop.f32.mrb[0].mxu0
        %v3555 = vadd.f32 %v889, %v3554
        %3556 = vmatprep.mubr.bf16.mxu0 %v499
        %3557 = vmatmul.mubr.bf16.gmra.mrb[0].mxu0 %v498
        %v3558 = vpop.f32.mrb[0].mxu0
        %v3559 = vadd.f32 %v885, %v3558
        %v3560 = vpop.f32.mrb[0].mxu0
        %v3561 = vadd.f32 %v889, %v3560
        %v3562 = vpop.f32.mrb[0].mxu0
        %v3563 = vadd.f32 %v885, %v3562
        %v3564 = vpop.f32.mrb[0].mxu0
        %v3565 = vadd.f32 %v889, %v3564
        %3566 = vmatprep.mubr.bf16.mxu0 %v505
        %3567 = vmatmul.mubr.bf16.gmra.mrb[0].mxu0 %v504
        %v3568 = vpop.f32.mrb[0].mxu0
        %v3569 = vadd.f32 %v885, %v3568
        %v3570 = vpop.f32.mrb[0].mxu0
        %v3571 = vadd.f32 %v889, %v3570
        %v3572 = vpop.f32.mrb[0].mxu0
        %v3573 = vadd.f32 %v885, %v3572
        %v3574 = vpop.f32.mrb[0].mxu0
        %v3575 = vadd.f32 %v889, %v3574
        %3576 = vmatprep.mubr.bf16.mxu0 %v511
        %3577 = vmatmul.mubr.bf16.gmra.mrb[0].mxu0 %v510
        %v3578 = vpop.f32.mrb[0].mxu0
        %v3579 = vadd.f32 %v885, %v3578
        %v3580 = vpop.f32.mrb[0].mxu0
        %v3581 = vadd.f32 %v889, %v3580
        %v3582 = vpop.f32.mrb[0].mxu0
        %v3583 = vadd.f32 %v885, %v3582
        %v3584 = vpop.f32.mrb[0].mxu0
        %v3585 = vadd.f32 %v889, %v3584
        %3586 = vmatprep.mubr.bf16.mxu0 %v517
        %3587 = vmatmul.mubr.bf16.gmra.mrb[0].mxu0 %v516
        %v3588 = vpop.f32.mrb[0].mxu0
        %v3589 = vadd.f32 %v885, %v3588
        %v3590 = vpop.f32.mrb[0].mxu0
        %v3591 = vadd.f32 %v889, %v3590
        %v3592 = vpop.f32.mrb[0].mxu0
        %v3593 = vadd.f32 %v885, %v3592
        %v3594 = vpop.f32.mrb[0].mxu0
        %v3595 = vadd.f32 %v889, %v3594
        %3596 = vmatprep.mubr.bf16.mxu0 %v523
        %3597 = vmatmul.mubr.bf16.gmra.mrb[0].mxu0 %v522
        %v3598 = vpop.f32.mrb[0].mxu0
        %v3599 = vadd.f32 %v885, %v3598
        %v3600 = vpop.f32.mrb[0].mxu0
        %v3601 = vadd.f32 %v889, %v3600
        %v3602 = vpop.f32.mrb[0].mxu0
        %v3603 = vadd.f32 %v885, %v3602
        %v3604 = vpop.f32.mrb[0].mxu0
        %v3605 = vadd.f32 %v889, %v3604
        %3606 = vmatprep.mubr.bf16.mxu0 %v529
        %3607 = vmatmul.mubr.bf16.gmra.mrb[0].mxu0 %v528
        %v3608 = vpop.f32.mrb[0].mxu0
        %v3609 = vadd.f32 %v885, %v3608
        %v3610 = vpop.f32.mrb[0].mxu0
        %v3611 = vadd.f32 %v889, %v3610
        %v3612 = vpop.f32.mrb[0].mxu0
        %v3613 = vadd.f32 %v885, %v3612
        %v3614 = vpop.f32.mrb[0].mxu0
        %v3615 = vadd.f32 %v889, %v3614
        %3616 = vmatprep.mubr.bf16.mxu0 %v535
        %3617 = vmatmul.mubr.bf16.gmra.mrb[0].mxu0 %v534
        %v3618 = vpop.f32.mrb[0].mxu0
        %v3619 = vadd.f32 %v885, %v3618
        %v3620 = vpop.f32.mrb[0].mxu0
        %v3621 = vadd.f32 %v889, %v3620
        %v3622 = vpop.f32.mrb[0].mxu0
        %v3623 = vadd.f32 %v885, %v3622
        %v3624 = vpop.f32.mrb[0].mxu0
        %v3625 = vadd.f32 %v889, %v3624
        %3626 = vmatprep.mubr.bf16.mxu0 %v541
        %3627 = vmatmul.mubr.bf16.gmra.mrb[0].mxu0 %v540
        %v3628 = vpop.f32.mrb[0].mxu0
        %v3629 = vadd.f32 %v885, %v3628
        %v3630 = vpop.f32.mrb[0].mxu0
        %v3631 = vadd.f32 %v889, %v3630
        %v3632 = vpop.f32.mrb[0].mxu0
        %v3633 = vadd.f32 %v885, %v3632
        %v3634 = vpop.f32.mrb[0].mxu0
        %v3635 = vadd.f32 %v889, %v3634
        %3636 = vmatprep.mubr.bf16.mxu0 %v547
        %3637 = vmatmul.mubr.bf16.gmra.mrb[0].mxu0 %v546
        %v3638 = vpop.f32.mrb[0].mxu0
        %v3639 = vadd.f32 %v885, %v3638
        %v3640 = vpop.f32.mrb[0].mxu0
        %v3641 = vadd.f32 %v889, %v3640
        %v3642 = vpop.f32.mrb[0].mxu0
        %v3643 = vadd.f32 %v885, %v3642
        %v3644 = vpop.f32.mrb[0].mxu0
        %v3645 = vadd.f32 %v889, %v3644
        %3646 = vmatprep.mubr.bf16.mxu0 %v553
        %3647 = vmatmul.mubr.bf16.gmra.mrb[0].mxu0 %v552
        %v3648 = vpop.f32.mrb[0].mxu0
        %v3649 = vadd.f32 %v885, %v3648
        %v3650 = vpop.f32.mrb[0].mxu0
        %v3651 = vadd.f32 %v889, %v3650
        %v3652 = vpop.f32.mrb[0].mxu0
        %v3653 = vadd.f32 %v885, %v3652
        %v3654 = vpop.f32.mrb[0].mxu0
        %v3655 = vadd.f32 %v889, %v3654
        %3656 = vmatprep.mubr.bf16.mxu0 %v559
        %3657 = vmatmul.mubr.bf16.gmra.mrb[0].mxu0 %v558
        %v3658 = vpop.f32.mrb[0].mxu0
        %v3659 = vadd.f32 %v885, %v3658
        %v3660 = vpop.f32.mrb[0].mxu0
        %v3661 = vadd.f32 %v889, %v3660
        %v3662 = vpop.f32.mrb[0].mxu0
        %v3663 = vadd.f32 %v885, %v3662
        %v3664 = vpop.f32.mrb[0].mxu0
        %v3665 = vadd.f32 %v889, %v3664
        %3666 = vmatprep.mubr.bf16.mxu0 %v565
        %3667 = vmatmul.mubr.bf16.gmra.mrb[0].mxu0 %v564
        %v3668 = vpop.f32.mrb[0].mxu0
        %v3669 = vadd.f32 %v885, %v3668
        %v3670 = vpop.f32.mrb[0].mxu0
        %v3671 = vadd.f32 %v889, %v3670
        %v3672 = vpop.f32.mrb[0].mxu0
        %v3673 = vadd.f32 %v885, %v3672
        %v3674 = vpop.f32.mrb[0].mxu0
        %v3675 = vadd.f32 %v889, %v3674
        %3676 = vmatprep.mubr.bf16.mxu0 %v571
        %3677 = vmatmul.mubr.bf16.gmra.mrb[0].mxu0 %v570
        %v3678 = vpop.f32.mrb[0].mxu0
        %v3679 = vadd.f32 %v885, %v3678
        %v3680 = vpop.f32.mrb[0].mxu0
        %v3681 = vadd.f32 %v889, %v3680
        %v3682 = vpop.f32.mrb[0].mxu0
        %v3683 = vadd.f32 %v885, %v3682
        %v3684 = vpop.f32.mrb[0].mxu0
        %v3685 = vadd.f32 %v889, %v3684
        %3686 = vdwg.mxu0
        %3687 = vmatprep.subr.bf16.mxu0 %v1861
        %3688 = vmatpush1.bf16.msra.mxu0 %v1860
        %3689 = vmatprep.subr.bf16.mxu0 %v1867
        %3690 = vmatpush1.bf16.msra.mxu0 %v1866
        %3691 = vmatprep.subr.bf16.mxu0 %v1873
        %3692 = vmatpush1.bf16.msra.mxu0 %v1872
        %3693 = vmatprep.subr.bf16.mxu0 %v1879
        %3694 = vmatpush1.bf16.msra.mxu0 %v1878
        %3695 = vmatprep.subr.bf16.mxu0 %v1885
        %3696 = vmatpush1.bf16.msra.mxu0 %v1884
        %3697 = vmatprep.subr.bf16.mxu0 %v1891
        %3698 = vmatpush1.bf16.msra.mxu0 %v1890
        %3699 = vmatprep.subr.bf16.mxu0 %v1897
        %3700 = vmatpush1.bf16.msra.mxu0 %v1896
        %3701 = vmatprep.subr.bf16.mxu0 %v1903
        %3702 = vmatpush1.bf16.msra.mxu0 %v1902
        %3703 = vmatprep.subr.bf16.mxu0 %v1909
        %3704 = vmatpush1.bf16.msra.mxu0 %v1908
        %3705 = vmatprep.subr.bf16.mxu0 %v1915
        %3706 = vmatpush1.bf16.msra.mxu0 %v1914
        %3707 = vmatprep.subr.bf16.mxu0 %v1921
        %3708 = vmatpush1.bf16.msra.mxu0 %v1920
        %3709 = vmatprep.subr.bf16.mxu0 %v1927
        %3710 = vmatpush1.bf16.msra.mxu0 %v1926
        %3711 = vmatprep.subr.bf16.mxu0 %v1933
        %3712 = vmatpush1.bf16.msra.mxu0 %v1932
        %3713 = vmatprep.subr.bf16.mxu0 %v1939
        %3714 = vmatpush1.bf16.msra.mxu0 %v1938
        %3715 = vmatprep.subr.bf16.mxu0 %v1945
        %3716 = vmatpush1.bf16.msra.mxu0 %v1944
        %3717 = vmatprep.subr.bf16.mxu0 %v1951
        %3718 = vmatpush1.bf16.msra.mxu0 %v1950
        %3719 = vmatprep.mubr.bf16.mxu0 %v483
        %3720 = vmatmul.mubr.bf16.gmra.mrb[0].mxu0 %v482
        %v3721 = vpop.f32.mrb[0].mxu0
        %v3722 = vadd.f32 %v3529, %v3721
        %v3723 = vpop.f32.mrb[0].mxu0
        %v3724 = vadd.f32 %v3531, %v3723
        %v3725 = vpop.f32.mrb[0].mxu0
        %v3726 = vadd.f32 %v3533, %v3725
        %v3727 = vpop.f32.mrb[0].mxu0
        %v3728 = vadd.f32 %v3535, %v3727
        %3729 = vmatprep.mubr.bf16.mxu0 %v489
        %3730 = vmatmul.mubr.bf16.gmra.mrb[0].mxu0 %v488
        %v3731 = vpop.f32.mrb[0].mxu0
        %v3732 = vadd.f32 %v3539, %v3731
        %v3733 = vpop.f32.mrb[0].mxu0
        %v3734 = vadd.f32 %v3541, %v3733
        %v3735 = vpop.f32.mrb[0].mxu0
        %v3736 = vadd.f32 %v3543, %v3735
        %v3737 = vpop.f32.mrb[0].mxu0
        %v3738 = vadd.f32 %v3545, %v3737
        %3739 = vmatprep.mubr.bf16.mxu0 %v495
        %3740 = vmatmul.mubr.bf16.gmra.mrb[0].mxu0 %v494
        %v3741 = vpop.f32.mrb[0].mxu0
        %v3742 = vadd.f32 %v3549, %v3741
        %v3743 = vpop.f32.mrb[0].mxu0
        %v3744 = vadd.f32 %v3551, %v3743
        %v3745 = vpop.f32.mrb[0].mxu0
        %v3746 = vadd.f32 %v3553, %v3745
        %v3747 = vpop.f32.mrb[0].mxu0
        %v3748 = vadd.f32 %v3555, %v3747
        %3749 = vmatprep.mubr.bf16.mxu0 %v501
        %3750 = vmatmul.mubr.bf16.gmra.mrb[0].mxu0 %v500
        %v3751 = vpop.f32.mrb[0].mxu0
        %v3752 = vadd.f32 %v3559, %v3751
        %v3753 = vpop.f32.mrb[0].mxu0
        %v3754 = vadd.f32 %v3561, %v3753
        %v3755 = vpop.f32.mrb[0].mxu0
        %v3756 = vadd.f32 %v3563, %v3755
        %v3757 = vpop.f32.mrb[0].mxu0
        %v3758 = vadd.f32 %v3565, %v3757
        %3759 = vmatprep.mubr.bf16.mxu0 %v507
        %3760 = vmatmul.mubr.bf16.gmra.mrb[0].mxu0 %v506
        %v3761 = vpop.f32.mrb[0].mxu0
        %v3762 = vadd.f32 %v3569, %v3761
        %v3763 = vpop.f32.mrb[0].mxu0
        %v3764 = vadd.f32 %v3571, %v3763
        %v3765 = vpop.f32.mrb[0].mxu0
        %v3766 = vadd.f32 %v3573, %v3765
        %v3767 = vpop.f32.mrb[0].mxu0
        %v3768 = vadd.f32 %v3575, %v3767
        %3769 = vmatprep.mubr.bf16.mxu0 %v513
        %3770 = vmatmul.mubr.bf16.gmra.mrb[0].mxu0 %v512
        %v3771 = vpop.f32.mrb[0].mxu0
        %v3772 = vadd.f32 %v3579, %v3771
        %v3773 = vpop.f32.mrb[0].mxu0
        %v3774 = vadd.f32 %v3581, %v3773
        %v3775 = vpop.f32.mrb[0].mxu0
        %v3776 = vadd.f32 %v3583, %v3775
        %v3777 = vpop.f32.mrb[0].mxu0
        %v3778 = vadd.f32 %v3585, %v3777
        %3779 = vmatprep.mubr.bf16.mxu0 %v519
        %3780 = vmatmul.mubr.bf16.gmra.mrb[0].mxu0 %v518
        %v3781 = vpop.f32.mrb[0].mxu0
        %v3782 = vadd.f32 %v3589, %v3781
        %v3783 = vpop.f32.mrb[0].mxu0
        %v3784 = vadd.f32 %v3591, %v3783
        %v3785 = vpop.f32.mrb[0].mxu0
        %v3786 = vadd.f32 %v3593, %v3785
        %v3787 = vpop.f32.mrb[0].mxu0
        %v3788 = vadd.f32 %v3595, %v3787
        %3789 = vmatprep.mubr.bf16.mxu0 %v525
        %3790 = vmatmul.mubr.bf16.gmra.mrb[0].mxu0 %v524
        %v3791 = vpop.f32.mrb[0].mxu0
        %v3792 = vadd.f32 %v3599, %v3791
        %v3793 = vpop.f32.mrb[0].mxu0
        %v3794 = vadd.f32 %v3601, %v3793
        %v3795 = vpop.f32.mrb[0].mxu0
        %v3796 = vadd.f32 %v3603, %v3795
        %v3797 = vpop.f32.mrb[0].mxu0
        %v3798 = vadd.f32 %v3605, %v3797
        %3799 = vmatprep.mubr.bf16.mxu0 %v531
        %3800 = vmatmul.mubr.bf16.gmra.mrb[0].mxu0 %v530
        %v3801 = vpop.f32.mrb[0].mxu0
        %v3802 = vadd.f32 %v3609, %v3801
        %v3803 = vpop.f32.mrb[0].mxu0
        %v3804 = vadd.f32 %v3611, %v3803
        %v3805 = vpop.f32.mrb[0].mxu0
        %v3806 = vadd.f32 %v3613, %v3805
        %v3807 = vpop.f32.mrb[0].mxu0
        %v3808 = vadd.f32 %v3615, %v3807
        %3809 = vmatprep.mubr.bf16.mxu0 %v537
        %3810 = vmatmul.mubr.bf16.gmra.mrb[0].mxu0 %v536
        %v3811 = vpop.f32.mrb[0].mxu0
        %v3812 = vadd.f32 %v3619, %v3811
        %v3813 = vpop.f32.mrb[0].mxu0
        %v3814 = vadd.f32 %v3621, %v3813
        %v3815 = vpop.f32.mrb[0].mxu0
        %v3816 = vadd.f32 %v3623, %v3815
        %v3817 = vpop.f32.mrb[0].mxu0
        %v3818 = vadd.f32 %v3625, %v3817
        %3819 = vmatprep.mubr.bf16.mxu0 %v543
        %3820 = vmatmul.mubr.bf16.gmra.mrb[0].mxu0 %v542
        %v3821 = vpop.f32.mrb[0].mxu0
        %v3822 = vadd.f32 %v3629, %v3821
        %v3823 = vpop.f32.mrb[0].mxu0
        %v3824 = vadd.f32 %v3631, %v3823
        %v3825 = vpop.f32.mrb[0].mxu0
        %v3826 = vadd.f32 %v3633, %v3825
        %v3827 = vpop.f32.mrb[0].mxu0
        %v3828 = vadd.f32 %v3635, %v3827
        %3829 = vmatprep.mubr.bf16.mxu0 %v549
        %3830 = vmatmul.mubr.bf16.gmra.mrb[0].mxu0 %v548
        %v3831 = vpop.f32.mrb[0].mxu0
        %v3832 = vadd.f32 %v3639, %v3831
        %v3833 = vpop.f32.mrb[0].mxu0
        %v3834 = vadd.f32 %v3641, %v3833
        %v3835 = vpop.f32.mrb[0].mxu0
        %v3836 = vadd.f32 %v3643, %v3835
        %v3837 = vpop.f32.mrb[0].mxu0
        %v3838 = vadd.f32 %v3645, %v3837
        %3839 = vmatprep.mubr.bf16.mxu0 %v555
        %3840 = vmatmul.mubr.bf16.gmra.mrb[0].mxu0 %v554
        %v3841 = vpop.f32.mrb[0].mxu0
        %v3842 = vadd.f32 %v3649, %v3841
        %v3843 = vpop.f32.mrb[0].mxu0
        %v3844 = vadd.f32 %v3651, %v3843
        %v3845 = vpop.f32.mrb[0].mxu0
        %v3846 = vadd.f32 %v3653, %v3845
        %v3847 = vpop.f32.mrb[0].mxu0
        %v3848 = vadd.f32 %v3655, %v3847
        %3849 = vmatprep.mubr.bf16.mxu0 %v561
        %3850 = vmatmul.mubr.bf16.gmra.mrb[0].mxu0 %v560
        %v3851 = vpop.f32.mrb[0].mxu0
        %v3852 = vadd.f32 %v3659, %v3851
        %v3853 = vpop.f32.mrb[0].mxu0
        %v3854 = vadd.f32 %v3661, %v3853
        %v3855 = vpop.f32.mrb[0].mxu0
        %v3856 = vadd.f32 %v3663, %v3855
        %v3857 = vpop.f32.mrb[0].mxu0
        %v3858 = vadd.f32 %v3665, %v3857
        %3859 = vmatprep.mubr.bf16.mxu0 %v567
        %3860 = vmatmul.mubr.bf16.gmra.mrb[0].mxu0 %v566
        %v3861 = vpop.f32.mrb[0].mxu0
        %v3862 = vadd.f32 %v3669, %v3861
        %v3863 = vpop.f32.mrb[0].mxu0
        %v3864 = vadd.f32 %v3671, %v3863
        %v3865 = vpop.f32.mrb[0].mxu0
        %v3866 = vadd.f32 %v3673, %v3865
        %v3867 = vpop.f32.mrb[0].mxu0
        %v3868 = vadd.f32 %v3675, %v3867
        %3869 = vmatprep.mubr.bf16.mxu0 %v573
        %3870 = vmatmul.mubr.bf16.gmra.mrb[0].mxu0 %v572
        %v3871 = vpop.f32.mrb[0].mxu0
        %v3872 = vadd.f32 %v3679, %v3871
        %v3873 = vpop.f32.mrb[0].mxu0
        %v3874 = vadd.f32 %v3681, %v3873
        %v3875 = vpop.f32.mrb[0].mxu0
        %v3876 = vadd.f32 %v3683, %v3875
        %v3877 = vpop.f32.mrb[0].mxu0
        %v3878 = vadd.f32 %v3685, %v3877
        %3879 = vdwg.mxu0
        %3880 = vmatprep.subr.bf16.mxu0 %v1957
        %3881 = vmatpush1.bf16.msra.mxu0 %v1956
        %3882 = vmatprep.subr.bf16.mxu0 %v1963
        %3883 = vmatpush1.bf16.msra.mxu0 %v1962
        %3884 = vmatprep.subr.bf16.mxu0 %v1969
        %3885 = vmatpush1.bf16.msra.mxu0 %v1968
        %3886 = vmatprep.subr.bf16.mxu0 %v1975
        %3887 = vmatpush1.bf16.msra.mxu0 %v1974
        %3888 = vmatprep.subr.bf16.mxu0 %v1981
        %3889 = vmatpush1.bf16.msra.mxu0 %v1980
        %3890 = vmatprep.subr.bf16.mxu0 %v1987
        %3891 = vmatpush1.bf16.msra.mxu0 %v1986
        %3892 = vmatprep.subr.bf16.mxu0 %v1993
        %3893 = vmatpush1.bf16.msra.mxu0 %v1992
        %3894 = vmatprep.subr.bf16.mxu0 %v1999
        %3895 = vmatpush1.bf16.msra.mxu0 %v1998
        %3896 = vmatprep.subr.bf16.mxu0 %v2005
        %3897 = vmatpush1.bf16.msra.mxu0 %v2004
        %3898 = vmatprep.subr.bf16.mxu0 %v2011
        %3899 = vmatpush1.bf16.msra.mxu0 %v2010
        %3900 = vmatprep.subr.bf16.mxu0 %v2017
        %3901 = vmatpush1.bf16.msra.mxu0 %v2016
        %3902 = vmatprep.subr.bf16.mxu0 %v2023
        %3903 = vmatpush1.bf16.msra.mxu0 %v2022
        %3904 = vmatprep.subr.bf16.mxu0 %v2029
        %3905 = vmatpush1.bf16.msra.mxu0 %v2028
        %3906 = vmatprep.subr.bf16.mxu0 %v2035
        %3907 = vmatpush1.bf16.msra.mxu0 %v2034
        %3908 = vmatprep.subr.bf16.mxu0 %v2041
        %3909 = vmatpush1.bf16.msra.mxu0 %v2040
        %3910 = vmatprep.subr.bf16.mxu0 %v2047
        %3911 = vmatpush1.bf16.msra.mxu0 %v2046
        %3912 = vmatprep.mubr.bf16.mxu0 %v485
        %3913 = vmatmul.mubr.bf16.gmra.mrb[0].mxu0 %v484
        %v3914 = vpop.f32.mrb[0].mxu0
        %v3915 = vadd.f32 %v3722, %v3914
        %v3916 = vpop.f32.mrb[0].mxu0
        %v3917 = vadd.f32 %v3724, %v3916
        %v3918 = vpop.f32.mrb[0].mxu0
        %v3919 = vadd.f32 %v3726, %v3918
        %v3920 = vpop.f32.mrb[0].mxu0
        %v3921 = vadd.f32 %v3728, %v3920
        %3922 = vmatprep.mubr.bf16.mxu0 %v491
        %3923 = vmatmul.mubr.bf16.gmra.mrb[0].mxu0 %v490
        %v3924 = vpop.f32.mrb[0].mxu0
        %v3925 = vadd.f32 %v3732, %v3924
        %v3926 = vpop.f32.mrb[0].mxu0
        %v3927 = vadd.f32 %v3734, %v3926
        %v3928 = vpop.f32.mrb[0].mxu0
        %v3929 = vadd.f32 %v3736, %v3928
        %v3930 = vpop.f32.mrb[0].mxu0
        %v3931 = vadd.f32 %v3738, %v3930
        %3932 = vmatprep.mubr.bf16.mxu0 %v497
        %3933 = vmatmul.mubr.bf16.gmra.mrb[0].mxu0 %v496
        %v3934 = vpop.f32.mrb[0].mxu0
        %v3935 = vadd.f32 %v3742, %v3934
        %v3936 = vpop.f32.mrb[0].mxu0
        %v3937 = vadd.f32 %v3744, %v3936
        %v3938 = vpop.f32.mrb[0].mxu0
        %v3939 = vadd.f32 %v3746, %v3938
        %v3940 = vpop.f32.mrb[0].mxu0
        %v3941 = vadd.f32 %v3748, %v3940
        %3942 = vmatprep.mubr.bf16.mxu0 %v503
        %3943 = vmatmul.mubr.bf16.gmra.mrb[0].mxu0 %v502
        %v3944 = vpop.f32.mrb[0].mxu0
        %v3945 = vadd.f32 %v3752, %v3944
        %v3946 = vpop.f32.mrb[0].mxu0
        %v3947 = vadd.f32 %v3754, %v3946
        %v3948 = vpop.f32.mrb[0].mxu0
        %v3949 = vadd.f32 %v3756, %v3948
        %v3950 = vpop.f32.mrb[0].mxu0
        %v3951 = vadd.f32 %v3758, %v3950
        %3952 = vmatprep.mubr.bf16.mxu0 %v509
        %3953 = vmatmul.mubr.bf16.gmra.mrb[0].mxu0 %v508
        %v3954 = vpop.f32.mrb[0].mxu0
        %v3955 = vadd.f32 %v3762, %v3954
        %v3956 = vpop.f32.mrb[0].mxu0
        %v3957 = vadd.f32 %v3764, %v3956
        %v3958 = vpop.f32.mrb[0].mxu0
        %v3959 = vadd.f32 %v3766, %v3958
        %v3960 = vpop.f32.mrb[0].mxu0
        %v3961 = vadd.f32 %v3768, %v3960
        %3962 = vmatprep.mubr.bf16.mxu0 %v515
        %3963 = vmatmul.mubr.bf16.gmra.mrb[0].mxu0 %v514
        %v3964 = vpop.f32.mrb[0].mxu0
        %v3965 = vadd.f32 %v3772, %v3964
        %v3966 = vpop.f32.mrb[0].mxu0
        %v3967 = vadd.f32 %v3774, %v3966
        %v3968 = vpop.f32.mrb[0].mxu0
        %v3969 = vadd.f32 %v3776, %v3968
        %v3970 = vpop.f32.mrb[0].mxu0
        %v3971 = vadd.f32 %v3778, %v3970
        %3972 = vmatprep.mubr.bf16.mxu0 %v521
        %3973 = vmatmul.mubr.bf16.gmra.mrb[0].mxu0 %v520
        %v3974 = vpop.f32.mrb[0].mxu0
        %v3975 = vadd.f32 %v3782, %v3974
        %v3976 = vpop.f32.mrb[0].mxu0
        %v3977 = vadd.f32 %v3784, %v3976
        %v3978 = vpop.f32.mrb[0].mxu0
        %v3979 = vadd.f32 %v3786, %v3978
        %v3980 = vpop.f32.mrb[0].mxu0
        %v3981 = vadd.f32 %v3788, %v3980
        %3982 = vmatprep.mubr.bf16.mxu0 %v527
        %3983 = vmatmul.mubr.bf16.gmra.mrb[0].mxu0 %v526
        %v3984 = vpop.f32.mrb[0].mxu0
        %v3985 = vadd.f32 %v3792, %v3984
        %v3986 = vpop.f32.mrb[0].mxu0
        %v3987 = vadd.f32 %v3794, %v3986
        %v3988 = vpop.f32.mrb[0].mxu0
        %v3989 = vadd.f32 %v3796, %v3988
        %v3990 = vpop.f32.mrb[0].mxu0
        %v3991 = vadd.f32 %v3798, %v3990
        %3992 = vmatprep.mubr.bf16.mxu0 %v533
        %3993 = vmatmul.mubr.bf16.gmra.mrb[0].mxu0 %v532
        %v3994 = vpop.f32.mrb[0].mxu0
        %v3995 = vadd.f32 %v3802, %v3994
        %v3996 = vpop.f32.mrb[0].mxu0
        %v3997 = vadd.f32 %v3804, %v3996
        %v3998 = vpop.f32.mrb[0].mxu0
        %v3999 = vadd.f32 %v3806, %v3998
        %v4000 = vpop.f32.mrb[0].mxu0
        %v4001 = vadd.f32 %v3808, %v4000
        %4002 = vmatprep.mubr.bf16.mxu0 %v539
        %4003 = vmatmul.mubr.bf16.gmra.mrb[0].mxu0 %v538
        %v4004 = vpop.f32.mrb[0].mxu0
        %v4005 = vadd.f32 %v3812, %v4004
        %v4006 = vpop.f32.mrb[0].mxu0
        %v4007 = vadd.f32 %v3814, %v4006
        %v4008 = vpop.f32.mrb[0].mxu0
        %v4009 = vadd.f32 %v3816, %v4008
        %v4010 = vpop.f32.mrb[0].mxu0
        %v4011 = vadd.f32 %v3818, %v4010
        %4012 = vmatprep.mubr.bf16.mxu0 %v545
        %4013 = vmatmul.mubr.bf16.gmra.mrb[0].mxu0 %v544
        %v4014 = vpop.f32.mrb[0].mxu0
        %v4015 = vadd.f32 %v3822, %v4014
        %v4016 = vpop.f32.mrb[0].mxu0
        %v4017 = vadd.f32 %v3824, %v4016
        %v4018 = vpop.f32.mrb[0].mxu0
        %v4019 = vadd.f32 %v3826, %v4018
        %v4020 = vpop.f32.mrb[0].mxu0
        %v4021 = vadd.f32 %v3828, %v4020
        %4022 = vmatprep.mubr.bf16.mxu0 %v551
        %4023 = vmatmul.mubr.bf16.gmra.mrb[0].mxu0 %v550
        %v4024 = vpop.f32.mrb[0].mxu0
        %v4025 = vadd.f32 %v3832, %v4024
        %v4026 = vpop.f32.mrb[0].mxu0
        %v4027 = vadd.f32 %v3834, %v4026
        %v4028 = vpop.f32.mrb[0].mxu0
        %v4029 = vadd.f32 %v3836, %v4028
        %v4030 = vpop.f32.mrb[0].mxu0
        %v4031 = vadd.f32 %v3838, %v4030
        %4032 = vmatprep.mubr.bf16.mxu0 %v557
        %4033 = vmatmul.mubr.bf16.gmra.mrb[0].mxu0 %v556
        %v4034 = vpop.f32.mrb[0].mxu0
        %v4035 = vadd.f32 %v3842, %v4034
        %v4036 = vpop.f32.mrb[0].mxu0
        %v4037 = vadd.f32 %v3844, %v4036
        %v4038 = vpop.f32.mrb[0].mxu0
        %v4039 = vadd.f32 %v3846, %v4038
        %v4040 = vpop.f32.mrb[0].mxu0
        %v4041 = vadd.f32 %v3848, %v4040
        %4042 = vmatprep.mubr.bf16.mxu0 %v563
        %4043 = vmatmul.mubr.bf16.gmra.mrb[0].mxu0 %v562
        %v4044 = vpop.f32.mrb[0].mxu0
        %v4045 = vadd.f32 %v3852, %v4044
        %v4046 = vpop.f32.mrb[0].mxu0
        %v4047 = vadd.f32 %v3854, %v4046
        %v4048 = vpop.f32.mrb[0].mxu0
        %v4049 = vadd.f32 %v3856, %v4048
        %v4050 = vpop.f32.mrb[0].mxu0
        %v4051 = vadd.f32 %v3858, %v4050
        %4052 = vmatprep.mubr.bf16.mxu0 %v569
        %4053 = vmatmul.mubr.bf16.gmra.mrb[0].mxu0 %v568
        %v4054 = vpop.f32.mrb[0].mxu0
        %v4055 = vadd.f32 %v3862, %v4054
        %v4056 = vpop.f32.mrb[0].mxu0
        %v4057 = vadd.f32 %v3864, %v4056
        %v4058 = vpop.f32.mrb[0].mxu0
        %v4059 = vadd.f32 %v3866, %v4058
        %v4060 = vpop.f32.mrb[0].mxu0
        %v4061 = vadd.f32 %v3868, %v4060
        %4062 = vmatprep.mubr.bf16.mxu0 %v575
        %4063 = vmatmul.mubr.bf16.gmra.mrb[0].mxu0 %v574
        %v4064 = vpop.f32.mrb[0].mxu0
        %v4065 = vadd.f32 %v3872, %v4064
        %v4066 = vpop.f32.mrb[0].mxu0
        %v4067 = vadd.f32 %v3874, %v4066
        %v4068 = vpop.f32.mrb[0].mxu0
        %v4069 = vadd.f32 %v3876, %v4068
        %v4070 = vpop.f32.mrb[0].mxu0
        %v4071 = vadd.f32 %v3878, %v4070
        %4072 = vdwg.mxu0
        %v4073 = vtanh.pop %v2757
        %v4074 = vtanh.pop %v2759
        %v4075 = vtanh.pop %v3336
        %v4076 = vtanh.pop %v3338
        %v4077 = vtanh.pop %v3915
        %v4078 = vtanh.pop %v3917
        %v4079 = vtanh.pop %v2761
        %v4080 = vtanh.pop %v2763
        %v4081 = vtanh.pop %v3340
        %v4082 = vtanh.pop %v3342
        %v4083 = vtanh.pop %v3919
        %v4084 = vtanh.pop %v3921
        %v4085 = vtanh.pop %v2767
        %v4086 = vtanh.pop %v2769
        %v4087 = vtanh.pop %v3346
        %v4088 = vtanh.pop %v3348
        %v4089 = vtanh.pop %v3925
        %v4090 = vtanh.pop %v3927
        %v4091 = vtanh.pop %v2771
        %v4092 = vtanh.pop %v2773
        %v4093 = vtanh.pop %v3350
        %v4094 = vtanh.pop %v3352
        %v4095 = vtanh.pop %v3929
        %v4096 = vtanh.pop %v3931
        %v4097 = vtanh.pop %v2777
        %v4098 = vtanh.pop %v2779
        %v4099 = vtanh.pop %v3356
        %v4100 = vtanh.pop %v3358
        %v4101 = vtanh.pop %v3935
        %v4102 = vtanh.pop %v3937
        %v4103 = vtanh.pop %v2781
        %v4104 = vtanh.pop %v2783
        %v4105 = vtanh.pop %v3360
        %v4106 = vtanh.pop %v3362
        %v4107 = vtanh.pop %v3939
        %v4108 = vtanh.pop %v3941
        %v4109 = vtanh.pop %v2787
        %v4110 = vtanh.pop %v2789
        %v4111 = vtanh.pop %v3366
        %v4112 = vtanh.pop %v3368
        %v4113 = vtanh.pop %v3945
        %v4114 = vtanh.pop %v3947
        %v4115 = vtanh.pop %v2791
        %v4116 = vtanh.pop %v2793
        %v4117 = vtanh.pop %v3370
        %v4118 = vtanh.pop %v3372
        %v4119 = vtanh.pop %v3949
        %v4120 = vtanh.pop %v3951
        %v4121 = vtanh.pop %v2797
        %v4122 = vtanh.pop %v2799
        %v4123 = vtanh.pop %v3376
        %v4124 = vtanh.pop %v3378
        %v4125 = vtanh.pop %v3955
        %v4126 = vtanh.pop %v3957
        %v4127 = vtanh.pop %v2801
        %v4128 = vtanh.pop %v2803
        %v4129 = vtanh.pop %v3380
        %v4130 = vtanh.pop %v3382
        %v4131 = vtanh.pop %v3959
        %v4132 = vtanh.pop %v3961
        %v4133 = vtanh.pop %v2807
        %v4134 = vtanh.pop %v2809
        %v4135 = vtanh.pop %v3386
        %v4136 = vtanh.pop %v3388
        %v4137 = vtanh.pop %v3965
        %v4138 = vtanh.pop %v3967
        %v4139 = vtanh.pop %v2811
        %v4140 = vtanh.pop %v2813
        %v4141 = vtanh.pop %v3390
        %v4142 = vtanh.pop %v3392
        %v4143 = vtanh.pop %v3969
        %v4144 = vtanh.pop %v3971
        %v4145 = vtanh.pop %v2817
        %v4146 = vtanh.pop %v2819
        %v4147 = vtanh.pop %v3396
        %v4148 = vtanh.pop %v3398
        %v4149 = vtanh.pop %v3975
        %v4150 = vtanh.pop %v3977
        %v4151 = vtanh.pop %v2821
        %v4152 = vtanh.pop %v2823
        %v4153 = vtanh.pop %v3400
        %v4154 = vtanh.pop %v3402
        %v4155 = vtanh.pop %v3979
        %v4156 = vtanh.pop %v3981
        %v4157 = vtanh.pop %v2827
        %v4158 = vtanh.pop %v2829
        %v4159 = vtanh.pop %v3406
        %v4160 = vtanh.pop %v3408
        %v4161 = vtanh.pop %v3985
        %v4162 = vtanh.pop %v3987
        %v4163 = vtanh.pop %v2831
        %v4164 = vtanh.pop %v2833
        %v4165 = vtanh.pop %v3410
        %v4166 = vtanh.pop %v3412
        %v4167 = vtanh.pop %v3989
        %v4168 = vtanh.pop %v3991
        %v4169 = vtanh.pop %v2837
        %v4170 = vtanh.pop %v2839
        %v4171 = vtanh.pop %v3416
        %v4172 = vtanh.pop %v3418
        %v4173 = vtanh.pop %v3995
        %v4174 = vtanh.pop %v3997
        %v4175 = vtanh.pop %v2841
        %v4176 = vtanh.pop %v2843
        %v4177 = vtanh.pop %v3420
        %v4178 = vtanh.pop %v3422
        %v4179 = vtanh.pop %v3999
        %v4180 = vtanh.pop %v4001
        %v4181 = vtanh.pop %v2847
        %v4182 = vtanh.pop %v2849
        %v4183 = vtanh.pop %v3426
        %v4184 = vtanh.pop %v3428
        %v4185 = vtanh.pop %v4005
        %v4186 = vtanh.pop %v4007
        %v4187 = vtanh.pop %v2851
        %v4188 = vtanh.pop %v2853
        %v4189 = vtanh.pop %v3430
        %v4190 = vtanh.pop %v3432
        %v4191 = vtanh.pop %v4009
        %v4192 = vtanh.pop %v4011
        %v4193 = vtanh.pop %v2857
        %v4194 = vtanh.pop %v2859
        %v4195 = vtanh.pop %v3436
        %v4196 = vtanh.pop %v3438
        %v4197 = vtanh.pop %v4015
        %v4198 = vtanh.pop %v4017
        %v4199 = vtanh.pop %v2861
        %v4200 = vtanh.pop %v2863
        %v4201 = vtanh.pop %v3440
        %v4202 = vtanh.pop %v3442
        %v4203 = vtanh.pop %v4019
        %v4204 = vtanh.pop %v4021
        %v4205 = vtanh.pop %v2867
        %v4206 = vtanh.pop %v2869
        %v4207 = vtanh.pop %v3446
        %v4208 = vtanh.pop %v3448
        %v4209 = vtanh.pop %v4025
        %v4210 = vtanh.pop %v4027
        %v4211 = vtanh.pop %v2871
        %v4212 = vtanh.pop %v2873
        %v4213 = vtanh.pop %v3450
        %v4214 = vtanh.pop %v3452
        %v4215 = vtanh.pop %v4029
        %v4216 = vtanh.pop %v4031
        %v4217 = vtanh.pop %v2877
        %v4218 = vtanh.pop %v2879
        %v4219 = vtanh.pop %v3456
        %v4220 = vtanh.pop %v3458
        %v4221 = vtanh.pop %v4035
        %v4222 = vtanh.pop %v4037
        %v4223 = vtanh.pop %v2881
        %v4224 = vtanh.pop %v2883
        %v4225 = vtanh.pop %v3460
        %v4226 = vtanh.pop %v3462
        %v4227 = vtanh.pop %v4039
        %v4228 = vtanh.pop %v4041
        %v4229 = vtanh.pop %v2887
        %v4230 = vtanh.pop %v2889
        %v4231 = vtanh.pop %v3466
        %v4232 = vtanh.pop %v3468
        %v4233 = vtanh.pop %v4045
        %v4234 = vtanh.pop %v4047
        %v4235 = vtanh.pop %v2891
        %v4236 = vtanh.pop %v2893
        %v4237 = vtanh.pop %v3470
        %v4238 = vtanh.pop %v3472
        %v4239 = vtanh.pop %v4049
        %v4240 = vtanh.pop %v4051
        %v4241 = vtanh.pop %v2897
        %v4242 = vtanh.pop %v2899
        %v4243 = vtanh.pop %v3476
        %v4244 = vtanh.pop %v3478
        %v4245 = vtanh.pop %v4055
        %v4246 = vtanh.pop %v4057
        %v4247 = vtanh.pop %v2901
        %v4248 = vtanh.pop %v2903
        %v4249 = vtanh.pop %v3480
        %v4250 = vtanh.pop %v3482
        %v4251 = vtanh.pop %v4059
        %v4252 = vtanh.pop %v4061
        %v4253 = vtanh.pop %v2907
        %v4254 = vtanh.pop %v2909
        %v4255 = vtanh.pop %v3486
        %v4256 = vtanh.pop %v3488
        %v4257 = vtanh.pop %v4065
        %v4258 = vtanh.pop %v4067
        %v4259 = vtanh.pop %v2911
        %v4260 = vtanh.pop %v2913
        %v4261 = vtanh.pop %v3490
        %v4262 = vtanh.pop %v3492
        %v4263 = vtanh.pop %v4069
        %v4264 = vtanh.pop %v4071
        %v4265 = vld [vmem:[#allocation9] sm:$0x3f]
        %v4267 = vlaneseq
        %v4268 = vshrl.u32 %v4267, 7
        %v4269 = vsub.s32 0, %v4268
        %v4270 = vrot.slane %v4265, %v4269
        %v4271 = vlaneseq
        %v4272 = vshrl.u32 %v4271, 7
        %v4273 = vsub.s32 1, %v4272
        %v4274 = vrot.slane %v4265, %v4273
        %v4275 = vlaneseq
        %v4276 = vshrl.u32 %v4275, 7
        %v4277 = vsub.s32 2, %v4276
        %v4278 = vrot.slane %v4265, %v4277
        %v4279 = vlaneseq
        %v4280 = vshrl.u32 %v4279, 7
        %v4281 = vsub.s32 3, %v4280
        %v4282 = vrot.slane %v4265, %v4281
        %v4283 = vlaneseq
        %v4284 = vshrl.u32 %v4283, 7
        %v4285 = vsub.s32 4, %v4284
        %v4286 = vrot.slane %v4265, %v4285
        %v4287 = vlaneseq
        %v4288 = vshrl.u32 %v4287, 7
        %v4289 = vsub.s32 5, %v4288
        %v4290 = vrot.slane %v4265, %v4289
        %v4297 = vmul.f32 %v4073, %v4270
        %v4298 = vmul.f32 %v4074, %v4274
        %v4299 = vmul.f32 %v4075, %v4278
        %v4300 = vmul.f32 %v4076, %v4282
        %v4301 = vmul.f32 %v4077, %v4286
        %v4302 = vmul.f32 %v4078, %v4290
        %v4303 = vmul.f32 %v4079, %v4270
        %v4304 = vmul.f32 %v4080, %v4274
        %v4305 = vmul.f32 %v4081, %v4278
        %v4306 = vmul.f32 %v4082, %v4282
        %v4307 = vmul.f32 %v4083, %v4286
        %v4308 = vmul.f32 %v4084, %v4290
        %v4309 = vmul.f32 %v4085, %v4270
        %v4310 = vmul.f32 %v4086, %v4274
        %v4311 = vmul.f32 %v4087, %v4278
        %v4312 = vmul.f32 %v4088, %v4282
        %v4313 = vmul.f32 %v4089, %v4286
        %v4314 = vmul.f32 %v4090, %v4290
        %v4315 = vmul.f32 %v4091, %v4270
        %v4316 = vmul.f32 %v4092, %v4274
        %v4317 = vmul.f32 %v4093, %v4278
        %v4318 = vmul.f32 %v4094, %v4282
        %v4319 = vmul.f32 %v4095, %v4286
        %v4320 = vmul.f32 %v4096, %v4290
        %v4321 = vmul.f32 %v4097, %v4270
        %v4322 = vmul.f32 %v4098, %v4274
        %v4323 = vmul.f32 %v4099, %v4278
        %v4324 = vmul.f32 %v4100, %v4282
        %v4325 = vmul.f32 %v4101, %v4286
        %v4326 = vmul.f32 %v4102, %v4290
        %v4327 = vmul.f32 %v4103, %v4270
        %v4328 = vmul.f32 %v4104, %v4274
        %v4329 = vmul.f32 %v4105, %v4278
        %v4330 = vmul.f32 %v4106, %v4282
        %v4331 = vmul.f32 %v4107, %v4286
        %v4332 = vmul.f32 %v4108, %v4290
        %v4333 = vmul.f32 %v4109, %v4270
        %v4334 = vmul.f32 %v4110, %v4274
        %v4335 = vmul.f32 %v4111, %v4278
        %v4336 = vmul.f32 %v4112, %v4282
        %v4337 = vmul.f32 %v4113, %v4286
        %v4338 = vmul.f32 %v4114, %v4290
        %v4339 = vmul.f32 %v4115, %v4270
        %v4340 = vmul.f32 %v4116, %v4274
        %v4341 = vmul.f32 %v4117, %v4278
        %v4342 = vmul.f32 %v4118, %v4282
        %v4343 = vmul.f32 %v4119, %v4286
        %v4344 = vmul.f32 %v4120, %v4290
        %v4345 = vmul.f32 %v4121, %v4270
        %v4346 = vmul.f32 %v4122, %v4274
        %v4347 = vmul.f32 %v4123, %v4278
        %v4348 = vmul.f32 %v4124, %v4282
        %v4349 = vmul.f32 %v4125, %v4286
        %v4350 = vmul.f32 %v4126, %v4290
        %v4351 = vmul.f32 %v4127, %v4270
        %v4352 = vmul.f32 %v4128, %v4274
        %v4353 = vmul.f32 %v4129, %v4278
        %v4354 = vmul.f32 %v4130, %v4282
        %v4355 = vmul.f32 %v4131, %v4286
        %v4356 = vmul.f32 %v4132, %v4290
        %v4357 = vmul.f32 %v4133, %v4270
        %v4358 = vmul.f32 %v4134, %v4274
        %v4359 = vmul.f32 %v4135, %v4278
        %v4360 = vmul.f32 %v4136, %v4282
        %v4361 = vmul.f32 %v4137, %v4286
        %v4362 = vmul.f32 %v4138, %v4290
        %v4363 = vmul.f32 %v4139, %v4270
        %v4364 = vmul.f32 %v4140, %v4274
        %v4365 = vmul.f32 %v4141, %v4278
        %v4366 = vmul.f32 %v4142, %v4282
        %v4367 = vmul.f32 %v4143, %v4286
        %v4368 = vmul.f32 %v4144, %v4290
        %v4369 = vmul.f32 %v4145, %v4270
        %v4370 = vmul.f32 %v4146, %v4274
        %v4371 = vmul.f32 %v4147, %v4278
        %v4372 = vmul.f32 %v4148, %v4282
        %v4373 = vmul.f32 %v4149, %v4286
        %v4374 = vmul.f32 %v4150, %v4290
        %v4375 = vmul.f32 %v4151, %v4270
        %v4376 = vmul.f32 %v4152, %v4274
        %v4377 = vmul.f32 %v4153, %v4278
        %v4378 = vmul.f32 %v4154, %v4282
        %v4379 = vmul.f32 %v4155, %v4286
        %v4380 = vmul.f32 %v4156, %v4290
        %v4381 = vmul.f32 %v4157, %v4270
        %v4382 = vmul.f32 %v4158, %v4274
        %v4383 = vmul.f32 %v4159, %v4278
        %v4384 = vmul.f32 %v4160, %v4282
        %v4385 = vmul.f32 %v4161, %v4286
        %v4386 = vmul.f32 %v4162, %v4290
        %v4387 = vmul.f32 %v4163, %v4270
        %v4388 = vmul.f32 %v4164, %v4274
        %v4389 = vmul.f32 %v4165, %v4278
        %v4390 = vmul.f32 %v4166, %v4282
        %v4391 = vmul.f32 %v4167, %v4286
        %v4392 = vmul.f32 %v4168, %v4290
        %v4393 = vmul.f32 %v4169, %v4270
        %v4394 = vmul.f32 %v4170, %v4274
        %v4395 = vmul.f32 %v4171, %v4278
        %v4396 = vmul.f32 %v4172, %v4282
        %v4397 = vmul.f32 %v4173, %v4286
        %v4398 = vmul.f32 %v4174, %v4290
        %v4399 = vmul.f32 %v4175, %v4270
        %v4400 = vmul.f32 %v4176, %v4274
        %v4401 = vmul.f32 %v4177, %v4278
        %v4402 = vmul.f32 %v4178, %v4282
        %v4403 = vmul.f32 %v4179, %v4286
        %v4404 = vmul.f32 %v4180, %v4290
        %v4405 = vmul.f32 %v4181, %v4270
        %v4406 = vmul.f32 %v4182, %v4274
        %v4407 = vmul.f32 %v4183, %v4278
        %v4408 = vmul.f32 %v4184, %v4282
        %v4409 = vmul.f32 %v4185, %v4286
        %v4410 = vmul.f32 %v4186, %v4290
        %v4411 = vmul.f32 %v4187, %v4270
        %v4412 = vmul.f32 %v4188, %v4274
        %v4413 = vmul.f32 %v4189, %v4278
        %v4414 = vmul.f32 %v4190, %v4282
        %v4415 = vmul.f32 %v4191, %v4286
        %v4416 = vmul.f32 %v4192, %v4290
        %v4417 = vmul.f32 %v4193, %v4270
        %v4418 = vmul.f32 %v4194, %v4274
        %v4419 = vmul.f32 %v4195, %v4278
        %v4420 = vmul.f32 %v4196, %v4282
        %v4421 = vmul.f32 %v4197, %v4286
        %v4422 = vmul.f32 %v4198, %v4290
        %v4423 = vmul.f32 %v4199, %v4270
        %v4424 = vmul.f32 %v4200, %v4274
        %v4425 = vmul.f32 %v4201, %v4278
        %v4426 = vmul.f32 %v4202, %v4282
        %v4427 = vmul.f32 %v4203, %v4286
        %v4428 = vmul.f32 %v4204, %v4290
        %v4429 = vmul.f32 %v4205, %v4270
        %v4430 = vmul.f32 %v4206, %v4274
        %v4431 = vmul.f32 %v4207, %v4278
        %v4432 = vmul.f32 %v4208, %v4282
        %v4433 = vmul.f32 %v4209, %v4286
        %v4434 = vmul.f32 %v4210, %v4290
        %v4435 = vmul.f32 %v4211, %v4270
        %v4436 = vmul.f32 %v4212, %v4274
        %v4437 = vmul.f32 %v4213, %v4278
        %v4438 = vmul.f32 %v4214, %v4282
        %v4439 = vmul.f32 %v4215, %v4286
        %v4440 = vmul.f32 %v4216, %v4290
        %v4441 = vmul.f32 %v4217, %v4270
        %v4442 = vmul.f32 %v4218, %v4274
        %v4443 = vmul.f32 %v4219, %v4278
        %v4444 = vmul.f32 %v4220, %v4282
        %v4445 = vmul.f32 %v4221, %v4286
        %v4446 = vmul.f32 %v4222, %v4290
        %v4447 = vmul.f32 %v4223, %v4270
        %v4448 = vmul.f32 %v4224, %v4274
        %v4449 = vmul.f32 %v4225, %v4278
        %v4450 = vmul.f32 %v4226, %v4282
        %v4451 = vmul.f32 %v4227, %v4286
        %v4452 = vmul.f32 %v4228, %v4290
        %v4453 = vmul.f32 %v4229, %v4270
        %v4454 = vmul.f32 %v4230, %v4274
        %v4455 = vmul.f32 %v4231, %v4278
        %v4456 = vmul.f32 %v4232, %v4282
        %v4457 = vmul.f32 %v4233, %v4286
        %v4458 = vmul.f32 %v4234, %v4290
        %v4459 = vmul.f32 %v4235, %v4270
        %v4460 = vmul.f32 %v4236, %v4274
        %v4461 = vmul.f32 %v4237, %v4278
        %v4462 = vmul.f32 %v4238, %v4282
        %v4463 = vmul.f32 %v4239, %v4286
        %v4464 = vmul.f32 %v4240, %v4290
        %v4465 = vmul.f32 %v4241, %v4270
        %v4466 = vmul.f32 %v4242, %v4274
        %v4467 = vmul.f32 %v4243, %v4278
        %v4468 = vmul.f32 %v4244, %v4282
        %v4469 = vmul.f32 %v4245, %v4286
        %v4470 = vmul.f32 %v4246, %v4290
        %v4471 = vmul.f32 %v4247, %v4270
        %v4472 = vmul.f32 %v4248, %v4274
        %v4473 = vmul.f32 %v4249, %v4278
        %v4474 = vmul.f32 %v4250, %v4282
        %v4475 = vmul.f32 %v4251, %v4286
        %v4476 = vmul.f32 %v4252, %v4290
        %v4477 = vmul.f32 %v4253, %v4270
        %v4478 = vmul.f32 %v4254, %v4274
        %v4479 = vmul.f32 %v4255, %v4278
        %v4480 = vmul.f32 %v4256, %v4282
        %v4481 = vmul.f32 %v4257, %v4286
        %v4482 = vmul.f32 %v4258, %v4290
        %v4483 = vmul.f32 %v4259, %v4270
        %v4484 = vmul.f32 %v4260, %v4274
        %v4485 = vmul.f32 %v4261, %v4278
        %v4486 = vmul.f32 %v4262, %v4282
        %v4487 = vmul.f32 %v4263, %v4286
        %v4488 = vmul.f32 %v4264, %v4290
        %v4489 = vadd.f32 %v4297, %v4298
        %v4490 = vadd.f32 %v4489, %v4299
        %v4491 = vadd.f32 %v4490, %v4300
        %v4492 = vadd.f32 %v4491, %v4301
        %v4493 = vadd.f32 %v4492, %v4302
        %4494 = vadd.xlane.f32.xlu0 %v4493
        %v4495 = vpop.xlane.xlu0 %4494
        %v4496 = vadd.f32 %v4303, %v4304
        %v4497 = vadd.f32 %v4496, %v4305
        %v4498 = vadd.f32 %v4497, %v4306
        %v4499 = vadd.f32 %v4498, %v4307
        %v4500 = vadd.f32 %v4499, %v4308
        %4501 = vadd.xlane.f32.xlu0 %v4500
        %v4502 = vpop.xlane.xlu0 %4501
        %v4503 = vadd.f32 %v4309, %v4310
        %v4504 = vadd.f32 %v4503, %v4311
        %v4505 = vadd.f32 %v4504, %v4312
        %v4506 = vadd.f32 %v4505, %v4313
        %v4507 = vadd.f32 %v4506, %v4314
        %4508 = vadd.xlane.f32.xlu0 %v4507
        %v4509 = vpop.xlane.xlu0 %4508
        %v4510 = vadd.f32 %v4315, %v4316
        %v4511 = vadd.f32 %v4510, %v4317
        %v4512 = vadd.f32 %v4511, %v4318
        %v4513 = vadd.f32 %v4512, %v4319
        %v4514 = vadd.f32 %v4513, %v4320
        %4515 = vadd.xlane.f32.xlu0 %v4514
        %v4516 = vpop.xlane.xlu0 %4515
        %v4517 = vadd.f32 %v4321, %v4322
        %v4518 = vadd.f32 %v4517, %v4323
        %v4519 = vadd.f32 %v4518, %v4324
        %v4520 = vadd.f32 %v4519, %v4325
        %v4521 = vadd.f32 %v4520, %v4326
        %4522 = vadd.xlane.f32.xlu0 %v4521
        %v4523 = vpop.xlane.xlu0 %4522
        %v4524 = vadd.f32 %v4327, %v4328
        %v4525 = vadd.f32 %v4524, %v4329
        %v4526 = vadd.f32 %v4525, %v4330
        %v4527 = vadd.f32 %v4526, %v4331
        %v4528 = vadd.f32 %v4527, %v4332
        %4529 = vadd.xlane.f32.xlu0 %v4528
        %v4530 = vpop.xlane.xlu0 %4529
        %v4531 = vadd.f32 %v4333, %v4334
        %v4532 = vadd.f32 %v4531, %v4335
        %v4533 = vadd.f32 %v4532, %v4336
        %v4534 = vadd.f32 %v4533, %v4337
        %v4535 = vadd.f32 %v4534, %v4338
        %4536 = vadd.xlane.f32.xlu0 %v4535
        %v4537 = vpop.xlane.xlu0 %4536
        %v4538 = vadd.f32 %v4339, %v4340
        %v4539 = vadd.f32 %v4538, %v4341
        %v4540 = vadd.f32 %v4539, %v4342
        %v4541 = vadd.f32 %v4540, %v4343
        %v4542 = vadd.f32 %v4541, %v4344
        %4543 = vadd.xlane.f32.xlu0 %v4542
        %v4544 = vpop.xlane.xlu0 %4543
        %v4545 = vadd.f32 %v4345, %v4346
        %v4546 = vadd.f32 %v4545, %v4347
        %v4547 = vadd.f32 %v4546, %v4348
        %v4548 = vadd.f32 %v4547, %v4349
        %v4549 = vadd.f32 %v4548, %v4350
        %4550 = vadd.xlane.f32.xlu0 %v4549
        %v4551 = vpop.xlane.xlu0 %4550
        %v4552 = vadd.f32 %v4351, %v4352
        %v4553 = vadd.f32 %v4552, %v4353
        %v4554 = vadd.f32 %v4553, %v4354
        %v4555 = vadd.f32 %v4554, %v4355
        %v4556 = vadd.f32 %v4555, %v4356
        %4557 = vadd.xlane.f32.xlu0 %v4556
        %v4558 = vpop.xlane.xlu0 %4557
        %v4559 = vadd.f32 %v4357, %v4358
        %v4560 = vadd.f32 %v4559, %v4359
        %v4561 = vadd.f32 %v4560, %v4360
        %v4562 = vadd.f32 %v4561, %v4361
        %v4563 = vadd.f32 %v4562, %v4362
        %4564 = vadd.xlane.f32.xlu0 %v4563
        %v4565 = vpop.xlane.xlu0 %4564
        %v4566 = vadd.f32 %v4363, %v4364
        %v4567 = vadd.f32 %v4566, %v4365
        %v4568 = vadd.f32 %v4567, %v4366
        %v4569 = vadd.f32 %v4568, %v4367
        %v4570 = vadd.f32 %v4569, %v4368
        %4571 = vadd.xlane.f32.xlu0 %v4570
        %v4572 = vpop.xlane.xlu0 %4571
        %v4573 = vadd.f32 %v4369, %v4370
        %v4574 = vadd.f32 %v4573, %v4371
        %v4575 = vadd.f32 %v4574, %v4372
        %v4576 = vadd.f32 %v4575, %v4373
        %v4577 = vadd.f32 %v4576, %v4374
        %4578 = vadd.xlane.f32.xlu0 %v4577
        %v4579 = vpop.xlane.xlu0 %4578
        %v4580 = vadd.f32 %v4375, %v4376
        %v4581 = vadd.f32 %v4580, %v4377
        %v4582 = vadd.f32 %v4581, %v4378
        %v4583 = vadd.f32 %v4582, %v4379
        %v4584 = vadd.f32 %v4583, %v4380
        %4585 = vadd.xlane.f32.xlu0 %v4584
        %v4586 = vpop.xlane.xlu0 %4585
        %v4587 = vadd.f32 %v4381, %v4382
        %v4588 = vadd.f32 %v4587, %v4383
        %v4589 = vadd.f32 %v4588, %v4384
        %v4590 = vadd.f32 %v4589, %v4385
        %v4591 = vadd.f32 %v4590, %v4386
        %4592 = vadd.xlane.f32.xlu0 %v4591
        %v4593 = vpop.xlane.xlu0 %4592
        %v4594 = vadd.f32 %v4387, %v4388
        %v4595 = vadd.f32 %v4594, %v4389
        %v4596 = vadd.f32 %v4595, %v4390
        %v4597 = vadd.f32 %v4596, %v4391
        %v4598 = vadd.f32 %v4597, %v4392
        %4599 = vadd.xlane.f32.xlu0 %v4598
        %v4600 = vpop.xlane.xlu0 %4599
        %v4601 = vadd.f32 %v4393, %v4394
        %v4602 = vadd.f32 %v4601, %v4395
        %v4603 = vadd.f32 %v4602, %v4396
        %v4604 = vadd.f32 %v4603, %v4397
        %v4605 = vadd.f32 %v4604, %v4398
        %4606 = vadd.xlane.f32.xlu0 %v4605
        %v4607 = vpop.xlane.xlu0 %4606
        %v4608 = vadd.f32 %v4399, %v4400
        %v4609 = vadd.f32 %v4608, %v4401
        %v4610 = vadd.f32 %v4609, %v4402
        %v4611 = vadd.f32 %v4610, %v4403
        %v4612 = vadd.f32 %v4611, %v4404
        %4613 = vadd.xlane.f32.xlu0 %v4612
        %v4614 = vpop.xlane.xlu0 %4613
        %v4615 = vadd.f32 %v4405, %v4406
        %v4616 = vadd.f32 %v4615, %v4407
        %v4617 = vadd.f32 %v4616, %v4408
        %v4618 = vadd.f32 %v4617, %v4409
        %v4619 = vadd.f32 %v4618, %v4410
        %4620 = vadd.xlane.f32.xlu0 %v4619
        %v4621 = vpop.xlane.xlu0 %4620
        %v4622 = vadd.f32 %v4411, %v4412
        %v4623 = vadd.f32 %v4622, %v4413
        %v4624 = vadd.f32 %v4623, %v4414
        %v4625 = vadd.f32 %v4624, %v4415
        %v4626 = vadd.f32 %v4625, %v4416
        %4627 = vadd.xlane.f32.xlu0 %v4626
        %v4628 = vpop.xlane.xlu0 %4627
        %v4629 = vadd.f32 %v4417, %v4418
        %v4630 = vadd.f32 %v4629, %v4419
        %v4631 = vadd.f32 %v4630, %v4420
        %v4632 = vadd.f32 %v4631, %v4421
        %v4633 = vadd.f32 %v4632, %v4422
        %4634 = vadd.xlane.f32.xlu0 %v4633
        %v4635 = vpop.xlane.xlu0 %4634
        %v4636 = vadd.f32 %v4423, %v4424
        %v4637 = vadd.f32 %v4636, %v4425
        %v4638 = vadd.f32 %v4637, %v4426
        %v4639 = vadd.f32 %v4638, %v4427
        %v4640 = vadd.f32 %v4639, %v4428
        %4641 = vadd.xlane.f32.xlu0 %v4640
        %v4642 = vpop.xlane.xlu0 %4641
        %v4643 = vadd.f32 %v4429, %v4430
        %v4644 = vadd.f32 %v4643, %v4431
        %v4645 = vadd.f32 %v4644, %v4432
        %v4646 = vadd.f32 %v4645, %v4433
        %v4647 = vadd.f32 %v4646, %v4434
        %4648 = vadd.xlane.f32.xlu0 %v4647
        %v4649 = vpop.xlane.xlu0 %4648
        %v4650 = vadd.f32 %v4435, %v4436
        %v4651 = vadd.f32 %v4650, %v4437
        %v4652 = vadd.f32 %v4651, %v4438
        %v4653 = vadd.f32 %v4652, %v4439
        %v4654 = vadd.f32 %v4653, %v4440
        %4655 = vadd.xlane.f32.xlu0 %v4654
        %v4656 = vpop.xlane.xlu0 %4655
        %v4657 = vadd.f32 %v4441, %v4442
        %v4658 = vadd.f32 %v4657, %v4443
        %v4659 = vadd.f32 %v4658, %v4444
        %v4660 = vadd.f32 %v4659, %v4445
        %v4661 = vadd.f32 %v4660, %v4446
        %4662 = vadd.xlane.f32.xlu0 %v4661
        %v4663 = vpop.xlane.xlu0 %4662
        %v4664 = vadd.f32 %v4447, %v4448
        %v4665 = vadd.f32 %v4664, %v4449
        %v4666 = vadd.f32 %v4665, %v4450
        %v4667 = vadd.f32 %v4666, %v4451
        %v4668 = vadd.f32 %v4667, %v4452
        %4669 = vadd.xlane.f32.xlu0 %v4668
        %v4670 = vpop.xlane.xlu0 %4669
        %v4671 = vadd.f32 %v4453, %v4454
        %v4672 = vadd.f32 %v4671, %v4455
        %v4673 = vadd.f32 %v4672, %v4456
        %v4674 = vadd.f32 %v4673, %v4457
        %v4675 = vadd.f32 %v4674, %v4458
        %4676 = vadd.xlane.f32.xlu0 %v4675
        %v4677 = vpop.xlane.xlu0 %4676
        %v4678 = vadd.f32 %v4459, %v4460
        %v4679 = vadd.f32 %v4678, %v4461
        %v4680 = vadd.f32 %v4679, %v4462
        %v4681 = vadd.f32 %v4680, %v4463
        %v4682 = vadd.f32 %v4681, %v4464
        %4683 = vadd.xlane.f32.xlu0 %v4682
        %v4684 = vpop.xlane.xlu0 %4683
        %v4685 = vadd.f32 %v4465, %v4466
        %v4686 = vadd.f32 %v4685, %v4467
        %v4687 = vadd.f32 %v4686, %v4468
        %v4688 = vadd.f32 %v4687, %v4469
        %v4689 = vadd.f32 %v4688, %v4470
        %4690 = vadd.xlane.f32.xlu0 %v4689
        %v4691 = vpop.xlane.xlu0 %4690
        %v4692 = vadd.f32 %v4471, %v4472
        %v4693 = vadd.f32 %v4692, %v4473
        %v4694 = vadd.f32 %v4693, %v4474
        %v4695 = vadd.f32 %v4694, %v4475
        %v4696 = vadd.f32 %v4695, %v4476
        %4697 = vadd.xlane.f32.xlu0 %v4696
        %v4698 = vpop.xlane.xlu0 %4697
        %v4699 = vadd.f32 %v4477, %v4478
        %v4700 = vadd.f32 %v4699, %v4479
        %v4701 = vadd.f32 %v4700, %v4480
        %v4702 = vadd.f32 %v4701, %v4481
        %v4703 = vadd.f32 %v4702, %v4482
        %4704 = vadd.xlane.f32.xlu0 %v4703
        %v4705 = vpop.xlane.xlu0 %4704
        %v4706 = vadd.f32 %v4483, %v4484
        %v4707 = vadd.f32 %v4706, %v4485
        %v4708 = vadd.f32 %v4707, %v4486
        %v4709 = vadd.f32 %v4708, %v4487
        %v4710 = vadd.f32 %v4709, %v4488
        %4711 = vadd.xlane.f32.xlu0 %v4710
        %v4712 = vpop.xlane.xlu0 %4711
        %v4713 = vld [vmem:[#allocation2] sm:$0x1]
        %v4715 = vlaneseq
        %v4716 = vshrl.u32 %v4715, 7
        %v4717 = vsub.s32 0, %v4716
        %v4718 = vrot.slane %v4713, %v4717
        %v4720 = vadd.f32 %v4495, %v4718
        %v4721 = vadd.f32 %v4502, %v4718
        %v4722 = vadd.f32 %v4509, %v4718
        %v4723 = vadd.f32 %v4516, %v4718
        %v4724 = vadd.f32 %v4523, %v4718
        %v4725 = vadd.f32 %v4530, %v4718
        %v4726 = vadd.f32 %v4537, %v4718
        %v4727 = vadd.f32 %v4544, %v4718
        %v4728 = vadd.f32 %v4551, %v4718
        %v4729 = vadd.f32 %v4558, %v4718
        %v4730 = vadd.f32 %v4565, %v4718
        %v4731 = vadd.f32 %v4572, %v4718
        %v4732 = vadd.f32 %v4579, %v4718
        %v4733 = vadd.f32 %v4586, %v4718
        %v4734 = vadd.f32 %v4593, %v4718
        %v4735 = vadd.f32 %v4600, %v4718
        %v4736 = vadd.f32 %v4607, %v4718
        %v4737 = vadd.f32 %v4614, %v4718
        %v4738 = vadd.f32 %v4621, %v4718
        %v4739 = vadd.f32 %v4628, %v4718
        %v4740 = vadd.f32 %v4635, %v4718
        %v4741 = vadd.f32 %v4642, %v4718
        %v4742 = vadd.f32 %v4649, %v4718
        %v4743 = vadd.f32 %v4656, %v4718
        %v4744 = vadd.f32 %v4663, %v4718
        %v4745 = vadd.f32 %v4670, %v4718
        %v4746 = vadd.f32 %v4677, %v4718
        %v4747 = vadd.f32 %v4684, %v4718
        %v4748 = vadd.f32 %v4691, %v4718
        %v4749 = vadd.f32 %v4698, %v4718
        %v4750 = vadd.f32 %v4705, %v4718
        %v4751 = vadd.f32 %v4712, %v4718
        %4753 = vset.pattern.permute.xlu0 0
        %4754 = vperm.xlu0 %4753, %v4720
        %v4755 = vpop.permute.xlu0 %4754
        %4758 = vset.pattern.permute.xlu0 0
        %4759 = vperm.xlu0 %4758, %v4721
        %v4760 = vpop.permute.xlu0 %4759
        %4763 = vset.pattern.permute.xlu0 0
        %4764 = vperm.xlu0 %4763, %v4722
        %v4765 = vpop.permute.xlu0 %4764
        %4768 = vset.pattern.permute.xlu0 0
        %4769 = vperm.xlu0 %4768, %v4723
        %v4770 = vpop.permute.xlu0 %4769
        %4773 = vset.pattern.permute.xlu0 0
        %4774 = vperm.xlu0 %4773, %v4724
        %v4775 = vpop.permute.xlu0 %4774
        %4778 = vset.pattern.permute.xlu0 0
        %4779 = vperm.xlu0 %4778, %v4725
        %v4780 = vpop.permute.xlu0 %4779
        %4783 = vset.pattern.permute.xlu0 0
        %4784 = vperm.xlu0 %4783, %v4726
        %v4785 = vpop.permute.xlu0 %4784
        %4788 = vset.pattern.permute.xlu0 0
        %4789 = vperm.xlu0 %4788, %v4727
        %v4790 = vpop.permute.xlu0 %4789
        %4793 = vset.pattern.permute.xlu0 0
        %4794 = vperm.xlu0 %4793, %v4728
        %v4795 = vpop.permute.xlu0 %4794
        %4798 = vset.pattern.permute.xlu0 0
        %4799 = vperm.xlu0 %4798, %v4729
        %v4800 = vpop.permute.xlu0 %4799
        %4803 = vset.pattern.permute.xlu0 0
        %4804 = vperm.xlu0 %4803, %v4730
        %v4805 = vpop.permute.xlu0 %4804
        %4808 = vset.pattern.permute.xlu0 0
        %4809 = vperm.xlu0 %4808, %v4731
        %v4810 = vpop.permute.xlu0 %4809
        %4813 = vset.pattern.permute.xlu0 0
        %4814 = vperm.xlu0 %4813, %v4732
        %v4815 = vpop.permute.xlu0 %4814
        %4818 = vset.pattern.permute.xlu0 0
        %4819 = vperm.xlu0 %4818, %v4733
        %v4820 = vpop.permute.xlu0 %4819
        %4823 = vset.pattern.permute.xlu0 0
        %4824 = vperm.xlu0 %4823, %v4734
        %v4825 = vpop.permute.xlu0 %4824
        %4828 = vset.pattern.permute.xlu0 0
        %4829 = vperm.xlu0 %4828, %v4735
        %v4830 = vpop.permute.xlu0 %4829
        %4833 = vset.pattern.permute.xlu0 0
        %4834 = vperm.xlu0 %4833, %v4736
        %v4835 = vpop.permute.xlu0 %4834
        %4838 = vset.pattern.permute.xlu0 0
        %4839 = vperm.xlu0 %4838, %v4737
        %v4840 = vpop.permute.xlu0 %4839
        %4843 = vset.pattern.permute.xlu0 0
        %4844 = vperm.xlu0 %4843, %v4738
        %v4845 = vpop.permute.xlu0 %4844
        %4848 = vset.pattern.permute.xlu0 0
        %4849 = vperm.xlu0 %4848, %v4739
        %v4850 = vpop.permute.xlu0 %4849
        %4853 = vset.pattern.permute.xlu0 0
        %4854 = vperm.xlu0 %4853, %v4740
        %v4855 = vpop.permute.xlu0 %4854
        %4858 = vset.pattern.permute.xlu0 0
        %4859 = vperm.xlu0 %4858, %v4741
        %v4860 = vpop.permute.xlu0 %4859
        %4863 = vset.pattern.permute.xlu0 0
        %4864 = vperm.xlu0 %4863, %v4742
        %v4865 = vpop.permute.xlu0 %4864
        %4868 = vset.pattern.permute.xlu0 0
        %4869 = vperm.xlu0 %4868, %v4743
        %v4870 = vpop.permute.xlu0 %4869
        %4873 = vset.pattern.permute.xlu0 0
        %4874 = vperm.xlu0 %4873, %v4744
        %v4875 = vpop.permute.xlu0 %4874
        %4878 = vset.pattern.permute.xlu0 0
        %4879 = vperm.xlu0 %4878, %v4745
        %v4880 = vpop.permute.xlu0 %4879
        %4883 = vset.pattern.permute.xlu0 0
        %4884 = vperm.xlu0 %4883, %v4746
        %v4885 = vpop.permute.xlu0 %4884
        %4888 = vset.pattern.permute.xlu0 0
        %4889 = vperm.xlu0 %4888, %v4747
        %v4890 = vpop.permute.xlu0 %4889
        %4893 = vset.pattern.permute.xlu0 0
        %4894 = vperm.xlu0 %4893, %v4748
        %v4895 = vpop.permute.xlu0 %4894
        %4898 = vset.pattern.permute.xlu0 0
        %4899 = vperm.xlu0 %4898, %v4749
        %v4900 = vpop.permute.xlu0 %4899
        %4903 = vset.pattern.permute.xlu0 0
        %4904 = vperm.xlu0 %4903, %v4750
        %v4905 = vpop.permute.xlu0 %4904
        %4908 = vset.pattern.permute.xlu0 0
        %4909 = vperm.xlu0 %4908, %v4751
        %v4910 = vpop.permute.xlu0 %4909
        %v4912 = vpack.c.bf16 %v4760, %v4755
        %v4913 = vpack.c.bf16 %v4770, %v4765
        %v4914 = vpack.c.bf16 %v4780, %v4775
        %v4915 = vpack.c.bf16 %v4790, %v4785
        %v4916 = vpack.c.bf16 %v4800, %v4795
        %v4917 = vpack.c.bf16 %v4810, %v4805
        %v4918 = vpack.c.bf16 %v4820, %v4815
        %v4919 = vpack.c.bf16 %v4830, %v4825
        %v4920 = vpack.c.bf16 %v4840, %v4835
        %v4921 = vpack.c.bf16 %v4850, %v4845
        %v4922 = vpack.c.bf16 %v4860, %v4855
        %v4923 = vpack.c.bf16 %v4870, %v4865
        %v4924 = vpack.c.bf16 %v4880, %v4875
        %v4925 = vpack.c.bf16 %v4890, %v4885
        %v4926 = vpack.c.bf16 %v4900, %v4895
        %v4927 = vpack.c.bf16 %v4910, %v4905
        %v4945 = vunpack.c.l.s4 839922192
        %v4946 = vunpack.c.0.s8 %v4945
        %v4947 = vlaneseq
        %v4948 = vshrl.u32 %v4947, 7
        %v4949 = vsub.s32 %v4946, %v4948
        %v4950 = vrot.slane %v4912, %v4949
        %v4952 = vunpack.c.l.s4 1985246804
        %v4953 = vunpack.c.0.s8 %v4952
        %v4954 = vlaneseq
        %v4955 = vshrl.u32 %v4954, 7
        %v4956 = vsub.s32 %v4953, %v4955
        %v4957 = vrot.slane %v4912, %v4956
        %v4959 = vunpack.c.l.s4 839922192
        %v4960 = vunpack.c.0.s8 %v4959
        %v4961 = vlaneseq
        %v4962 = vshrl.u32 %v4961, 7
        %v4963 = vsub.s32 %v4960, %v4962
        %v4964 = vrot.slane %v4913, %v4963
        %v4966 = vunpack.c.l.s4 1985246804
        %v4967 = vunpack.c.0.s8 %v4966
        %v4968 = vlaneseq
        %v4969 = vshrl.u32 %v4968, 7
        %v4970 = vsub.s32 %v4967, %v4969
        %v4971 = vrot.slane %v4913, %v4970
        %v4973 = vunpack.c.l.s4 839922192
        %v4974 = vunpack.c.0.s8 %v4973
        %v4975 = vlaneseq
        %v4976 = vshrl.u32 %v4975, 7
        %v4977 = vsub.s32 %v4974, %v4976
        %v4978 = vrot.slane %v4914, %v4977
        %v4980 = vunpack.c.l.s4 1985246804
        %v4981 = vunpack.c.0.s8 %v4980
        %v4982 = vlaneseq
        %v4983 = vshrl.u32 %v4982, 7
        %v4984 = vsub.s32 %v4981, %v4983
        %v4985 = vrot.slane %v4914, %v4984
        %v4987 = vunpack.c.l.s4 839922192
        %v4988 = vunpack.c.0.s8 %v4987
        %v4989 = vlaneseq
        %v4990 = vshrl.u32 %v4989, 7
        %v4991 = vsub.s32 %v4988, %v4990
        %v4992 = vrot.slane %v4915, %v4991
        %v4994 = vunpack.c.l.s4 1985246804
        %v4995 = vunpack.c.0.s8 %v4994
        %v4996 = vlaneseq
        %v4997 = vshrl.u32 %v4996, 7
        %v4998 = vsub.s32 %v4995, %v4997
        %v4999 = vrot.slane %v4915, %v4998
        %v5001 = vunpack.c.l.s4 839922192
        %v5002 = vunpack.c.0.s8 %v5001
        %v5003 = vlaneseq
        %v5004 = vshrl.u32 %v5003, 7
        %v5005 = vsub.s32 %v5002, %v5004
        %v5006 = vrot.slane %v4916, %v5005
        %v5008 = vunpack.c.l.s4 1985246804
        %v5009 = vunpack.c.0.s8 %v5008
        %v5010 = vlaneseq
        %v5011 = vshrl.u32 %v5010, 7
        %v5012 = vsub.s32 %v5009, %v5011
        %v5013 = vrot.slane %v4916, %v5012
        %v5015 = vunpack.c.l.s4 839922192
        %v5016 = vunpack.c.0.s8 %v5015
        %v5017 = vlaneseq
        %v5018 = vshrl.u32 %v5017, 7
        %v5019 = vsub.s32 %v5016, %v5018
        %v5020 = vrot.slane %v4917, %v5019
        %v5022 = vunpack.c.l.s4 1985246804
        %v5023 = vunpack.c.0.s8 %v5022
        %v5024 = vlaneseq
        %v5025 = vshrl.u32 %v5024, 7
        %v5026 = vsub.s32 %v5023, %v5025
        %v5027 = vrot.slane %v4917, %v5026
        %v5029 = vunpack.c.l.s4 839922192
        %v5030 = vunpack.c.0.s8 %v5029
        %v5031 = vlaneseq
        %v5032 = vshrl.u32 %v5031, 7
        %v5033 = vsub.s32 %v5030, %v5032
        %v5034 = vrot.slane %v4918, %v5033
        %v5036 = vunpack.c.l.s4 1985246804
        %v5037 = vunpack.c.0.s8 %v5036
        %v5038 = vlaneseq
        %v5039 = vshrl.u32 %v5038, 7
        %v5040 = vsub.s32 %v5037, %v5039
        %v5041 = vrot.slane %v4918, %v5040
        %v5043 = vunpack.c.l.s4 839922192
        %v5044 = vunpack.c.0.s8 %v5043
        %v5045 = vlaneseq
        %v5046 = vshrl.u32 %v5045, 7
        %v5047 = vsub.s32 %v5044, %v5046
        %v5048 = vrot.slane %v4919, %v5047
        %v5050 = vunpack.c.l.s4 1985246804
        %v5051 = vunpack.c.0.s8 %v5050
        %v5052 = vlaneseq
        %v5053 = vshrl.u32 %v5052, 7
        %v5054 = vsub.s32 %v5051, %v5053
        %v5055 = vrot.slane %v4919, %v5054
        %v5057 = vunpack.c.l.s4 839922192
        %v5058 = vunpack.c.0.s8 %v5057
        %v5059 = vlaneseq
        %v5060 = vshrl.u32 %v5059, 7
        %v5061 = vsub.s32 %v5058, %v5060
        %v5062 = vrot.slane %v4920, %v5061
        %v5064 = vunpack.c.l.s4 1985246804
        %v5065 = vunpack.c.0.s8 %v5064
        %v5066 = vlaneseq
        %v5067 = vshrl.u32 %v5066, 7
        %v5068 = vsub.s32 %v5065, %v5067
        %v5069 = vrot.slane %v4920, %v5068
        %v5071 = vunpack.c.l.s4 839922192
        %v5072 = vunpack.c.0.s8 %v5071
        %v5073 = vlaneseq
        %v5074 = vshrl.u32 %v5073, 7
        %v5075 = vsub.s32 %v5072, %v5074
        %v5076 = vrot.slane %v4921, %v5075
        %v5078 = vunpack.c.l.s4 1985246804
        %v5079 = vunpack.c.0.s8 %v5078
        %v5080 = vlaneseq
        %v5081 = vshrl.u32 %v5080, 7
        %v5082 = vsub.s32 %v5079, %v5081
        %v5083 = vrot.slane %v4921, %v5082
        %v5085 = vunpack.c.l.s4 839922192
        %v5086 = vunpack.c.0.s8 %v5085
        %v5087 = vlaneseq
        %v5088 = vshrl.u32 %v5087, 7
        %v5089 = vsub.s32 %v5086, %v5088
        %v5090 = vrot.slane %v4922, %v5089
        %v5092 = vunpack.c.l.s4 1985246804
        %v5093 = vunpack.c.0.s8 %v5092
        %v5094 = vlaneseq
        %v5095 = vshrl.u32 %v5094, 7
        %v5096 = vsub.s32 %v5093, %v5095
        %v5097 = vrot.slane %v4922, %v5096
        %v5099 = vunpack.c.l.s4 839922192
        %v5100 = vunpack.c.0.s8 %v5099
        %v5101 = vlaneseq
        %v5102 = vshrl.u32 %v5101, 7
        %v5103 = vsub.s32 %v5100, %v5102
        %v5104 = vrot.slane %v4923, %v5103
        %v5106 = vunpack.c.l.s4 1985246804
        %v5107 = vunpack.c.0.s8 %v5106
        %v5108 = vlaneseq
        %v5109 = vshrl.u32 %v5108, 7
        %v5110 = vsub.s32 %v5107, %v5109
        %v5111 = vrot.slane %v4923, %v5110
        %v5113 = vunpack.c.l.s4 839922192
        %v5114 = vunpack.c.0.s8 %v5113
        %v5115 = vlaneseq
        %v5116 = vshrl.u32 %v5115, 7
        %v5117 = vsub.s32 %v5114, %v5116
        %v5118 = vrot.slane %v4924, %v5117
        %v5120 = vunpack.c.l.s4 1985246804
        %v5121 = vunpack.c.0.s8 %v5120
        %v5122 = vlaneseq
        %v5123 = vshrl.u32 %v5122, 7
        %v5124 = vsub.s32 %v5121, %v5123
        %v5125 = vrot.slane %v4924, %v5124
        %v5127 = vunpack.c.l.s4 839922192
        %v5128 = vunpack.c.0.s8 %v5127
        %v5129 = vlaneseq
        %v5130 = vshrl.u32 %v5129, 7
        %v5131 = vsub.s32 %v5128, %v5130
        %v5132 = vrot.slane %v4925, %v5131
        %v5134 = vunpack.c.l.s4 1985246804
        %v5135 = vunpack.c.0.s8 %v5134
        %v5136 = vlaneseq
        %v5137 = vshrl.u32 %v5136, 7
        %v5138 = vsub.s32 %v5135, %v5137
        %v5139 = vrot.slane %v4925, %v5138
        %v5141 = vunpack.c.l.s4 839922192
        %v5142 = vunpack.c.0.s8 %v5141
        %v5143 = vlaneseq
        %v5144 = vshrl.u32 %v5143, 7
        %v5145 = vsub.s32 %v5142, %v5144
        %v5146 = vrot.slane %v4926, %v5145
        %v5148 = vunpack.c.l.s4 1985246804
        %v5149 = vunpack.c.0.s8 %v5148
        %v5150 = vlaneseq
        %v5151 = vshrl.u32 %v5150, 7
        %v5152 = vsub.s32 %v5149, %v5151
        %v5153 = vrot.slane %v4926, %v5152
        %v5155 = vunpack.c.l.s4 839922192
        %v5156 = vunpack.c.0.s8 %v5155
        %v5157 = vlaneseq
        %v5158 = vshrl.u32 %v5157, 7
        %v5159 = vsub.s32 %v5156, %v5158
        %v5160 = vrot.slane %v4927, %v5159
        %v5162 = vunpack.c.l.s4 1985246804
        %v5163 = vunpack.c.0.s8 %v5162
        %v5164 = vlaneseq
        %v5165 = vshrl.u32 %v5164, 7
        %v5166 = vsub.s32 %v5163, %v5165
        %v5167 = vrot.slane %v4927, %v5166
        %5200 = vst [vmem:[%s285] sm:$0xf] %v4950
        %5201 = vst [vmem:[%s285 + $0x4] sm:$0xf] %v4957
        %5202 = vst [vmem:[%s285 + $0x8] sm:$0xf] %v4964
        %5203 = vst [vmem:[%s285 + $0xc] sm:$0xf] %v4971
        %5204 = vst [vmem:[%s285 + $0x10] sm:$0xf] %v4978
        %5205 = vst [vmem:[%s285 + $0x14] sm:$0xf] %v4985
        %5206 = vst [vmem:[%s285 + $0x18] sm:$0xf] %v4992
        %5207 = vst [vmem:[%s285 + $0x1c] sm:$0xf] %v4999
        %5208 = vst [vmem:[%s285 + $0x20] sm:$0xf] %v5006
        %5209 = vst [vmem:[%s285 + $0x24] sm:$0xf] %v5013
        %5210 = vst [vmem:[%s285 + $0x28] sm:$0xf] %v5020
        %5211 = vst [vmem:[%s285 + $0x2c] sm:$0xf] %v5027
        %5212 = vst [vmem:[%s285 + $0x30] sm:$0xf] %v5034
        %5213 = vst [vmem:[%s285 + $0x34] sm:$0xf] %v5041
        %5214 = vst [vmem:[%s285 + $0x38] sm:$0xf] %v5048
        %5215 = vst [vmem:[%s285 + $0x3c] sm:$0xf] %v5055
        %5216 = vst [vmem:[%s285 + $0x40] sm:$0xf] %v5062
        %5217 = vst [vmem:[%s285 + $0x44] sm:$0xf] %v5069
        %5218 = vst [vmem:[%s285 + $0x48] sm:$0xf] %v5076
        %5219 = vst [vmem:[%s285 + $0x4c] sm:$0xf] %v5083
        %5220 = vst [vmem:[%s285 + $0x50] sm:$0xf] %v5090
        %5221 = vst [vmem:[%s285 + $0x54] sm:$0xf] %v5097
        %5222 = vst [vmem:[%s285 + $0x58] sm:$0xf] %v5104
        %5223 = vst [vmem:[%s285 + $0x5c] sm:$0xf] %v5111
        %5224 = vst [vmem:[%s285 + $0x60] sm:$0xf] %v5118
        %5225 = vst [vmem:[%s285 + $0x64] sm:$0xf] %v5125
        %5226 = vst [vmem:[%s285 + $0x68] sm:$0xf] %v5132
        %5227 = vst [vmem:[%s285 + $0x6c] sm:$0xf] %v5139
        %5228 = vst [vmem:[%s285 + $0x70] sm:$0xf] %v5146
        %5229 = vst [vmem:[%s285 + $0x74] sm:$0xf] %v5153
        %5230 = vst [vmem:[%s285 + $0x78] sm:$0xf] %v5160
        %5231 = vst [vmem:[%s285 + $0x7c] sm:$0xf] %v5167
        %s5232 = sand.u32 %s144, 1
        %s5233 = scalar_lea.sflag [#allocation5], %s5232
        %s5234 = sand.u32 %s144, 1
        %s5235 = smul.addr %s5234, 128
        %s5236 = scalar_lea.vmem [#allocation11], %s5235
        // Predicated region
        $region57: #{_clf_head_call.1} parent=39 // pred_check
          %p5237 = pneg %p154
        $region58: #{_clf_head_call.1} parent=39 // pred_check_branch
          %5239 = sbr.rel (%p5237) target = $region60
        $region59: #{_clf_head_call.1} parent=39 // pred_region
          %s5240 = smul.u32 32, %s26
          %s5242 = ssub.s32 2048, 2048
          %5243 = vsyncadd %s5233, %s5242
          %s5244 = smul.addr %s5240, 64
          %s5245 = scalar_lea.hbm %s5, %s5244
          %s5246 = sshll.u32 %s5236, 4
          %s5247 = int_to_ptr.vmem [resolvable:$true] %s5246
          %5252 = dma.vmem_to_hbm [thread:$0]  %s5247, 2048, %s5245, %s5233, 64, 64, 4
        $region60: #{_clf_head_call.1} parent=39 // pred_fallthru
          _
      $region40: #{_clf_head_call.1} parent=5 // pred_fallthru
        _
      %p5253 = scmp.le.s32.totalorder 2, %s21
      // Predicated region
      $region61: #{_clf_head_call.1} parent=5 // pred_check
        %p5254 = pneg %p5253
      $region62: #{_clf_head_call.1} parent=5 // pred_check_branch
        %5256 = sbr.rel (%p5254) target = $region64
      $region63: #{_clf_head_call.1} parent=5 // pred_region
        %s5257 = ssub.s32 %s21, 2
        // Predicated region
        $region65: #{_clf_head_call.1} parent=63 // pred_check
          %p5258 = pneg %p160
        $region66: #{_clf_head_call.1} parent=63 // pred_check_branch
          %5260 = sbr.rel (%p5258) target = $region68
        $region67: #{_clf_head_call.1} parent=63 // pred_region
          %s5261 = sand.u32 %s145, 1
          %s5262 = scalar_lea.sflag [#allocation5], %s5261
          %s5263 = sand.u32 %s145, 1
          %s5264 = smul.addr %s5263, 128
          %s5265 = scalar_lea.vmem [#allocation11], %s5264
          %5266 = dma.done %s5262, 2048
        $region68: #{_clf_head_call.1} parent=63 // pred_fallthru
          _
      $region64: #{_clf_head_call.1} parent=5 // pred_fallthru
        _
    $region6: #{_clf_head_call.1} parent=1 // loop_footer
      %s25 = sadd.s32 1, %s21
    $region7: #{_clf_head_call.1} parent=1 // loop_footer_branch
      %20 = sbr.rel target = $region3
    $region8: #{_clf_head_call.1} parent=1 // loop_exit
      _
    %5267 = vsyncpa [#allocation4], 1
    %s5268 = scalar_lea.sflag [#allocation4], 1
    %5269 = vsyncpa %s5268, 1
    %5270 = vsyncpa [#allocation7], 1
    %5271 = vsyncpa [#allocation10], 1
    %5272 = vsyncpa [#allocation5], 1
    %s5273 = scalar_lea.sflag [#allocation5], 1
    %5274 = vsyncpa %s5273, 1

</llo_original>
